<compile_context>
chip_gen: v7x
topology: tpu7x:2x2x1
jax: 0.10.0
libtpu: 0.0.40
codegen_flags: <defaults>
</compile_context>

<pallas_src>
import functools

import jax
import jax.numpy as jnp
from jax.experimental import pallas as pl
from jax.experimental.pallas import tpu as pltpu


# ----------------------------------------------------------------------------
# Fused kernel: one (Bb, T, D) batch block per grid step.
# ----------------------------------------------------------------------------
def fft_block_kernel(x_ref,
                     wqkv_ref, bqkv_ref, wo_ref, bo_ref,
                     w1_ref, b1_ref, w2_ref, b2_ref,
                     gamma_ref, beta_ref,
                     *rest,
                     n_head, k1, p1, pad_left, compute_dtype, emit_attn,
                     has_mask, kv_block, eps=1e-5):
    idx = 0
    mask_ref = None
    if has_mask:
        mask_ref = rest[idx]; idx += 1
    out_ref = rest[idx]; idx += 1
    attn_ref = None
    if emit_attn:
        attn_ref = rest[idx]; idx += 1
    ohead_ref = rest[idx]; idx += 1          # (Bb*T, D) per-head attention outputs
    pad_ref = rest[idx] if p1 > 0 else None  # (Bb, T+pad_left+p1, D) conv halo

    cd = compute_dtype
    bf16 = (cd == jnp.bfloat16)

    xb = x_ref[...]                           # (Bb, T, D)
    Bb, T, D = xb.shape
    H = n_head
    Dh = D // H

    xf = xb.reshape(Bb * T, D).astype(cd)

    # ---- fused Q/K/V projection: one lane-dense (Bb*T, D) @ (D, 3D) matmul.
    # Column layout [Q heads | K heads | V heads]; 1/sqrt(Dh) folded on host.
    qkv = jnp.dot(xf, wqkv_ref[...], preferred_element_type=jnp.float32)
    qkv = qkv + bqkv_ref[...]                 # (Bb*T, 3D) f32

    use_flash = (kv_block is not None) and (kv_block < T)

    # Static head loop; accumulators live in VMEM refs, not loop-carried values.
    for h in range(H):
        q = qkv[:, h * Dh:(h + 1) * Dh].reshape(Bb, T, Dh).astype(cd)
        k = qkv[:, D + h * Dh:D + (h + 1) * Dh].reshape(Bb, T, Dh).astype(cd)
        v = qkv[:, 2 * D + h * Dh:2 * D + (h + 1) * Dh].reshape(Bb, T, Dh).astype(cd)

        if not use_flash:
            s = jnp.einsum('btd,bsd->bts', q, k,
                           preferred_element_type=jnp.float32)       # (Bb,T,T)
            m = jnp.max(s, axis=-1, keepdims=True)
            # bf16 exp relieves the EUP on v6e/v7x; statistics stay f32.
            e = jnp.exp((s - m).astype(cd)) if bf16 else jnp.exp(s - m)
            denom = jnp.sum(e.astype(jnp.float32), axis=-1, keepdims=True)
            inv = pl.reciprocal(denom, approx=(bf16 and not emit_attn))
            # Normalize the (Bb,T,Dh) output, not the (Bb,T,T) probabilities.
            o = jnp.einsum('bts,bsd->btd', e.astype(cd), v,
                           preferred_element_type=jnp.float32) * inv
            if emit_attn:
                p = e.astype(jnp.float32) * inv
                if h == 0:
                    attn_ref[...] = p.astype(attn_ref.dtype)
                else:
                    attn_ref[...] = attn_ref[...] + p.astype(attn_ref.dtype)
        else:
            # Flash-style online softmax over KV chunks (no attn-weight output).
            # TODO(synk): for very long T also tile queries and keep m/l/acc in
            # VMEM scratch instead of loop-carried values.
            n_chunks = T // kv_block
            m_i = jnp.full((Bb, T, 1), -jnp.inf, jnp.float32)
            l_i = jnp.zeros((Bb, T, 1), jnp.float32)
            acc = jnp.zeros((Bb, T, Dh), jnp.float32)
            for c in range(n_chunks):
                kc = k[:, c * kv_block:(c + 1) * kv_block, :]
                vc = v[:, c * kv_block:(c + 1) * kv_block, :]
                s = jnp.einsum('btd,bsd->bts', q, kc,
                               preferred_element_type=jnp.float32)   # (Bb,T,kvb)
                m_new = jnp.maximum(m_i, jnp.max(s, axis=-1, keepdims=True))
                alpha = jnp.exp(m_i - m_new)
                e = jnp.exp((s - m_new).astype(cd)) if bf16 else jnp.exp(s - m_new)
                l_i = alpha * l_i + jnp.sum(e.astype(jnp.float32), axis=-1,
                                            keepdims=True)
                acc = alpha * acc + jnp.einsum('bts,bsd->btd', e.astype(cd), vc,
                                               preferred_element_type=jnp.float32)
                m_i = m_new
            o = acc * pl.reciprocal(l_i, approx=bf16)

        # Head output into its lane slice of the VMEM scratch -> one full-depth
        # output-projection matmul below (no per-head K=Dh accumulation).
        ohead_ref[:, h * Dh:(h + 1) * Dh] = o.reshape(Bb * T, Dh).astype(cd)

    if emit_attn:
        attn_ref[...] = (attn_ref[...].astype(jnp.float32)
                         * (1.0 / H)).astype(attn_ref.dtype)

    # ---- output projection: single (Bb*T, D) @ (D, D) MXU matmul --------------
    y = jnp.dot(ohead_ref[...], wo_ref[...],
                preferred_element_type=jnp.float32) + bo_ref[...]

    a = y.reshape(Bb, T, D)
    if has_mask:
        mpad = mask_ref[...].astype(jnp.float32)          # (Bb, T, 1)
        a = a * mpad
    # TODO(synk): attention / FFN dropout are identity (eval-mode semantics).

    # ---- position-wise FFN: conv1d(k1)+ReLU -> conv1d(1) -> +res -> LN --------
    d_hid = w1_ref.shape[-1]
    if p1 > 0:
        L = pad_left                                       # roundup(p1, 8)
        zrow = jnp.zeros((Bb, p1, D), cd)
        pad_ref[:, L - p1:L, :] = zrow
        pad_ref[:, L + T:L + T + p1, :] = zrow
        pad_ref[:, L:L + T, :] = a.astype(cd)              # sublane-aligned store

    hacc = jnp.zeros((Bb * T, d_hid), jnp.float32)
    # TODO(synk): if the misaligned tap reads materialize VMEM copies in the
    # bundle dump, switch to the shift-the-partials (pltpu.roll) variant.
    for kk in range(k1):                                   # static taps, MXU accum
        if p1 > 0:
            tap = pad_ref[:, pad_left - p1 + kk:pad_left - p1 + kk + T, :]
            tap = tap.reshape(Bb * T, D)
        else:
            tap = a.reshape(Bb * T, D).astype(cd)
        hacc = hacc + jnp.dot(tap, w1_ref[kk], preferred_element_type=jnp.float32)
    hacc = jnp.maximum(hacc + b1_ref[...], 0.0)            # bias + ReLU (f32)

    y2 = jnp.dot(hacc.astype(cd), w2_ref[...],
                 preferred_element_type=jnp.float32) + b2_ref[...]

    z = y2 + a.reshape(Bb * T, D)                          # residual add (f32)
    mu = jnp.mean(z, axis=-1, keepdims=True)
    var = jnp.mean(jnp.square(z - mu), axis=-1, keepdims=True)
    zn = (z - mu) * jax.lax.rsqrt(var + eps)
    out = (zn * gamma_ref[...] + beta_ref[...]).reshape(Bb, T, D)
    if has_mask:
        out = out * mpad
    out_ref[...] = out.astype(out_ref.dtype)


# ----------------------------------------------------------------------------
# Wrapper helpers
# ----------------------------------------------------------------------------
def _vmem_limit_bytes():
    # ~80% of physical VMEM: ~102 MiB on v5e/v6e (128 MiB), ~51 MiB on v7x (64 MiB).
    try:
        return int(pltpu.get_tpu_info().vmem_capacity_bytes * 0.8)
    except Exception:
        return 48 * 1024 * 1024


def _pick_batch_block(B, T, *, target_rows, score_bytes_per_batch,
                      score_budget=16 << 20):
    """Largest divisor of B such that Bb*T approaches target_rows of MXU M,
    capped by a per-batch score-VMEM budget and by keeping >=2 grid steps."""
    want = max(1, -(-target_rows // T))                    # ceil(target_rows / T)
    bb = min(B, want)
    if score_bytes_per_batch > 0:
        bb = min(bb, max(1, score_budget // score_bytes_per_batch))
    if B >= 2:
        bb = min(bb, B // 2)   # keep >=2 grid steps so both v7x TCs get work
    bb = max(1, min(bb, B))
    while B % bb:
        bb -= 1
    return bb


def fft_block_forward(x, mha_params, ffn_params, n_head, k1, p1,
                      non_pad_mask=None, slf_attn_mask=None,
                      compute_dtype=jnp.float32, return_attn=True,
                      attn_kv_block=None, batch_block=None):
    # TODO(synk): key_padding_mask (slf_attn_mask) is not implemented.
    assert slf_attn_mask is None
    B, T, D = x.shape
    assert D % n_head == 0
    assert T + 2 * p1 - k1 + 1 == T, "conv1 must be length-preserving"
    if attn_kv_block is not None:
        assert not return_attn, "attention weights require the full-softmax path"
        assert T % attn_kv_block == 0
    Dh = D // n_head
    wq, wk, wv, bq, bk, bv, wo, bo = mha_params
    w1, b1, w2, b2, gamma, beta = ffn_params
    d_hid = w1.shape[-1]
    cd = compute_dtype
    scale = 1.0 / float(Dh) ** 0.5

    # Host-side weight prep (free): fused QKV matrix with 1/sqrt(Dh) folded into
    # the Q columns/bias; transposed output projection; compute-dtype casts.
    wqkv = jnp.concatenate([(wq * scale).T, wk.T, wv.T], axis=1).astype(cd)  # (D,3D)
    bqkv = jnp.concatenate([bq * scale, bk, bv], axis=1).astype(jnp.float32)  # (1,3D)
    wo_t = wo.T.astype(cd)                                                    # (D, D)
    w1c = w1.astype(cd)                                                       # (k1,D,d_hid)
    w2c = w2.astype(cd)                                                       # (d_hid,D)

    use_flash = attn_kv_block is not None and attn_kv_block < T
    if use_flash:
        score_bytes = 3 * T * max(attn_kv_block, Dh) * 4
    else:
        score_bytes = (3 if return_attn else 2) * T * T * 4
    Bb = batch_block or _pick_batch_block(
        B, T, target_rows=(256 if return_attn else 512),
        score_bytes_per_batch=score_bytes)
    grid = (B // Bb,)
    has_mask = non_pad_mask is not None
    pad_left = ((p1 + 7) // 8) * 8 if p1 > 0 else 0

    inputs = [x, wqkv, bqkv, wo_t, bo, w1c, b1, w2c, b2, gamma, beta]
    const_arrs = list(inputs[1:])            # grid-invariant weight/bias blocks
    if has_mask:
        inputs.append(non_pad_mask.reshape(B, T, 1).astype(x.dtype))

    out_shape = [jax.ShapeDtypeStruct((B, T, D), x.dtype)]
    out_specs = [pl.BlockSpec((Bb, T, D), lambda b: (b, 0, 0))]
    if return_attn:
        # Attention weights emitted in compute_dtype (halves HBM write on bf16).
        out_shape.append(jax.ShapeDtypeStruct((B, T, T), cd))
        out_specs.append(pl.BlockSpec((Bb, T, T), lambda b: (b, 0, 0)))

    scratch = [pltpu.VMEM((Bb * T, D), cd)]          # per-head attention outputs
    if p1 > 0:
        scratch.append(pltpu.VMEM((Bb, T + pad_left + p1, D), cd))

    kern = functools.partial(
        fft_block_kernel, n_head=n_head, k1=k1, p1=p1, pad_left=pad_left,
        compute_dtype=cd, emit_attn=return_attn, has_mask=has_mask,
        kv_block=attn_kv_block)

    def build(single_buffer_weights):
        def const_spec(arr):
            nd = arr.ndim
            index_map = lambda b, _n=nd: (0,) * _n
            if single_buffer_weights:
                # Grid-invariant blocks: no double-buffering (halves weight VMEM).
                return pl.BlockSpec(arr.shape, index_map,
                                    pipeline_mode=pl.Buffered(1))
            return pl.BlockSpec(arr.shape, index_map)

        in_specs = [pl.BlockSpec((Bb, T, D), lambda b: (b, 0, 0))]
        in_specs += [const_spec(a) for a in const_arrs]
        if has_mask:
            in_specs.append(pl.BlockSpec((Bb, T, 1), lambda b: (b, 0, 0)))

        return pl.pallas_call(
            kern,
            out_shape=tuple(out_shape),
            grid=grid,
            in_specs=in_specs,
            out_specs=tuple(out_specs),
            scratch_shapes=scratch,
            compiler_params=pltpu.CompilerParams(
                dimension_semantics=("parallel",),
                vmem_limit_bytes=_vmem_limit_bytes()),
        )

    try:
        outs = build(True)(*inputs)
    except Exception:
        # pipeline_mode=pl.Buffered(1) unsupported on this jax version; fall back
        # to default double-buffered weight blocks (correctness unaffected).
        outs = build(False)(*inputs)

    if return_attn:
        return outs[0], outs[1]
    return outs[0], None


# ----------------------------------------------------------------------------
# Pure-JAX reference (eval-mode semantics of the PyTorch module)
# ----------------------------------------------------------------------------
def ref_forward(x, mha_params, ffn_params, n_head, k1, p1, non_pad_mask=None):
    wq, wk, wv, bq, bk, bv, wo, bo = mha_params
    w1, b1, w2, b2, gamma, beta = ffn_params
    B, T, D = x.shape
    Dh = D // n_head

    q = (x @ wq.T + bq).reshape(B, T, n_head, Dh)
    k = (x @ wk.T + bk).reshape(B, T, n_head, Dh)
    v = (x @ wv.T + bv).reshape(B, T, n_head, Dh)
    s = jnp.einsum('bthd,bshd->bhts', q, k) / jnp.sqrt(jnp.float32(Dh))
    p = jax.nn.softmax(s, axis=-1)
    o = jnp.einsum('bhts,bshd->bthd', p, v).reshape(B, T, D)
    attn_out = o @ wo.T + bo
    attn_w = p.mean(axis=1)

    if non_pad_mask is not None:
        attn_out = attn_out * non_pad_mask

    xpad = jnp.pad(attn_out, ((0, 0), (p1, p1), (0, 0)))
    h = sum(xpad[:, kk:kk + T, :] @ w1[kk] for kk in range(k1)) + b1
    h = jnp.maximum(h, 0.0)
    y = h @ w2 + b2
    z = y + attn_out
    mu = jnp.mean(z, axis=-1, keepdims=True)
    var = jnp.mean((z - mu) ** 2, axis=-1, keepdims=True)
    out = (z - mu) * jax.lax.rsqrt(var + 1e-5) * gamma + beta
    if non_pad_mask is not None:
        out = out * non_pad_mask
    return out, attn_w


# ----------------------------------------------------------------------------
if __name__ == "__main__":
    B, T = 2, 8
    d_model, d_inner, n_head = 32, 64, 2
    fft_conv1d_kernel = [3, 1]
    fft_conv1d_padding = [1, 0]
    k1, p1 = fft_conv1d_kernel[0], fft_conv1d_padding[0]

    key = jax.random.PRNGKey(0)
    keys = jax.random.split(key, 14)
    sc = 0.1

    # MultiheadAttention parameters (in_proj split into q/k/v; out_proj).
    wq = sc * jax.random.normal(keys[0], (d_model, d_model), jnp.float32)
    wk = sc * jax.random.normal(keys[1], (d_model, d_model), jnp.float32)
    wv = sc * jax.random.normal(keys[2], (d_model, d_model), jnp.float32)
    bq = sc * jax.random.normal(keys[3], (1, d_model), jnp.float32)
    bk = sc * jax.random.normal(keys[4], (1, d_model), jnp.float32)
    bv = sc * jax.random.normal(keys[5], (1, d_model), jnp.float32)
    wo = sc * jax.random.normal(keys[6], (d_model, d_model), jnp.float32)
    bo = sc * jax.random.normal(keys[7], (1, d_model), jnp.float32)
    mha_params = (wq, wk, wv, bq, bk, bv, wo, bo)

    # PositionwiseFeedForward parameters.
    # torch w_1.weight (d_inner, d_model, k1) -> stored as (k1, d_model, d_inner)
    w1 = sc * jax.random.normal(keys[8], (k1, d_model, d_inner), jnp.float32)
    b1 = sc * jax.random.normal(keys[9], (1, d_inner), jnp.float32)
    # torch w_2.weight (d_model, d_inner, 1) -> stored as (d_inner, d_model)
    w2 = sc * jax.random.normal(keys[10], (d_inner, d_model), jnp.float32)
    b2 = sc * jax.random.normal(keys[11], (1, d_model), jnp.float32)
    gamma = jnp.ones((1, d_model), jnp.float32)       # LayerNorm fresh init
    beta = jnp.zeros((1, d_model), jnp.float32)
    ffn_params = (w1, b1, w2, b2, gamma, beta)

    x = jax.random.normal(keys[12], (B, T, d_model), jnp.float32)
    ref_out, ref_attn = ref_forward(x, mha_params, ffn_params, n_head, k1, p1)

    # 1) f32 path with attention weights (matches module semantics exactly).
    out, attn = fft_block_forward(x, mha_params, ffn_params, n_head, k1, p1,
                                  compute_dtype=jnp.float32, return_attn=True)
    out = jax.block_until_ready(out)
    attn = jax.block_until_ready(attn)
    assert jnp.allclose(out, ref_out, atol=1e-4, rtol=1e-4), "output mismatch"
    assert jnp.allclose(attn, ref_attn, atol=1e-4, rtol=1e-4), "attn mismatch"

    # 2) bf16-matmul fast path, attention weights skipped (typical inference).
    out_bf, _ = fft_block_forward(x, mha_params, ffn_params, n_head, k1, p1,
                                  compute_dtype=jnp.bfloat16, return_attn=False)
    out_bf = jax.block_until_ready(out_bf)
    assert jnp.allclose(out_bf, ref_out, atol=1e-1, rtol=1e-1), "bf16 output mismatch"

    # 3) non_pad_mask path (f32).
    mask = (jax.random.uniform(keys[13], (B, T, 1)) > 0.3).astype(jnp.float32)
    out_m, _ = fft_block_forward(x, mha_params, ffn_params, n_head, k1, p1,
                                 non_pad_mask=mask, compute_dtype=jnp.float32,
                                 return_attn=False)
    out_m = jax.block_until_ready(out_m)
    ref_m, _ = ref_forward(x, mha_params, ffn_params, n_head, k1, p1,
                           non_pad_mask=mask)
    assert jnp.allclose(out_m, ref_m, atol=1e-4, rtol=1e-4), "masked output mismatch"

    # 4) flash-style online-softmax path over KV chunks (f32, no attn weights).
    out_fl, _ = fft_block_forward(x, mha_params, ffn_params, n_head, k1, p1,
                                  compute_dtype=jnp.float32, return_attn=False,
                                  attn_kv_block=4)
    out_fl = jax.block_until_ready(out_fl)
    assert jnp.allclose(out_fl, ref_out, atol=1e-4, rtol=1e-4), "flash output mismatch"

    print("KERNEL_OK")
</pallas_src>

<mosaic_0001>
module attributes {stable_mosaic.version = 11 : i64} {
  func.func @fft_block_kernel(%arg0: i32, %arg1: memref<1x8x32xf32, #tpu.memory_space<vmem>>, %arg2: memref<32x96xf32, #tpu.memory_space<vmem>>, %arg3: memref<1x96xf32, #tpu.memory_space<vmem>>, %arg4: memref<32x32xf32, #tpu.memory_space<vmem>>, %arg5: memref<1x32xf32, #tpu.memory_space<vmem>>, %arg6: memref<3x32x64xf32, #tpu.memory_space<vmem>>, %arg7: memref<1x64xf32, #tpu.memory_space<vmem>>, %arg8: memref<64x32xf32, #tpu.memory_space<vmem>>, %arg9: memref<1x32xf32, #tpu.memory_space<vmem>>, %arg10: memref<1x32xf32, #tpu.memory_space<vmem>>, %arg11: memref<1x32xf32, #tpu.memory_space<vmem>>, %arg12: memref<1x8x32xf32, #tpu.memory_space<vmem>>, %arg13: memref<1x8x8xf32, #tpu.memory_space<vmem>>, %arg14: memref<8x32xf32, #tpu.memory_space<vmem>>, %arg15: memref<1x17x32xf32, #tpu.memory_space<vmem>>) attributes {dimension_semantics = [#tpu.dimension_semantics<parallel>], iteration_bounds = array<i64: 2>, scalar_prefetch = 0 : i64, scratch_operands = 2 : i64, tpu.core_type = #tpu.core_type<tc>, window_params = [{transform_indices = @transform_0, window_bounds = array<i64: 1, 8, 32>}, {pipeline_mode = #tpu.pipeline_mode<synchronous>, transform_indices = @transform_1, window_bounds = array<i64: 32, 96>}, {pipeline_mode = #tpu.pipeline_mode<synchronous>, transform_indices = @transform_2, window_bounds = array<i64: 1, 96>}, {pipeline_mode = #tpu.pipeline_mode<synchronous>, transform_indices = @transform_3, window_bounds = array<i64: 32, 32>}, {pipeline_mode = #tpu.pipeline_mode<synchronous>, transform_indices = @transform_4, window_bounds = array<i64: 1, 32>}, {pipeline_mode = #tpu.pipeline_mode<synchronous>, transform_indices = @transform_5, window_bounds = array<i64: 3, 32, 64>}, {pipeline_mode = #tpu.pipeline_mode<synchronous>, transform_indices = @transform_6, window_bounds = array<i64: 1, 64>}, {pipeline_mode = #tpu.pipeline_mode<synchronous>, transform_indices = @transform_7, window_bounds = array<i64: 64, 32>}, {pipeline_mode = #tpu.pipeline_mode<synchronous>, transform_indices = @transform_8, window_bounds = array<i64: 1, 32>}, {pipeline_mode = #tpu.pipeline_mode<synchronous>, transform_indices = @transform_9, window_bounds = array<i64: 1, 32>}, {pipeline_mode = #tpu.pipeline_mode<synchronous>, transform_indices = @transform_10, window_bounds = array<i64: 1, 32>}, {transform_indices = @transform_11, window_bounds = array<i64: 1, 8, 32>}, {transform_indices = @transform_12, window_bounds = array<i64: 1, 8, 8>}]} {
    %c0 = arith.constant 0 : index
    %c0_0 = arith.constant 0 : index
    %c0_1 = arith.constant 0 : index
    %0 = vector.load %arg1[%c0, %c0_0, %c0_1] : memref<1x8x32xf32, #tpu.memory_space<vmem>>, vector<1x8x32xf32>
    %1 = vector.shape_cast %0 : vector<1x8x32xf32> to vector<8x32xf32>
    %c0_2 = arith.constant 0 : index
    %c0_3 = arith.constant 0 : index
    %2 = vector.load %arg2[%c0_2, %c0_3] : memref<32x96xf32, #tpu.memory_space<vmem>>, vector<32x96xf32>
    %cst = arith.constant dense<0.000000e+00> : vector<8x96xf32>
    %3 = tpu.matmul %1, %2, %cst {dimension_numbers = #tpu.dot_dimension_numbers<[1], [0], [0], [1], [0, 0, 1, 1], [], []>} : vector<8x32xf32>, vector<32x96xf32>, vector<8x96xf32> -> vector<8x96xf32>
    %c0_4 = arith.constant 0 : index
    %c0_5 = arith.constant 0 : index
    %4 = vector.load %arg3[%c0_4, %c0_5] : memref<1x96xf32, #tpu.memory_space<vmem>>, vector<1x96xf32>
    %5 = vector.broadcast %4 : vector<1x96xf32> to vector<8x96xf32>
    %6 = arith.addf %3, %5 : vector<8x96xf32>
    %7 = vector.extract_strided_slice %6 {offsets = [0, 0], sizes = [8, 16], strides = [1, 1]} : vector<8x96xf32> to vector<8x16xf32>
    %8 = vector.shape_cast %7 : vector<8x16xf32> to vector<1x8x16xf32>
    %9 = vector.extract_strided_slice %6 {offsets = [0, 32], sizes = [8, 16], strides = [1, 1]} : vector<8x96xf32> to vector<8x16xf32>
    %10 = vector.shape_cast %9 : vector<8x16xf32> to vector<1x8x16xf32>
    %11 = vector.extract_strided_slice %6 {offsets = [0, 64], sizes = [8, 16], strides = [1, 1]} : vector<8x96xf32> to vector<8x16xf32>
    %12 = vector.shape_cast %11 : vector<8x16xf32> to vector<1x8x16xf32>
    "tpu.trace_start"() <{level = 10 : i32, message = "btd,bsd->bts"}> : () -> ()
    %cst_6 = arith.constant dense<0.000000e+00> : vector<1x8x8xf32>
    %13 = tpu.matmul %8, %10, %cst_6 {dimension_numbers = #tpu.dot_dimension_numbers<[2], [2], [1], [1], [0, 0, 0, 1, 1, 1], [0], [0]>} : vector<1x8x16xf32>, vector<1x8x16xf32>, vector<1x8x8xf32> -> vector<1x8x8xf32>
    "tpu.trace_stop"() : () -> ()
    %cst_7 = arith.constant dense<0xFF800000> : vector<1x8xf32>
    %14 = vector.multi_reduction <maximumf>, %13, %cst_7 [2] : vector<1x8x8xf32> to vector<1x8xf32>
    %15 = vector.shape_cast %14 : vector<1x8xf32> to vector<1x8x1xf32>
    %16 = vector.broadcast %15 : vector<1x8x1xf32> to vector<1x8x8xf32>
    %17 = arith.subf %13, %16 : vector<1x8x8xf32>
    %18 = math.exp %17 : vector<1x8x8xf32>
    %cst_8 = arith.constant dense<0.000000e+00> : vector<1x8xf32>
    %19 = vector.multi_reduction <add>, %18, %cst_8 [2] : vector<1x8x8xf32> to vector<1x8xf32>
    %20 = vector.shape_cast %19 : vector<1x8xf32> to vector<1x8x1xf32>
    %21 = tpu.reciprocal %20 : vector<1x8x1xf32> -> vector<1x8x1xf32>
    "tpu.trace_start"() <{level = 10 : i32, message = "bts,bsd->btd"}> : () -> ()
    %cst_9 = arith.constant dense<0.000000e+00> : vector<1x8x16xf32>
    %22 = tpu.matmul %18, %12, %cst_9 {dimension_numbers = #tpu.dot_dimension_numbers<[2], [1], [1], [2], [0, 0, 0, 1, 1, 2], [0], [0]>} : vector<1x8x8xf32>, vector<1x8x16xf32>, vector<1x8x16xf32> -> vector<1x8x16xf32>
    "tpu.trace_stop"() : () -> ()
    %23 = vector.broadcast %21 : vector<1x8x1xf32> to vector<1x8x16xf32>
    %24 = arith.mulf %22, %23 : vector<1x8x16xf32>
    %25 = vector.broadcast %21 : vector<1x8x1xf32> to vector<1x8x8xf32>
    %26 = arith.mulf %18, %25 : vector<1x8x8xf32>
    %c0_10 = arith.constant 0 : index
    %c0_11 = arith.constant 0 : index
    %c0_12 = arith.constant 0 : index
    %27 = vector.load %arg13[%c0_10, %c0_11, %c0_12] : memref<1x8x8xf32, #tpu.memory_space<vmem>>, vector<1x8x8xf32>
    tpu.vector_store %arg13[%c0_10, %c0_11, %c0_12], %26 {strides = array<i32>} : memref<1x8x8xf32, #tpu.memory_space<vmem>>, vector<1x8x8xf32>,
    %28 = vector.shape_cast %24 : vector<1x8x16xf32> to vector<8x16xf32>
    %c0_13 = arith.constant 0 : index
    %c0_14 = arith.constant 0 : index
    %29 = vector.load %arg14[%c0_13, %c0_14] : memref<8x32xf32, #tpu.memory_space<vmem>>, vector<8x16xf32>
    tpu.vector_store %arg14[%c0_13, %c0_14], %28 {strides = array<i32>} : memref<8x32xf32, #tpu.memory_space<vmem>>, vector<8x16xf32>,
    %30 = vector.extract_strided_slice %6 {offsets = [0, 16], sizes = [8, 16], strides = [1, 1]} : vector<8x96xf32> to vector<8x16xf32>
    %31 = vector.shape_cast %30 : vector<8x16xf32> to vector<1x8x16xf32>
    %32 = vector.extract_strided_slice %6 {offsets = [0, 48], sizes = [8, 16], strides = [1, 1]} : vector<8x96xf32> to vector<8x16xf32>
    %33 = vector.shape_cast %32 : vector<8x16xf32> to vector<1x8x16xf32>
    %34 = vector.extract_strided_slice %6 {offsets = [0, 80], sizes = [8, 16], strides = [1, 1]} : vector<8x96xf32> to vector<8x16xf32>
    %35 = vector.shape_cast %34 : vector<8x16xf32> to vector<1x8x16xf32>
    "tpu.trace_start"() <{level = 10 : i32, message = "btd,bsd->bts"}> : () -> ()
    %cst_15 = arith.constant dense<0.000000e+00> : vector<1x8x8xf32>
    %36 = tpu.matmul %31, %33, %cst_15 {dimension_numbers = #tpu.dot_dimension_numbers<[2], [2], [1], [1], [0, 0, 0, 1, 1, 1], [0], [0]>} : vector<1x8x16xf32>, vector<1x8x16xf32>, vector<1x8x8xf32> -> vector<1x8x8xf32>
    "tpu.trace_stop"() : () -> ()
    %cst_16 = arith.constant dense<0xFF800000> : vector<1x8xf32>
    %37 = vector.multi_reduction <maximumf>, %36, %cst_16 [2] : vector<1x8x8xf32> to vector<1x8xf32>
    %38 = vector.shape_cast %37 : vector<1x8xf32> to vector<1x8x1xf32>
    %39 = vector.broadcast %38 : vector<1x8x1xf32> to vector<1x8x8xf32>
    %40 = arith.subf %36, %39 : vector<1x8x8xf32>
    %41 = math.exp %40 : vector<1x8x8xf32>
    %cst_17 = arith.constant dense<0.000000e+00> : vector<1x8xf32>
    %42 = vector.multi_reduction <add>, %41, %cst_17 [2] : vector<1x8x8xf32> to vector<1x8xf32>
    %43 = vector.shape_cast %42 : vector<1x8xf32> to vector<1x8x1xf32>
    %44 = tpu.reciprocal %43 : vector<1x8x1xf32> -> vector<1x8x1xf32>
    "tpu.trace_start"() <{level = 10 : i32, message = "bts,bsd->btd"}> : () -> ()
    %cst_18 = arith.constant dense<0.000000e+00> : vector<1x8x16xf32>
    %45 = tpu.matmul %41, %35, %cst_18 {dimension_numbers = #tpu.dot_dimension_numbers<[2], [1], [1], [2], [0, 0, 0, 1, 1, 2], [0], [0]>} : vector<1x8x8xf32>, vector<1x8x16xf32>, vector<1x8x16xf32> -> vector<1x8x16xf32>
    "tpu.trace_stop"() : () -> ()
    %46 = vector.broadcast %44 : vector<1x8x1xf32> to vector<1x8x16xf32>
    %47 = arith.mulf %45, %46 : vector<1x8x16xf32>
    %48 = vector.broadcast %44 : vector<1x8x1xf32> to vector<1x8x8xf32>
    %49 = arith.mulf %41, %48 : vector<1x8x8xf32>
    %c0_19 = arith.constant 0 : index
    %c0_20 = arith.constant 0 : index
    %c0_21 = arith.constant 0 : index
    %50 = vector.load %arg13[%c0_19, %c0_20, %c0_21] : memref<1x8x8xf32, #tpu.memory_space<vmem>>, vector<1x8x8xf32>
    %51 = arith.addf %50, %49 : vector<1x8x8xf32>
    %c0_22 = arith.constant 0 : index
    %c0_23 = arith.constant 0 : index
    %c0_24 = arith.constant 0 : index
    %52 = vector.load %arg13[%c0_22, %c0_23, %c0_24] : memref<1x8x8xf32, #tpu.memory_space<vmem>>, vector<1x8x8xf32>
    tpu.vector_store %arg13[%c0_22, %c0_23, %c0_24], %51 {strides = array<i32>} : memref<1x8x8xf32, #tpu.memory_space<vmem>>, vector<1x8x8xf32>,
    %53 = vector.shape_cast %47 : vector<1x8x16xf32> to vector<8x16xf32>
    %c0_25 = arith.constant 0 : index
    %c16 = arith.constant 16 : index
    %54 = vector.load %arg14[%c0_25, %c16] : memref<8x32xf32, #tpu.memory_space<vmem>>, vector<8x16xf32>
    tpu.vector_store %arg14[%c0_25, %c16], %53 {strides = array<i32>} : memref<8x32xf32, #tpu.memory_space<vmem>>, vector<8x16xf32>,
    %c0_26 = arith.constant 0 : index
    %c0_27 = arith.constant 0 : index
    %c0_28 = arith.constant 0 : index
    %55 = vector.load %arg13[%c0_26, %c0_27, %c0_28] : memref<1x8x8xf32, #tpu.memory_space<vmem>>, vector<1x8x8xf32>
    %cst_29 = arith.constant 5.000000e-01 : f32
    %56 = vector.broadcast %cst_29 : f32 to vector<1x8x8xf32>
    %57 = arith.mulf %55, %56 : vector<1x8x8xf32>
    %c0_30 = arith.constant 0 : index
    %c0_31 = arith.constant 0 : index
    %c0_32 = arith.constant 0 : index
    %58 = vector.load %arg13[%c0_30, %c0_31, %c0_32] : memref<1x8x8xf32, #tpu.memory_space<vmem>>, vector<1x8x8xf32>
    tpu.vector_store %arg13[%c0_30, %c0_31, %c0_32], %57 {strides = array<i32>} : memref<1x8x8xf32, #tpu.memory_space<vmem>>, vector<1x8x8xf32>,
    %c0_33 = arith.constant 0 : index
    %c0_34 = arith.constant 0 : index
    %59 = vector.load %arg14[%c0_33, %c0_34] : memref<8x32xf32, #tpu.memory_space<vmem>>, vector<8x32xf32>
    %c0_35 = arith.constant 0 : index
    %c0_36 = arith.constant 0 : index
    %60 = vector.load %arg4[%c0_35, %c0_36] : memref<32x32xf32, #tpu.memory_space<vmem>>, vector<32x32xf32>
    %cst_37 = arith.constant dense<0.000000e+00> : vector<8x32xf32>
    %61 = tpu.matmul %59, %60, %cst_37 {dimension_numbers = #tpu.dot_dimension_numbers<[1], [0], [0], [1], [0, 0, 1, 1], [], []>} : vector<8x32xf32>, vector<32x32xf32>, vector<8x32xf32> -> vector<8x32xf32>
    %c0_38 = arith.constant 0 : index
    %c0_39 = arith.constant 0 : index
    %62 = vector.load %arg5[%c0_38, %c0_39] : memref<1x32xf32, #tpu.memory_space<vmem>>, vector<1x32xf32>
    %63 = vector.broadcast %62 : vector<1x32xf32> to vector<8x32xf32>
    %64 = arith.addf %61, %63 : vector<8x32xf32>
    %65 = vector.shape_cast %64 : vector<8x32xf32> to vector<1x8x32xf32>
    %cst_40 = arith.constant 0.000000e+00 : f32
    %66 = vector.broadcast %cst_40 : f32 to vector<1x1x32xf32>
    %c0_41 = arith.constant 0 : index
    %c7 = arith.constant 7 : index
    %c0_42 = arith.constant 0 : index
    %67 = vector.load %arg15[%c0_41, %c7, %c0_42] : memref<1x17x32xf32, #tpu.memory_space<vmem>>, vector<1x1x32xf32>
    tpu.vector_store %arg15[%c0_41, %c7, %c0_42], %66 {strides = array<i32>} : memref<1x17x32xf32, #tpu.memory_space<vmem>>, vector<1x1x32xf32>,
    %c0_43 = arith.constant 0 : index
    %c16_44 = arith.constant 16 : index
    %c0_45 = arith.constant 0 : index
    %68 = vector.load %arg15[%c0_43, %c16_44, %c0_45] : memref<1x17x32xf32, #tpu.memory_space<vmem>>, vector<1x1x32xf32>
    tpu.vector_store %arg15[%c0_43, %c16_44, %c0_45], %66 {strides = array<i32>} : memref<1x17x32xf32, #tpu.memory_space<vmem>>, vector<1x1x32xf32>,
    %c0_46 = arith.constant 0 : index
    %c8 = arith.constant 8 : index
    %c0_47 = arith.constant 0 : index
    %69 = vector.load %arg15[%c0_46, %c8, %c0_47] : memref<1x17x32xf32, #tpu.memory_space<vmem>>, vector<1x8x32xf32>
    tpu.vector_store %arg15[%c0_46, %c8, %c0_47], %65 {strides = array<i32>} : memref<1x17x32xf32, #tpu.memory_space<vmem>>, vector<1x8x32xf32>,
    %cst_48 = arith.constant 0.000000e+00 : f32
    %70 = vector.broadcast %cst_48 : f32 to vector<8x64xf32>
    %c0_49 = arith.constant 0 : index
    %c7_50 = arith.constant 7 : index
    %c0_51 = arith.constant 0 : index
    %71 = vector.load %arg15[%c0_49, %c7_50, %c0_51] : memref<1x17x32xf32, #tpu.memory_space<vmem>>, vector<1x8x32xf32>
    %72 = vector.shape_cast %71 : vector<1x8x32xf32> to vector<8x32xf32>
    %c0_52 = arith.constant 0 : index
    %c0_53 = arith.constant 0 : index
    %c0_54 = arith.constant 0 : index
    %73 = vector.load %arg6[%c0_52, %c0_53, %c0_54] : memref<3x32x64xf32, #tpu.memory_space<vmem>>, vector<1x32x64xf32>
    %74 = vector.shape_cast %73 : vector<1x32x64xf32> to vector<32x64xf32>
    %cst_55 = arith.constant dense<0.000000e+00> : vector<8x64xf32>
    %75 = tpu.matmul %72, %74, %cst_55 {dimension_numbers = #tpu.dot_dimension_numbers<[1], [0], [0], [1], [0, 0, 1, 1], [], []>} : vector<8x32xf32>, vector<32x64xf32>, vector<8x64xf32> -> vector<8x64xf32>
    %76 = arith.addf %70, %75 : vector<8x64xf32>
    %c0_56 = arith.constant 0 : index
    %c8_57 = arith.constant 8 : index
    %c0_58 = arith.constant 0 : index
    %77 = vector.load %arg15[%c0_56, %c8_57, %c0_58] : memref<1x17x32xf32, #tpu.memory_space<vmem>>, vector<1x8x32xf32>
    %78 = vector.shape_cast %77 : vector<1x8x32xf32> to vector<8x32xf32>
    %c1 = arith.constant 1 : index
    %c0_59 = arith.constant 0 : index
    %c0_60 = arith.constant 0 : index
    %79 = vector.load %arg6[%c1, %c0_59, %c0_60] : memref<3x32x64xf32, #tpu.memory_space<vmem>>, vector<1x32x64xf32>
    %80 = vector.shape_cast %79 : vector<1x32x64xf32> to vector<32x64xf32>
    %cst_61 = arith.constant dense<0.000000e+00> : vector<8x64xf32>
    %81 = tpu.matmul %78, %80, %cst_61 {dimension_numbers = #tpu.dot_dimension_numbers<[1], [0], [0], [1], [0, 0, 1, 1], [], []>} : vector<8x32xf32>, vector<32x64xf32>, vector<8x64xf32> -> vector<8x64xf32>
    %82 = arith.addf %76, %81 : vector<8x64xf32>
    %c0_62 = arith.constant 0 : index
    %c9 = arith.constant 9 : index
    %c0_63 = arith.constant 0 : index
    %83 = vector.load %arg15[%c0_62, %c9, %c0_63] : memref<1x17x32xf32, #tpu.memory_space<vmem>>, vector<1x8x32xf32>
    %84 = vector.shape_cast %83 : vector<1x8x32xf32> to vector<8x32xf32>
    %c2 = arith.constant 2 : index
    %c0_64 = arith.constant 0 : index
    %c0_65 = arith.constant 0 : index
    %85 = vector.load %arg6[%c2, %c0_64, %c0_65] : memref<3x32x64xf32, #tpu.memory_space<vmem>>, vector<1x32x64xf32>
    %86 = vector.shape_cast %85 : vector<1x32x64xf32> to vector<32x64xf32>
    %cst_66 = arith.constant dense<0.000000e+00> : vector<8x64xf32>
    %87 = tpu.matmul %84, %86, %cst_66 {dimension_numbers = #tpu.dot_dimension_numbers<[1], [0], [0], [1], [0, 0, 1, 1], [], []>} : vector<8x32xf32>, vector<32x64xf32>, vector<8x64xf32> -> vector<8x64xf32>
    %88 = arith.addf %82, %87 : vector<8x64xf32>
    %c0_67 = arith.constant 0 : index
    %c0_68 = arith.constant 0 : index
    %89 = vector.load %arg7[%c0_67, %c0_68] : memref<1x64xf32, #tpu.memory_space<vmem>>, vector<1x64xf32>
    %90 = vector.broadcast %89 : vector<1x64xf32> to vector<8x64xf32>
    %91 = arith.addf %88, %90 : vector<8x64xf32>
    %cst_69 = arith.constant 0.000000e+00 : f32
    %92 = vector.broadcast %cst_69 : f32 to vector<8x64xf32>
    %93 = arith.maximumf %91, %92 : vector<8x64xf32>
    %c0_70 = arith.constant 0 : index
    %c0_71 = arith.constant 0 : index
    %94 = vector.load %arg8[%c0_70, %c0_71] : memref<64x32xf32, #tpu.memory_space<vmem>>, vector<64x32xf32>
    %cst_72 = arith.constant dense<0.000000e+00> : vector<8x32xf32>
    %95 = tpu.matmul %93, %94, %cst_72 {dimension_numbers = #tpu.dot_dimension_numbers<[1], [0], [0], [1], [0, 0, 1, 1], [], []>} : vector<8x64xf32>, vector<64x32xf32>, vector<8x32xf32> -> vector<8x32xf32>
    %c0_73 = arith.constant 0 : index
    %c0_74 = arith.constant 0 : index
    %96 = vector.load %arg9[%c0_73, %c0_74] : memref<1x32xf32, #tpu.memory_space<vmem>>, vector<1x32xf32>
    %97 = vector.broadcast %96 : vector<1x32xf32> to vector<8x32xf32>
    %98 = arith.addf %95, %97 : vector<8x32xf32>
    %99 = vector.shape_cast %65 : vector<1x8x32xf32> to vector<8x32xf32>
    %100 = arith.addf %98, %99 : vector<8x32xf32>
    %cst_75 = arith.constant dense<0.000000e+00> : vector<8xf32>
    %101 = vector.multi_reduction <add>, %100, %cst_75 [1] : vector<8x32xf32> to vector<8xf32>
    %102 = vector.shape_cast %101 : vector<8xf32> to vector<8x1xf32>
    %cst_76 = arith.constant 3.200000e+01 : f32
    %103 = vector.broadcast %cst_76 : f32 to vector<8x1xf32>
    %104 = arith.divf %102, %103 : vector<8x1xf32>
    %105 = vector.broadcast %104 : vector<8x1xf32> to vector<8x32xf32>
    %106 = arith.subf %100, %105 : vector<8x32xf32>
    %107 = arith.mulf %106, %106 : vector<8x32xf32>
    %cst_77 = arith.constant dense<0.000000e+00> : vector<8xf32>
    %108 = vector.multi_reduction <add>, %107, %cst_77 [1] : vector<8x32xf32> to vector<8xf32>
    %109 = vector.shape_cast %108 : vector<8xf32> to vector<8x1xf32>
    %cst_78 = arith.constant 3.200000e+01 : f32
    %110 = vector.broadcast %cst_78 : f32 to vector<8x1xf32>
    %111 = arith.divf %109, %110 : vector<8x1xf32>
    %112 = vector.broadcast %104 : vector<8x1xf32> to vector<8x32xf32>
    %113 = arith.subf %100, %112 : vector<8x32xf32>
    %cst_79 = arith.constant 9.99999974E-6 : f32
    %114 = vector.broadcast %cst_79 : f32 to vector<8x1xf32>
    %115 = arith.addf %111, %114 : vector<8x1xf32>
    %116 = math.rsqrt %115 : vector<8x1xf32>
    %117 = vector.broadcast %116 : vector<8x1xf32> to vector<8x32xf32>
    %118 = arith.mulf %113, %117 : vector<8x32xf32>
    %c0_80 = arith.constant 0 : index
    %c0_81 = arith.constant 0 : index
    %119 = vector.load %arg10[%c0_80, %c0_81] : memref<1x32xf32, #tpu.memory_space<vmem>>, vector<1x32xf32>
    %120 = vector.broadcast %119 : vector<1x32xf32> to vector<8x32xf32>
    %121 = arith.mulf %118, %120 : vector<8x32xf32>
    %c0_82 = arith.constant 0 : index
    %c0_83 = arith.constant 0 : index
    %122 = vector.load %arg11[%c0_82, %c0_83] : memref<1x32xf32, #tpu.memory_space<vmem>>, vector<1x32xf32>
    %123 = vector.broadcast %122 : vector<1x32xf32> to vector<8x32xf32>
    %124 = arith.addf %121, %123 : vector<8x32xf32>
    %125 = vector.shape_cast %124 : vector<8x32xf32> to vector<1x8x32xf32>
    %c0_84 = arith.constant 0 : index
    %c0_85 = arith.constant 0 : index
    %c0_86 = arith.constant 0 : index
    %126 = vector.load %arg12[%c0_84, %c0_85, %c0_86] : memref<1x8x32xf32, #tpu.memory_space<vmem>>, vector<1x8x32xf32>
    tpu.vector_store %arg12[%c0_84, %c0_85, %c0_86], %125 {strides = array<i32>} : memref<1x8x32xf32, #tpu.memory_space<vmem>>, vector<1x8x32xf32>,
    return
  }
  func.func @transform_0(%arg0: i32) -> (i32, i32, i32) {
    %c0_i32 = arith.constant 0 : i32
    %c0_i32_0 = arith.constant 0 : i32
    %c0_i32_1 = arith.constant 0 : i32
    return %arg0, %c0_i32, %c0_i32_0 : i32, i32, i32
  }
  func.func @transform_1(%arg0: i32) -> (i32, i32) {
    %c0_i32 = arith.constant 0 : i32
    %c0_i32_0 = arith.constant 0 : i32
    %c0_i32_1 = arith.constant 0 : i32
    return %c0_i32, %c0_i32_0 : i32, i32
  }
  func.func @transform_2(%arg0: i32) -> (i32, i32) {
    %c0_i32 = arith.constant 0 : i32
    %c0_i32_0 = arith.constant 0 : i32
    %c0_i32_1 = arith.constant 0 : i32
    return %c0_i32, %c0_i32_0 : i32, i32
  }
  func.func @transform_3(%arg0: i32) -> (i32, i32) {
    %c0_i32 = arith.constant 0 : i32
    %c0_i32_0 = arith.constant 0 : i32
    %c0_i32_1 = arith.constant 0 : i32
    return %c0_i32, %c0_i32_0 : i32, i32
  }
  func.func @transform_4(%arg0: i32) -> (i32, i32) {
    %c0_i32 = arith.constant 0 : i32
    %c0_i32_0 = arith.constant 0 : i32
    %c0_i32_1 = arith.constant 0 : i32
    return %c0_i32, %c0_i32_0 : i32, i32
  }
  func.func @transform_5(%arg0: i32) -> (i32, i32, i32) {
    %c0_i32 = arith.constant 0 : i32
    %c0_i32_0 = arith.constant 0 : i32
    %c0_i32_1 = arith.constant 0 : i32
    %c0_i32_2 = arith.constant 0 : i32
    return %c0_i32, %c0_i32_0, %c0_i32_1 : i32, i32, i32
  }
  func.func @transform_6(%arg0: i32) -> (i32, i32) {
    %c0_i32 = arith.constant 0 : i32
    %c0_i32_0 = arith.constant 0 : i32
    %c0_i32_1 = arith.constant 0 : i32
    return %c0_i32, %c0_i32_0 : i32, i32
  }
  func.func @transform_7(%arg0: i32) -> (i32, i32) {
    %c0_i32 = arith.constant 0 : i32
    %c0_i32_0 = arith.constant 0 : i32
    %c0_i32_1 = arith.constant 0 : i32
    return %c0_i32, %c0_i32_0 : i32, i32
  }
  func.func @transform_8(%arg0: i32) -> (i32, i32) {
    %c0_i32 = arith.constant 0 : i32
    %c0_i32_0 = arith.constant 0 : i32
    %c0_i32_1 = arith.constant 0 : i32
    return %c0_i32, %c0_i32_0 : i32, i32
  }
  func.func @transform_9(%arg0: i32) -> (i32, i32) {
    %c0_i32 = arith.constant 0 : i32
    %c0_i32_0 = arith.constant 0 : i32
    %c0_i32_1 = arith.constant 0 : i32
    return %c0_i32, %c0_i32_0 : i32, i32
  }
  func.func @transform_10(%arg0: i32) -> (i32, i32) {
    %c0_i32 = arith.constant 0 : i32
    %c0_i32_0 = arith.constant 0 : i32
    %c0_i32_1 = arith.constant 0 : i32
    return %c0_i32, %c0_i32_0 : i32, i32
  }
  func.func @transform_11(%arg0: i32) -> (i32, i32, i32) {
    %c0_i32 = arith.constant 0 : i32
    %c0_i32_0 = arith.constant 0 : i32
    %c0_i32_1 = arith.constant 0 : i32
    return %arg0, %c0_i32, %c0_i32_0 : i32, i32, i32
  }
  func.func @transform_12(%arg0: i32) -> (i32, i32, i32) {
    %c0_i32 = arith.constant 0 : i32
    %c0_i32_0 = arith.constant 0 : i32
    %c0_i32_1 = arith.constant 0 : i32
    return %arg0, %c0_i32, %c0_i32_0 : i32, i32, i32
  }
}

module attributes {stable_mosaic.version = 11 : i64} {
  func.func @fft_block_kernel(%arg0: i32, %arg1: memref<1x8x32xf32, #tpu.memory_space<vmem>>, %arg2: memref<32x96xf32, #tpu.memory_space<vmem>>, %arg3: memref<1x96xf32, #tpu.memory_space<vmem>>, %arg4: memref<32x32xf32, #tpu.memory_space<vmem>>, %arg5: memref<1x32xf32, #tpu.memory_space<vmem>>, %arg6: memref<3x32x64xf32, #tpu.memory_space<vmem>>, %arg7: memref<1x64xf32, #tpu.memory_space<vmem>>, %arg8: memref<64x32xf32, #tpu.memory_space<vmem>>, %arg9: memref<1x32xf32, #tpu.memory_space<vmem>>, %arg10: memref<1x32xf32, #tpu.memory_space<vmem>>, %arg11: memref<1x32xf32, #tpu.memory_space<vmem>>, %arg12: memref<1x8x32xf32, #tpu.memory_space<vmem>>, %arg13: memref<1x8x8xf32, #tpu.memory_space<vmem>>, %arg14: memref<8x32xf32, #tpu.memory_space<vmem>>, %arg15: memref<1x17x32xf32, #tpu.memory_space<vmem>>) attributes {dimension_semantics = [#tpu.dimension_semantics<parallel>], iteration_bounds = array<i64: 2>, scalar_prefetch = 0 : i64, scratch_operands = 2 : i64, tpu.core_type = #tpu.core_type<tc>, window_params = [{transform_indices = @transform_0, window_bounds = array<i64: 1, 8, 32>}, {pipeline_mode = #tpu.pipeline_mode<synchronous>, transform_indices = @transform_1, window_bounds = array<i64: 32, 96>}, {pipeline_mode = #tpu.pipeline_mode<synchronous>, transform_indices = @transform_2, window_bounds = array<i64: 1, 96>}, {pipeline_mode = #tpu.pipeline_mode<synchronous>, transform_indices = @transform_3, window_bounds = array<i64: 32, 32>}, {pipeline_mode = #tpu.pipeline_mode<synchronous>, transform_indices = @transform_4, window_bounds = array<i64: 1, 32>}, {pipeline_mode = #tpu.pipeline_mode<synchronous>, transform_indices = @transform_5, window_bounds = array<i64: 3, 32, 64>}, {pipeline_mode = #tpu.pipeline_mode<synchronous>, transform_indices = @transform_6, window_bounds = array<i64: 1, 64>}, {pipeline_mode = #tpu.pipeline_mode<synchronous>, transform_indices = @transform_7, window_bounds = array<i64: 64, 32>}, {pipeline_mode = #tpu.pipeline_mode<synchronous>, transform_indices = @transform_8, window_bounds = array<i64: 1, 32>}, {pipeline_mode = #tpu.pipeline_mode<synchronous>, transform_indices = @transform_9, window_bounds = array<i64: 1, 32>}, {pipeline_mode = #tpu.pipeline_mode<synchronous>, transform_indices = @transform_10, window_bounds = array<i64: 1, 32>}, {transform_indices = @transform_11, window_bounds = array<i64: 1, 8, 32>}, {transform_indices = @transform_12, window_bounds = array<i64: 1, 8, 8>}]} {
    %c0 = arith.constant 0 : index
    %c0_0 = arith.constant 0 : index
    %c0_1 = arith.constant 0 : index
    %0 = vector.load %arg1[%c0, %c0_0, %c0_1] : memref<1x8x32xf32, #tpu.memory_space<vmem>>, vector<1x8x32xf32>
    %1 = vector.shape_cast %0 : vector<1x8x32xf32> to vector<8x32xf32>
    %c0_2 = arith.constant 0 : index
    %c0_3 = arith.constant 0 : index
    %2 = vector.load %arg2[%c0_2, %c0_3] : memref<32x96xf32, #tpu.memory_space<vmem>>, vector<32x96xf32>
    %cst = arith.constant dense<0.000000e+00> : vector<8x96xf32>
    %3 = tpu.matmul %1, %2, %cst {dimension_numbers = #tpu.dot_dimension_numbers<[1], [0], [0], [1], [0, 0, 1, 1], [], []>} : vector<8x32xf32>, vector<32x96xf32>, vector<8x96xf32> -> vector<8x96xf32>
    %c0_4 = arith.constant 0 : index
    %c0_5 = arith.constant 0 : index
    %4 = vector.load %arg3[%c0_4, %c0_5] : memref<1x96xf32, #tpu.memory_space<vmem>>, vector<1x96xf32>
    %5 = vector.broadcast %4 : vector<1x96xf32> to vector<8x96xf32>
    %6 = arith.addf %3, %5 : vector<8x96xf32>
    %7 = vector.extract_strided_slice %6 {offsets = [0, 0], sizes = [8, 16], strides = [1, 1]} : vector<8x96xf32> to vector<8x16xf32>
    %8 = vector.shape_cast %7 : vector<8x16xf32> to vector<1x8x16xf32>
    %9 = vector.extract_strided_slice %6 {offsets = [0, 32], sizes = [8, 16], strides = [1, 1]} : vector<8x96xf32> to vector<8x16xf32>
    %10 = vector.shape_cast %9 : vector<8x16xf32> to vector<1x8x16xf32>
    %11 = vector.extract_strided_slice %6 {offsets = [0, 64], sizes = [8, 16], strides = [1, 1]} : vector<8x96xf32> to vector<8x16xf32>
    %12 = vector.shape_cast %11 : vector<8x16xf32> to vector<1x8x16xf32>
    "tpu.trace_start"() <{level = 10 : i32, message = "btd,bsd->bts"}> : () -> ()
    %cst_6 = arith.constant dense<0.000000e+00> : vector<1x8x8xf32>
    %13 = tpu.matmul %8, %10, %cst_6 {dimension_numbers = #tpu.dot_dimension_numbers<[2], [2], [1], [1], [0, 0, 0, 1, 1, 1], [0], [0]>} : vector<1x8x16xf32>, vector<1x8x16xf32>, vector<1x8x8xf32> -> vector<1x8x8xf32>
    "tpu.trace_stop"() : () -> ()
    %cst_7 = arith.constant dense<0xFF800000> : vector<1x8xf32>
    %14 = vector.multi_reduction <maximumf>, %13, %cst_7 [2] : vector<1x8x8xf32> to vector<1x8xf32>
    %15 = vector.shape_cast %14 : vector<1x8xf32> to vector<1x8x1xf32>
    %16 = vector.broadcast %15 : vector<1x8x1xf32> to vector<1x8x8xf32>
    %17 = arith.subf %13, %16 : vector<1x8x8xf32>
    %18 = math.exp %17 : vector<1x8x8xf32>
    %cst_8 = arith.constant dense<0.000000e+00> : vector<1x8xf32>
    %19 = vector.multi_reduction <add>, %18, %cst_8 [2] : vector<1x8x8xf32> to vector<1x8xf32>
    %20 = vector.shape_cast %19 : vector<1x8xf32> to vector<1x8x1xf32>
    %21 = tpu.reciprocal %20 : vector<1x8x1xf32> -> vector<1x8x1xf32>
    "tpu.trace_start"() <{level = 10 : i32, message = "bts,bsd->btd"}> : () -> ()
    %cst_9 = arith.constant dense<0.000000e+00> : vector<1x8x16xf32>
    %22 = tpu.matmul %18, %12, %cst_9 {dimension_numbers = #tpu.dot_dimension_numbers<[2], [1], [1], [2], [0, 0, 0, 1, 1, 2], [0], [0]>} : vector<1x8x8xf32>, vector<1x8x16xf32>, vector<1x8x16xf32> -> vector<1x8x16xf32>
    "tpu.trace_stop"() : () -> ()
    %23 = vector.broadcast %21 : vector<1x8x1xf32> to vector<1x8x16xf32>
    %24 = arith.mulf %22, %23 : vector<1x8x16xf32>
    %25 = vector.broadcast %21 : vector<1x8x1xf32> to vector<1x8x8xf32>
    %26 = arith.mulf %18, %25 : vector<1x8x8xf32>
    %c0_10 = arith.constant 0 : index
    %c0_11 = arith.constant 0 : index
    %c0_12 = arith.constant 0 : index
    %27 = vector.load %arg13[%c0_10, %c0_11, %c0_12] : memref<1x8x8xf32, #tpu.memory_space<vmem>>, vector<1x8x8xf32>
    tpu.vector_store %arg13[%c0_10, %c0_11, %c0_12], %26 {strides = array<i32>} : memref<1x8x8xf32, #tpu.memory_space<vmem>>, vector<1x8x8xf32>,
    %28 = vector.shape_cast %24 : vector<1x8x16xf32> to vector<8x16xf32>
    %c0_13 = arith.constant 0 : index
    %c0_14 = arith.constant 0 : index
    %29 = vector.load %arg14[%c0_13, %c0_14] : memref<8x32xf32, #tpu.memory_space<vmem>>, vector<8x16xf32>
    tpu.vector_store %arg14[%c0_13, %c0_14], %28 {strides = array<i32>} : memref<8x32xf32, #tpu.memory_space<vmem>>, vector<8x16xf32>,
    %30 = vector.extract_strided_slice %6 {offsets = [0, 16], sizes = [8, 16], strides = [1, 1]} : vector<8x96xf32> to vector<8x16xf32>
    %31 = vector.shape_cast %30 : vector<8x16xf32> to vector<1x8x16xf32>
    %32 = vector.extract_strided_slice %6 {offsets = [0, 48], sizes = [8, 16], strides = [1, 1]} : vector<8x96xf32> to vector<8x16xf32>
    %33 = vector.shape_cast %32 : vector<8x16xf32> to vector<1x8x16xf32>
    %34 = vector.extract_strided_slice %6 {offsets = [0, 80], sizes = [8, 16], strides = [1, 1]} : vector<8x96xf32> to vector<8x16xf32>
    %35 = vector.shape_cast %34 : vector<8x16xf32> to vector<1x8x16xf32>
    "tpu.trace_start"() <{level = 10 : i32, message = "btd,bsd->bts"}> : () -> ()
    %cst_15 = arith.constant dense<0.000000e+00> : vector<1x8x8xf32>
    %36 = tpu.matmul %31, %33, %cst_15 {dimension_numbers = #tpu.dot_dimension_numbers<[2], [2], [1], [1], [0, 0, 0, 1, 1, 1], [0], [0]>} : vector<1x8x16xf32>, vector<1x8x16xf32>, vector<1x8x8xf32> -> vector<1x8x8xf32>
    "tpu.trace_stop"() : () -> ()
    %cst_16 = arith.constant dense<0xFF800000> : vector<1x8xf32>
    %37 = vector.multi_reduction <maximumf>, %36, %cst_16 [2] : vector<1x8x8xf32> to vector<1x8xf32>
    %38 = vector.shape_cast %37 : vector<1x8xf32> to vector<1x8x1xf32>
    %39 = vector.broadcast %38 : vector<1x8x1xf32> to vector<1x8x8xf32>
    %40 = arith.subf %36, %39 : vector<1x8x8xf32>
    %41 = math.exp %40 : vector<1x8x8xf32>
    %cst_17 = arith.constant dense<0.000000e+00> : vector<1x8xf32>
    %42 = vector.multi_reduction <add>, %41, %cst_17 [2] : vector<1x8x8xf32> to vector<1x8xf32>
    %43 = vector.shape_cast %42 : vector<1x8xf32> to vector<1x8x1xf32>
    %44 = tpu.reciprocal %43 : vector<1x8x1xf32> -> vector<1x8x1xf32>
    "tpu.trace_start"() <{level = 10 : i32, message = "bts,bsd->btd"}> : () -> ()
    %cst_18 = arith.constant dense<0.000000e+00> : vector<1x8x16xf32>
    %45 = tpu.matmul %41, %35, %cst_18 {dimension_numbers = #tpu.dot_dimension_numbers<[2], [1], [1], [2], [0, 0, 0, 1, 1, 2], [0], [0]>} : vector<1x8x8xf32>, vector<1x8x16xf32>, vector<1x8x16xf32> -> vector<1x8x16xf32>
    "tpu.trace_stop"() : () -> ()
    %46 = vector.broadcast %44 : vector<1x8x1xf32> to vector<1x8x16xf32>
    %47 = arith.mulf %45, %46 : vector<1x8x16xf32>
    %48 = vector.broadcast %44 : vector<1x8x1xf32> to vector<1x8x8xf32>
    %49 = arith.mulf %41, %48 : vector<1x8x8xf32>
    %c0_19 = arith.constant 0 : index
    %c0_20 = arith.constant 0 : index
    %c0_21 = arith.constant 0 : index
    %50 = vector.load %arg13[%c0_19, %c0_20, %c0_21] : memref<1x8x8xf32, #tpu.memory_space<vmem>>, vector<1x8x8xf32>
    %51 = arith.addf %50, %49 : vector<1x8x8xf32>
    %c0_22 = arith.constant 0 : index
    %c0_23 = arith.constant 0 : index
    %c0_24 = arith.constant 0 : index
    %52 = vector.load %arg13[%c0_22, %c0_23, %c0_24] : memref<1x8x8xf32, #tpu.memory_space<vmem>>, vector<1x8x8xf32>
    tpu.vector_store %arg13[%c0_22, %c0_23, %c0_24], %51 {strides = array<i32>} : memref<1x8x8xf32, #tpu.memory_space<vmem>>, vector<1x8x8xf32>,
    %53 = vector.shape_cast %47 : vector<1x8x16xf32> to vector<8x16xf32>
    %c0_25 = arith.constant 0 : index
    %c16 = arith.constant 16 : index
    %54 = vector.load %arg14[%c0_25, %c16] : memref<8x32xf32, #tpu.memory_space<vmem>>, vector<8x16xf32>
    tpu.vector_store %arg14[%c0_25, %c16], %53 {strides = array<i32>} : memref<8x32xf32, #tpu.memory_space<vmem>>, vector<8x16xf32>,
    %c0_26 = arith.constant 0 : index
    %c0_27 = arith.constant 0 : index
    %c0_28 = arith.constant 0 : index
    %55 = vector.load %arg13[%c0_26, %c0_27, %c0_28] : memref<1x8x8xf32, #tpu.memory_space<vmem>>, vector<1x8x8xf32>
    %cst_29 = arith.constant 5.000000e-01 : f32
    %56 = vector.broadcast %cst_29 : f32 to vector<1x8x8xf32>
    %57 = arith.mulf %55, %56 : vector<1x8x8xf32>
    %c0_30 = arith.constant 0 : index
    %c0_31 = arith.constant 0 : index
    %c0_32 = arith.constant 0 : index
    %58 = vector.load %arg13[%c0_30, %c0_31, %c0_32] : memref<1x8x8xf32, #tpu.memory_space<vmem>>, vector<1x8x8xf32>
    tpu.vector_store %arg13[%c0_30, %c0_31, %c0_32], %57 {strides = array<i32>} : memref<1x8x8xf32, #tpu.memory_space<vmem>>, vector<1x8x8xf32>,
    %c0_33 = arith.constant 0 : index
    %c0_34 = arith.constant 0 : index
    %59 = vector.load %arg14[%c0_33, %c0_34] : memref<8x32xf32, #tpu.memory_space<vmem>>, vector<8x32xf32>
    %c0_35 = arith.constant 0 : index
    %c0_36 = arith.constant 0 : index
    %60 = vector.load %arg4[%c0_35, %c0_36] : memref<32x32xf32, #tpu.memory_space<vmem>>, vector<32x32xf32>
    %cst_37 = arith.constant dense<0.000000e+00> : vector<8x32xf32>
    %61 = tpu.matmul %59, %60, %cst_37 {dimension_numbers = #tpu.dot_dimension_numbers<[1], [0], [0], [1], [0, 0, 1, 1], [], []>} : vector<8x32xf32>, vector<32x32xf32>, vector<8x32xf32> -> vector<8x32xf32>
    %c0_38 = arith.constant 0 : index
    %c0_39 = arith.constant 0 : index
    %62 = vector.load %arg5[%c0_38, %c0_39] : memref<1x32xf32, #tpu.memory_space<vmem>>, vector<1x32xf32>
    %63 = vector.broadcast %62 : vector<1x32xf32> to vector<8x32xf32>
    %64 = arith.addf %61, %63 : vector<8x32xf32>
    %65 = vector.shape_cast %64 : vector<8x32xf32> to vector<1x8x32xf32>
    %cst_40 = arith.constant 0.000000e+00 : f32
    %66 = vector.broadcast %cst_40 : f32 to vector<1x1x32xf32>
    %c0_41 = arith.constant 0 : index
    %c7 = arith.constant 7 : index
    %c0_42 = arith.constant 0 : index
    %67 = vector.load %arg15[%c0_41, %c7, %c0_42] : memref<1x17x32xf32, #tpu.memory_space<vmem>>, vector<1x1x32xf32>
    tpu.vector_store %arg15[%c0_41, %c7, %c0_42], %66 {strides = array<i32>} : memref<1x17x32xf32, #tpu.memory_space<vmem>>, vector<1x1x32xf32>,
    %c0_43 = arith.constant 0 : index
    %c16_44 = arith.constant 16 : index
    %c0_45 = arith.constant 0 : index
    %68 = vector.load %arg15[%c0_43, %c16_44, %c0_45] : memref<1x17x32xf32, #tpu.memory_space<vmem>>, vector<1x1x32xf32>
    tpu.vector_store %arg15[%c0_43, %c16_44, %c0_45], %66 {strides = array<i32>} : memref<1x17x32xf32, #tpu.memory_space<vmem>>, vector<1x1x32xf32>,
    %c0_46 = arith.constant 0 : index
    %c8 = arith.constant 8 : index
    %c0_47 = arith.constant 0 : index
    %69 = vector.load %arg15[%c0_46, %c8, %c0_47] : memref<1x17x32xf32, #tpu.memory_space<vmem>>, vector<1x8x32xf32>
    tpu.vector_store %arg15[%c0_46, %c8, %c0_47], %65 {strides = array<i32>} : memref<1x17x32xf32, #tpu.memory_space<vmem>>, vector<1x8x32xf32>,
    %cst_48 = arith.constant 0.000000e+00 : f32
    %70 = vector.broadcast %cst_48 : f32 to vector<8x64xf32>
    %c0_49 = arith.constant 0 : index
    %c7_50 = arith.constant 7 : index
    %c0_51 = arith.constant 0 : index
    %71 = vector.load %arg15[%c0_49, %c7_50, %c0_51] : memref<1x17x32xf32, #tpu.memory_space<vmem>>, vector<1x8x32xf32>
    %72 = vector.shape_cast %71 : vector<1x8x32xf32> to vector<8x32xf32>
    %c0_52 = arith.constant 0 : index
    %c0_53 = arith.constant 0 : index
    %c0_54 = arith.constant 0 : index
    %73 = vector.load %arg6[%c0_52, %c0_53, %c0_54] : memref<3x32x64xf32, #tpu.memory_space<vmem>>, vector<1x32x64xf32>
    %74 = vector.shape_cast %73 : vector<1x32x64xf32> to vector<32x64xf32>
    %cst_55 = arith.constant dense<0.000000e+00> : vector<8x64xf32>
    %75 = tpu.matmul %72, %74, %cst_55 {dimension_numbers = #tpu.dot_dimension_numbers<[1], [0], [0], [1], [0, 0, 1, 1], [], []>} : vector<8x32xf32>, vector<32x64xf32>, vector<8x64xf32> -> vector<8x64xf32>
    %76 = arith.addf %70, %75 : vector<8x64xf32>
    %c0_56 = arith.constant 0 : index
    %c8_57 = arith.constant 8 : index
    %c0_58 = arith.constant 0 : index
    %77 = vector.load %arg15[%c0_56, %c8_57, %c0_58] : memref<1x17x32xf32, #tpu.memory_space<vmem>>, vector<1x8x32xf32>
    %78 = vector.shape_cast %77 : vector<1x8x32xf32> to vector<8x32xf32>
    %c1 = arith.constant 1 : index
    %c0_59 = arith.constant 0 : index
    %c0_60 = arith.constant 0 : index
    %79 = vector.load %arg6[%c1, %c0_59, %c0_60] : memref<3x32x64xf32, #tpu.memory_space<vmem>>, vector<1x32x64xf32>
    %80 = vector.shape_cast %79 : vector<1x32x64xf32> to vector<32x64xf32>
    %cst_61 = arith.constant dense<0.000000e+00> : vector<8x64xf32>
    %81 = tpu.matmul %78, %80, %cst_61 {dimension_numbers = #tpu.dot_dimension_numbers<[1], [0], [0], [1], [0, 0, 1, 1], [], []>} : vector<8x32xf32>, vector<32x64xf32>, vector<8x64xf32> -> vector<8x64xf32>
    %82 = arith.addf %76, %81 : vector<8x64xf32>
    %c0_62 = arith.constant 0 : index
    %c9 = arith.constant 9 : index
    %c0_63 = arith.constant 0 : index
    %83 = vector.load %arg15[%c0_62, %c9, %c0_63] : memref<1x17x32xf32, #tpu.memory_space<vmem>>, vector<1x8x32xf32>
    %84 = vector.shape_cast %83 : vector<1x8x32xf32> to vector<8x32xf32>
    %c2 = arith.constant 2 : index
    %c0_64 = arith.constant 0 : index
    %c0_65 = arith.constant 0 : index
    %85 = vector.load %arg6[%c2, %c0_64, %c0_65] : memref<3x32x64xf32, #tpu.memory_space<vmem>>, vector<1x32x64xf32>
    %86 = vector.shape_cast %85 : vector<1x32x64xf32> to vector<32x64xf32>
    %cst_66 = arith.constant dense<0.000000e+00> : vector<8x64xf32>
    %87 = tpu.matmul %84, %86, %cst_66 {dimension_numbers = #tpu.dot_dimension_numbers<[1], [0], [0], [1], [0, 0, 1, 1], [], []>} : vector<8x32xf32>, vector<32x64xf32>, vector<8x64xf32> -> vector<8x64xf32>
    %88 = arith.addf %82, %87 : vector<8x64xf32>
    %c0_67 = arith.constant 0 : index
    %c0_68 = arith.constant 0 : index
    %89 = vector.load %arg7[%c0_67, %c0_68] : memref<1x64xf32, #tpu.memory_space<vmem>>, vector<1x64xf32>
    %90 = vector.broadcast %89 : vector<1x64xf32> to vector<8x64xf32>
    %91 = arith.addf %88, %90 : vector<8x64xf32>
    %cst_69 = arith.constant 0.000000e+00 : f32
    %92 = vector.broadcast %cst_69 : f32 to vector<8x64xf32>
    %93 = arith.maximumf %91, %92 : vector<8x64xf32>
    %c0_70 = arith.constant 0 : index
    %c0_71 = arith.constant 0 : index
    %94 = vector.load %arg8[%c0_70, %c0_71] : memref<64x32xf32, #tpu.memory_space<vmem>>, vector<64x32xf32>
    %cst_72 = arith.constant dense<0.000000e+00> : vector<8x32xf32>
    %95 = tpu.matmul %93, %94, %cst_72 {dimension_numbers = #tpu.dot_dimension_numbers<[1], [0], [0], [1], [0, 0, 1, 1], [], []>} : vector<8x64xf32>, vector<64x32xf32>, vector<8x32xf32> -> vector<8x32xf32>
    %c0_73 = arith.constant 0 : index
    %c0_74 = arith.constant 0 : index
    %96 = vector.load %arg9[%c0_73, %c0_74] : memref<1x32xf32, #tpu.memory_space<vmem>>, vector<1x32xf32>
    %97 = vector.broadcast %96 : vector<1x32xf32> to vector<8x32xf32>
    %98 = arith.addf %95, %97 : vector<8x32xf32>
    %99 = vector.shape_cast %65 : vector<1x8x32xf32> to vector<8x32xf32>
    %100 = arith.addf %98, %99 : vector<8x32xf32>
    %cst_75 = arith.constant dense<0.000000e+00> : vector<8xf32>
    %101 = vector.multi_reduction <add>, %100, %cst_75 [1] : vector<8x32xf32> to vector<8xf32>
    %102 = vector.shape_cast %101 : vector<8xf32> to vector<8x1xf32>
    %cst_76 = arith.constant 3.200000e+01 : f32
    %103 = vector.broadcast %cst_76 : f32 to vector<8x1xf32>
    %104 = arith.divf %102, %103 : vector<8x1xf32>
    %105 = vector.broadcast %104 : vector<8x1xf32> to vector<8x32xf32>
    %106 = arith.subf %100, %105 : vector<8x32xf32>
    %107 = arith.mulf %106, %106 : vector<8x32xf32>
    %cst_77 = arith.constant dense<0.000000e+00> : vector<8xf32>
    %108 = vector.multi_reduction <add>, %107, %cst_77 [1] : vector<8x32xf32> to vector<8xf32>
    %109 = vector.shape_cast %108 : vector<8xf32> to vector<8x1xf32>
    %cst_78 = arith.constant 3.200000e+01 : f32
    %110 = vector.broadcast %cst_78 : f32 to vector<8x1xf32>
    %111 = arith.divf %109, %110 : vector<8x1xf32>
    %112 = vector.broadcast %104 : vector<8x1xf32> to vector<8x32xf32>
    %113 = arith.subf %100, %112 : vector<8x32xf32>
    %cst_79 = arith.constant 9.99999974E-6 : f32
    %114 = vector.broadcast %cst_79 : f32 to vector<8x1xf32>
    %115 = arith.addf %111, %114 : vector<8x1xf32>
    %116 = math.rsqrt %115 : vector<8x1xf32>
    %117 = vector.broadcast %116 : vector<8x1xf32> to vector<8x32xf32>
    %118 = arith.mulf %113, %117 : vector<8x32xf32>
    %c0_80 = arith.constant 0 : index
    %c0_81 = arith.constant 0 : index
    %119 = vector.load %arg10[%c0_80, %c0_81] : memref<1x32xf32, #tpu.memory_space<vmem>>, vector<1x32xf32>
    %120 = vector.broadcast %119 : vector<1x32xf32> to vector<8x32xf32>
    %121 = arith.mulf %118, %120 : vector<8x32xf32>
    %c0_82 = arith.constant 0 : index
    %c0_83 = arith.constant 0 : index
    %122 = vector.load %arg11[%c0_82, %c0_83] : memref<1x32xf32, #tpu.memory_space<vmem>>, vector<1x32xf32>
    %123 = vector.broadcast %122 : vector<1x32xf32> to vector<8x32xf32>
    %124 = arith.addf %121, %123 : vector<8x32xf32>
    %125 = vector.shape_cast %124 : vector<8x32xf32> to vector<1x8x32xf32>
    %c0_84 = arith.constant 0 : index
    %c0_85 = arith.constant 0 : index
    %c0_86 = arith.constant 0 : index
    %126 = vector.load %arg12[%c0_84, %c0_85, %c0_86] : memref<1x8x32xf32, #tpu.memory_space<vmem>>, vector<1x8x32xf32>
    tpu.vector_store %arg12[%c0_84, %c0_85, %c0_86], %125 {strides = array<i32>} : memref<1x8x32xf32, #tpu.memory_space<vmem>>, vector<1x8x32xf32>,
    return
  }
  func.func @transform_0(%arg0: i32) -> (i32, i32, i32) {
    %c0_i32 = arith.constant 0 : i32
    %c0_i32_0 = arith.constant 0 : i32
    %c0_i32_1 = arith.constant 0 : i32
    return %arg0, %c0_i32, %c0_i32_0 : i32, i32, i32
  }
  func.func @transform_1(%arg0: i32) -> (i32, i32) {
    %c0_i32 = arith.constant 0 : i32
    %c0_i32_0 = arith.constant 0 : i32
    %c0_i32_1 = arith.constant 0 : i32
    return %c0_i32, %c0_i32_0 : i32, i32
  }
  func.func @transform_2(%arg0: i32) -> (i32, i32) {
    %c0_i32 = arith.constant 0 : i32
    %c0_i32_0 = arith.constant 0 : i32
    %c0_i32_1 = arith.constant 0 : i32
    return %c0_i32, %c0_i32_0 : i32, i32
  }
  func.func @transform_3(%arg0: i32) -> (i32, i32) {
    %c0_i32 = arith.constant 0 : i32
    %c0_i32_0 = arith.constant 0 : i32
    %c0_i32_1 = arith.constant 0 : i32
    return %c0_i32, %c0_i32_0 : i32, i32
  }
  func.func @transform_4(%arg0: i32) -> (i32, i32) {
    %c0_i32 = arith.constant 0 : i32
    %c0_i32_0 = arith.constant 0 : i32
    %c0_i32_1 = arith.constant 0 : i32
    return %c0_i32, %c0_i32_0 : i32, i32
  }
  func.func @transform_5(%arg0: i32) -> (i32, i32, i32) {
    %c0_i32 = arith.constant 0 : i32
    %c0_i32_0 = arith.constant 0 : i32
    %c0_i32_1 = arith.constant 0 : i32
    %c0_i32_2 = arith.constant 0 : i32
    return %c0_i32, %c0_i32_0, %c0_i32_1 : i32, i32, i32
  }
  func.func @transform_6(%arg0: i32) -> (i32, i32) {
    %c0_i32 = arith.constant 0 : i32
    %c0_i32_0 = arith.constant 0 : i32
    %c0_i32_1 = arith.constant 0 : i32
    return %c0_i32, %c0_i32_0 : i32, i32
  }
  func.func @transform_7(%arg0: i32) -> (i32, i32) {
    %c0_i32 = arith.constant 0 : i32
    %c0_i32_0 = arith.constant 0 : i32
    %c0_i32_1 = arith.constant 0 : i32
    return %c0_i32, %c0_i32_0 : i32, i32
  }
  func.func @transform_8(%arg0: i32) -> (i32, i32) {
    %c0_i32 = arith.constant 0 : i32
    %c0_i32_0 = arith.constant 0 : i32
    %c0_i32_1 = arith.constant 0 : i32
    return %c0_i32, %c0_i32_0 : i32, i32
  }
  func.func @transform_9(%arg0: i32) -> (i32, i32) {
    %c0_i32 = arith.constant 0 : i32
    %c0_i32_0 = arith.constant 0 : i32
    %c0_i32_1 = arith.constant 0 : i32
    return %c0_i32, %c0_i32_0 : i32, i32
  }
  func.func @transform_10(%arg0: i32) -> (i32, i32) {
    %c0_i32 = arith.constant 0 : i32
    %c0_i32_0 = arith.constant 0 : i32
    %c0_i32_1 = arith.constant 0 : i32
    return %c0_i32, %c0_i32_0 : i32, i32
  }
  func.func @transform_11(%arg0: i32) -> (i32, i32, i32) {
    %c0_i32 = arith.constant 0 : i32
    %c0_i32_0 = arith.constant 0 : i32
    %c0_i32_1 = arith.constant 0 : i32
    return %arg0, %c0_i32, %c0_i32_0 : i32, i32, i32
  }
  func.func @transform_12(%arg0: i32) -> (i32, i32, i32) {
    %c0_i32 = arith.constant 0 : i32
    %c0_i32_0 = arith.constant 0 : i32
    %c0_i32_1 = arith.constant 0 : i32
    return %arg0, %c0_i32, %c0_i32_0 : i32, i32, i32
  }
}

</mosaic_0001>

<llo_original>
// kernel: tpu_custom_call.1
$region0: #{tpu_custom_call.1}
  #allocation0 [shape = 'u32[]', space=smem, size = 0x4, offset = 0x4, fixed_abs, tag = 'smem constant byte address 0x4 - core index']
  #allocation1 [shape = 'u32[144,128]{1,0:T(1,128)}', space=vmem, size = 0x12000, scoped, tag = 'internal scratch']
  #allocation2 [shape = 'f32[8,32]{1,0:T(8,128)}', space=vmem, size = 0x1000, scoped, tag = 'scratch operand']
  #allocation3 [shape = 'f32[1,17,32]{2,1,0:T(8,128)}', space=vmem, size = 0x3000, scoped, tag = 'scratch operand']
  %s0 = inlined_call_operand.vmem [shape: f32[2,8,32], index: 0, kind: input, shape index: {}]
  %s1 = inlined_call_operand.hbm [shape: f32[32,96], index: 1, kind: input, shape index: {}]
  %s2 = inlined_call_operand.vmem [shape: f32[1,96], index: 2, kind: input, shape index: {}]
  %s3 = inlined_call_operand.hbm [shape: f32[32,32], index: 3, kind: input, shape index: {}]
  %s4 = inlined_call_operand.vmem [shape: f32[1,32], index: 4, kind: input, shape index: {}]
  %s5 = inlined_call_operand.vmem [shape: f32[3,32,64], index: 5, kind: input, shape index: {}]
  %s6 = inlined_call_operand.vmem [shape: f32[1,64], index: 6, kind: input, shape index: {}]
  %s7 = inlined_call_operand.vmem [shape: f32[64,32], index: 7, kind: input, shape index: {}]
  %s8 = inlined_call_operand.vmem [shape: f32[1,32], index: 8, kind: input, shape index: {}]
  %s9 = inlined_call_operand.vmem [shape: f32[1,32], index: 9, kind: input, shape index: {}]
  %s10 = inlined_call_operand.vmem [shape: f32[1,32], index: 10, kind: input, shape index: {}]
  %s11 = inlined_call_operand.hbm [shape: f32[2,8,32], index: 11, kind: output, shape index: {0}]
  %s12 = inlined_call_operand.hbm [shape: f32[2,8,8], index: 12, kind: output, shape index: {1}]
  %13 = xla_tuple %s11, %s12
  %s14 = sld [smem:[#allocation0]]
  $region93: #{tpu_custom_call.1} parent=0
    _
  %s16 = ssub.s32 1, %s14
  %s17 = scalar_select 0, %s16, %s14
  $region1: #{tpu_custom_call.1} parent=0
    #allocation4 [shape = 'u8[16384]{0}', space=vmem, size = 0x4000, scoped, tag = 'input window, operand 1, single buffered']
    #allocation5 [shape = 's32[2]{0}', space=sflag, size = 0x8, scoped, tag = 'scoped memory for tpu_custom_call.1']
    #allocation6 [shape = 's32[2]{0}', space=sflag, size = 0x8, scoped, tag = 'scoped memory for tpu_custom_call.1']
    #allocation7 [shape = 'u8[16384]{0}', space=vmem, size = 0x4000, scoped, tag = 'input window, operand 3, single buffered']
    #allocation8 [shape = 's32[1]{0}', space=sflag, size = 0x4, scoped, tag = 'scoped memory for tpu_custom_call.1']
    #allocation9 [shape = 'u8[8192]{0}', space=vmem, size = 0x2000, scoped, tag = 'output window, operand 0']
    #allocation10 [shape = 'u8[8192]{0}', space=vmem, size = 0x2000, scoped, tag = 'output window, operand 1']
    #allocation11 [shape = 's32[2]{0}', space=sflag, size = 0x8, scoped, tag = 'scoped memory for tpu_custom_call.1']
    %18 = vsyncpa [#allocation5], 0
    %19 = vsyncpa [#allocation8], 0
    %20 = vsyncpa [#allocation6], 0
    %s21 = scalar_lea.sflag [#allocation6], 1
    %22 = vsyncpa %s21, 0
    %23 = vsyncpa [#allocation11], 0
    %s24 = scalar_lea.sflag [#allocation11], 1
    %25 = vsyncpa %s24, 0
    loop: start=0, step=1, limit=4
    $region2: #{tpu_custom_call.1} parent=1 // loop_pre_header
      _
    $region3: #{tpu_custom_call.1} parent=1 // loop_header
      %s27 = sphi 0, %s31
      %p28 = scmp.ge.s32.totalorder %s27, 4
      %s37 = sphi 0, %s39
      %s40 = sphi 0, %s37
      %s41 = sphi 0, %s40
      %s57 = sphi 0, %s41
      %s61 = sphi 0, %s61
      %s63 = sphi 0, %s61
      %s64 = sphi 0, %s63
      %s78 = sphi 0, %s64
      %s82 = sphi 0, %s82
      %s84 = sphi 0, %s82
      %s85 = sphi 0, %s84
      %s99 = sphi 0, %s85
      %s103 = sphi 0, %s103
      %s105 = sphi 0, %s103
      %s106 = sphi 0, %s105
      %s120 = sphi 0, %s106
      %s124 = sphi 0, %s124
      %s126 = sphi 0, %s124
      %s127 = sphi 0, %s126
      %s141 = sphi 0, %s127
      %s145 = sphi 0, %s145
      %s147 = sphi 0, %s145
      %s148 = sphi 0, %s147
      %s162 = sphi 0, %s148
      %s166 = sphi 0, %s166
      %s168 = sphi 0, %s166
      %s169 = sphi 0, %s168
      %s183 = sphi 0, %s169
      %s187 = sphi 0, %s187
      %s189 = sphi 0, %s187
      %s190 = sphi 0, %s189
      %s204 = sphi 0, %s190
      %s208 = sphi 0, %s208
      %s210 = sphi 0, %s208
      %s211 = sphi 0, %s210
      %s225 = sphi 0, %s211
      %s229 = sphi 0, %s229
      %s231 = sphi 0, %s229
      %s232 = sphi 0, %s231
      %s246 = sphi 0, %s232
      %s250 = sphi 0, %s250
      %s252 = sphi 0, %s250
      %s253 = sphi 0, %s252
      %s267 = sphi 0, %s253
      %s273 = sphi 0, %s275
      %s276 = sphi 0, %s273
      %s277 = sphi 0, %s276
      %s293 = sphi 0, %s277
      %s299 = sphi 0, %s301
      %s302 = sphi 0, %s299
      %s303 = sphi 0, %s302
      %s319 = sphi 0, %s303
    $region4: #{tpu_custom_call.1} parent=1 // loop_header_branch
      %30 = sbr.rel (%p28) target = $region8
    $region5: #{tpu_custom_call.1} parent=1 // loop_body
      %s32 = ssub.s32 %s27, 1
      %s33 = ssub.s32 %s27, 2
      %s34 = sadd.s32 %s27, 1
      %s35 = ssub.s32 %s27, %s34
      %p36 = scmp.eq.s32.totalorder %s35, 0
      %s38 = sadd.s32 %s37, 1
      %s39 = scalar_select %p36, %s37, %s38
      %p42 = pneg %p36
      %p43 = scmp.eq.s32.totalorder %s27, 1
      %p44 = por %p42, %p43
      %p45 = scmp.ne.s32.totalorder %s37, %s40
      %p46 = scmp.eq.s32.totalorder %s27, 0
      %p47 = por %p45, %p46
      %p48 = scmp.ne.s32.totalorder %s37, %s40
      %p49 = scmp.eq.s32.totalorder %s32, 1
      %p50 = por %p48, %p49
      %p51 = scmp.ne.s32.totalorder %s40, %s41
      %p52 = scmp.eq.s32.totalorder %s32, 0
      %p53 = por %p51, %p52
      %p54 = scmp.ne.s32.totalorder %s40, %s41
      %p55 = scmp.eq.s32.totalorder %s33, 1
      %p56 = por %p54, %p55
      %p58 = scmp.ne.s32.totalorder %s41, %s57
      %p59 = scmp.eq.s32.totalorder %s33, 0
      %p60 = por %p58, %p59
      %s62 = sadd.s32 %s61, 1
      %p65 = scmp.eq.s32.totalorder %s27, 1
      %p66 = scmp.ne.s32.totalorder %s61, %s63
      %p67 = scmp.eq.s32.totalorder %s27, 0
      %p68 = por %p66, %p67
      %p69 = scmp.ne.s32.totalorder %s61, %s63
      %p70 = scmp.eq.s32.totalorder %s32, 1
      %p71 = por %p69, %p70
      %p72 = scmp.ne.s32.totalorder %s63, %s64
      %p73 = scmp.eq.s32.totalorder %s32, 0
      %p74 = por %p72, %p73
      %p75 = scmp.ne.s32.totalorder %s63, %s64
      %p76 = scmp.eq.s32.totalorder %s33, 1
      %p77 = por %p75, %p76
      %p79 = scmp.ne.s32.totalorder %s64, %s78
      %p80 = scmp.eq.s32.totalorder %s33, 0
      %p81 = por %p79, %p80
      %s83 = sadd.s32 %s82, 1
      %p86 = scmp.eq.s32.totalorder %s27, 1
      %p87 = scmp.ne.s32.totalorder %s82, %s84
      %p88 = scmp.eq.s32.totalorder %s27, 0
      %p89 = por %p87, %p88
      %p90 = scmp.ne.s32.totalorder %s82, %s84
      %p91 = scmp.eq.s32.totalorder %s32, 1
      %p92 = por %p90, %p91
      %p93 = scmp.ne.s32.totalorder %s84, %s85
      %p94 = scmp.eq.s32.totalorder %s32, 0
      %p95 = por %p93, %p94
      %p96 = scmp.ne.s32.totalorder %s84, %s85
      %p97 = scmp.eq.s32.totalorder %s33, 1
      %p98 = por %p96, %p97
      %p100 = scmp.ne.s32.totalorder %s85, %s99
      %p101 = scmp.eq.s32.totalorder %s33, 0
      %p102 = por %p100, %p101
      %s104 = sadd.s32 %s103, 1
      %p107 = scmp.eq.s32.totalorder %s27, 1
      %p108 = scmp.ne.s32.totalorder %s103, %s105
      %p109 = scmp.eq.s32.totalorder %s27, 0
      %p110 = por %p108, %p109
      %p111 = scmp.ne.s32.totalorder %s103, %s105
      %p112 = scmp.eq.s32.totalorder %s32, 1
      %p113 = por %p111, %p112
      %p114 = scmp.ne.s32.totalorder %s105, %s106
      %p115 = scmp.eq.s32.totalorder %s32, 0
      %p116 = por %p114, %p115
      %p117 = scmp.ne.s32.totalorder %s105, %s106
      %p118 = scmp.eq.s32.totalorder %s33, 1
      %p119 = por %p117, %p118
      %p121 = scmp.ne.s32.totalorder %s106, %s120
      %p122 = scmp.eq.s32.totalorder %s33, 0
      %p123 = por %p121, %p122
      %s125 = sadd.s32 %s124, 1
      %p128 = scmp.eq.s32.totalorder %s27, 1
      %p129 = scmp.ne.s32.totalorder %s124, %s126
      %p130 = scmp.eq.s32.totalorder %s27, 0
      %p131 = por %p129, %p130
      %p132 = scmp.ne.s32.totalorder %s124, %s126
      %p133 = scmp.eq.s32.totalorder %s32, 1
      %p134 = por %p132, %p133
      %p135 = scmp.ne.s32.totalorder %s126, %s127
      %p136 = scmp.eq.s32.totalorder %s32, 0
      %p137 = por %p135, %p136
      %p138 = scmp.ne.s32.totalorder %s126, %s127
      %p139 = scmp.eq.s32.totalorder %s33, 1
      %p140 = por %p138, %p139
      %p142 = scmp.ne.s32.totalorder %s127, %s141
      %p143 = scmp.eq.s32.totalorder %s33, 0
      %p144 = por %p142, %p143
      %s146 = sadd.s32 %s145, 1
      %p149 = scmp.eq.s32.totalorder %s27, 1
      %p150 = scmp.ne.s32.totalorder %s145, %s147
      %p151 = scmp.eq.s32.totalorder %s27, 0
      %p152 = por %p150, %p151
      %p153 = scmp.ne.s32.totalorder %s145, %s147
      %p154 = scmp.eq.s32.totalorder %s32, 1
      %p155 = por %p153, %p154
      %p156 = scmp.ne.s32.totalorder %s147, %s148
      %p157 = scmp.eq.s32.totalorder %s32, 0
      %p158 = por %p156, %p157
      %p159 = scmp.ne.s32.totalorder %s147, %s148
      %p160 = scmp.eq.s32.totalorder %s33, 1
      %p161 = por %p159, %p160
      %p163 = scmp.ne.s32.totalorder %s148, %s162
      %p164 = scmp.eq.s32.totalorder %s33, 0
      %p165 = por %p163, %p164
      %s167 = sadd.s32 %s166, 1
      %p170 = scmp.eq.s32.totalorder %s27, 1
      %p171 = scmp.ne.s32.totalorder %s166, %s168
      %p172 = scmp.eq.s32.totalorder %s27, 0
      %p173 = por %p171, %p172
      %p174 = scmp.ne.s32.totalorder %s166, %s168
      %p175 = scmp.eq.s32.totalorder %s32, 1
      %p176 = por %p174, %p175
      %p177 = scmp.ne.s32.totalorder %s168, %s169
      %p178 = scmp.eq.s32.totalorder %s32, 0
      %p179 = por %p177, %p178
      %p180 = scmp.ne.s32.totalorder %s168, %s169
      %p181 = scmp.eq.s32.totalorder %s33, 1
      %p182 = por %p180, %p181
      %p184 = scmp.ne.s32.totalorder %s169, %s183
      %p185 = scmp.eq.s32.totalorder %s33, 0
      %p186 = por %p184, %p185
      %s188 = sadd.s32 %s187, 1
      %p191 = scmp.eq.s32.totalorder %s27, 1
      %p192 = scmp.ne.s32.totalorder %s187, %s189
      %p193 = scmp.eq.s32.totalorder %s27, 0
      %p194 = por %p192, %p193
      %p195 = scmp.ne.s32.totalorder %s187, %s189
      %p196 = scmp.eq.s32.totalorder %s32, 1
      %p197 = por %p195, %p196
      %p198 = scmp.ne.s32.totalorder %s189, %s190
      %p199 = scmp.eq.s32.totalorder %s32, 0
      %p200 = por %p198, %p199
      %p201 = scmp.ne.s32.totalorder %s189, %s190
      %p202 = scmp.eq.s32.totalorder %s33, 1
      %p203 = por %p201, %p202
      %p205 = scmp.ne.s32.totalorder %s190, %s204
      %p206 = scmp.eq.s32.totalorder %s33, 0
      %p207 = por %p205, %p206
      %s209 = sadd.s32 %s208, 1
      %p212 = scmp.eq.s32.totalorder %s27, 1
      %p213 = scmp.ne.s32.totalorder %s208, %s210
      %p214 = scmp.eq.s32.totalorder %s27, 0
      %p215 = por %p213, %p214
      %p216 = scmp.ne.s32.totalorder %s208, %s210
      %p217 = scmp.eq.s32.totalorder %s32, 1
      %p218 = por %p216, %p217
      %p219 = scmp.ne.s32.totalorder %s210, %s211
      %p220 = scmp.eq.s32.totalorder %s32, 0
      %p221 = por %p219, %p220
      %p222 = scmp.ne.s32.totalorder %s210, %s211
      %p223 = scmp.eq.s32.totalorder %s33, 1
      %p224 = por %p222, %p223
      %p226 = scmp.ne.s32.totalorder %s211, %s225
      %p227 = scmp.eq.s32.totalorder %s33, 0
      %p228 = por %p226, %p227
      %s230 = sadd.s32 %s229, 1
      %p233 = scmp.eq.s32.totalorder %s27, 1
      %p234 = scmp.ne.s32.totalorder %s229, %s231
      %p235 = scmp.eq.s32.totalorder %s27, 0
      %p236 = por %p234, %p235
      %p237 = scmp.ne.s32.totalorder %s229, %s231
      %p238 = scmp.eq.s32.totalorder %s32, 1
      %p239 = por %p237, %p238
      %p240 = scmp.ne.s32.totalorder %s231, %s232
      %p241 = scmp.eq.s32.totalorder %s32, 0
      %p242 = por %p240, %p241
      %p243 = scmp.ne.s32.totalorder %s231, %s232
      %p244 = scmp.eq.s32.totalorder %s33, 1
      %p245 = por %p243, %p244
      %p247 = scmp.ne.s32.totalorder %s232, %s246
      %p248 = scmp.eq.s32.totalorder %s33, 0
      %p249 = por %p247, %p248
      %s251 = sadd.s32 %s250, 1
      %p254 = scmp.eq.s32.totalorder %s27, 1
      %p255 = scmp.ne.s32.totalorder %s250, %s252
      %p256 = scmp.eq.s32.totalorder %s27, 0
      %p257 = por %p255, %p256
      %p258 = scmp.ne.s32.totalorder %s250, %s252
      %p259 = scmp.eq.s32.totalorder %s32, 1
      %p260 = por %p258, %p259
      %p261 = scmp.ne.s32.totalorder %s252, %s253
      %p262 = scmp.eq.s32.totalorder %s32, 0
      %p263 = por %p261, %p262
      %p264 = scmp.ne.s32.totalorder %s252, %s253
      %p265 = scmp.eq.s32.totalorder %s33, 1
      %p266 = por %p264, %p265
      %p268 = scmp.ne.s32.totalorder %s253, %s267
      %p269 = scmp.eq.s32.totalorder %s33, 0
      %p270 = por %p268, %p269
      %s271 = ssub.s32 %s27, %s34
      %p272 = scmp.eq.s32.totalorder %s271, 0
      %s274 = sadd.s32 %s273, 1
      %s275 = scalar_select %p272, %s273, %s274
      %p278 = pneg %p272
      %p279 = scmp.eq.s32.totalorder %s27, 1
      %p280 = por %p278, %p279
      %p281 = scmp.ne.s32.totalorder %s273, %s276
      %p282 = scmp.eq.s32.totalorder %s27, 0
      %p283 = por %p281, %p282
      %p284 = scmp.ne.s32.totalorder %s273, %s276
      %p285 = scmp.eq.s32.totalorder %s32, 1
      %p286 = por %p284, %p285
      %p287 = scmp.ne.s32.totalorder %s276, %s277
      %p288 = scmp.eq.s32.totalorder %s32, 0
      %p289 = por %p287, %p288
      %p290 = scmp.ne.s32.totalorder %s276, %s277
      %p291 = scmp.eq.s32.totalorder %s33, 1
      %p292 = por %p290, %p291
      %p294 = scmp.ne.s32.totalorder %s277, %s293
      %p295 = scmp.eq.s32.totalorder %s33, 0
      %p296 = por %p294, %p295
      %s297 = ssub.s32 %s27, %s34
      %p298 = scmp.eq.s32.totalorder %s297, 0
      %s300 = sadd.s32 %s299, 1
      %s301 = scalar_select %p298, %s299, %s300
      %p304 = pneg %p298
      %p305 = scmp.eq.s32.totalorder %s27, 1
      %p306 = por %p304, %p305
      %p307 = scmp.ne.s32.totalorder %s299, %s302
      %p308 = scmp.eq.s32.totalorder %s27, 0
      %p309 = por %p307, %p308
      %p310 = scmp.ne.s32.totalorder %s299, %s302
      %p311 = scmp.eq.s32.totalorder %s32, 1
      %p312 = por %p310, %p311
      %p313 = scmp.ne.s32.totalorder %s302, %s303
      %p314 = scmp.eq.s32.totalorder %s32, 0
      %p315 = por %p313, %p314
      %p316 = scmp.ne.s32.totalorder %s302, %s303
      %p317 = scmp.eq.s32.totalorder %s33, 1
      %p318 = por %p316, %p317
      %p320 = scmp.ne.s32.totalorder %s303, %s319
      %p321 = scmp.eq.s32.totalorder %s33, 0
      %p322 = por %p320, %p321
      %p323 = scmp.le.s32.totalorder 1, %s27
      %p324 = scmp.lt.s32.totalorder %s27, 3
      %p325 = pnand %p323, %p324
      %p326 = pneg %p325
      // Predicated region
      $region9: #{tpu_custom_call.1} parent=5 // pred_check
        _
      $region10: #{tpu_custom_call.1} parent=5 // pred_check_branch
        %328 = sbr.rel (%p325) target = $region12
      $region11: #{tpu_custom_call.1} parent=5 // pred_region
        %s329 = ssub.s32 %s27, 1
        // Predicated region
        $region13: #{tpu_custom_call.1} parent=11 // pred_check
          %p330 = pneg %p74
        $region14: #{tpu_custom_call.1} parent=11 // pred_check_branch
          %332 = sbr.rel (%p330) target = $region16
        $region15: #{tpu_custom_call.1} parent=11 // pred_region
          %s334 = ssub.s32 512, 512
          %335 = vsyncadd [#allocation5], %s334
          %s336 = sshll.u32 [#allocation4], 4
          %s337 = int_to_ptr.vmem [resolvable:$true] %s336
          %342 = dma.hbm_to_vmem [thread:$0]  %s1, 512, %s337, [#allocation5], 128, 128, 8
        $region16: #{tpu_custom_call.1} parent=11 // pred_fallthru
          _
        // Predicated region
        $region17: #{tpu_custom_call.1} parent=11 // pred_check
          %p343 = pneg %p95
        $region18: #{tpu_custom_call.1} parent=11 // pred_check_branch
          %345 = sbr.rel (%p343) target = $region20
        $region19: #{tpu_custom_call.1} parent=11 // pred_region
          _
        $region20: #{tpu_custom_call.1} parent=11 // pred_fallthru
          _
        // Predicated region
        $region21: #{tpu_custom_call.1} parent=11 // pred_check
          %p346 = pneg %p116
        $region22: #{tpu_custom_call.1} parent=11 // pred_check_branch
          %348 = sbr.rel (%p346) target = $region24
        $region23: #{tpu_custom_call.1} parent=11 // pred_region
          %s350 = ssub.s32 512, 512
          %351 = vsyncadd [#allocation8], %s350
          %s352 = sshll.u32 [#allocation7], 4
          %s353 = int_to_ptr.vmem [resolvable:$true] %s352
          %358 = dma.hbm_to_vmem [thread:$0]  %s3, 512, %s353, [#allocation8], 128, 128, 8
        $region24: #{tpu_custom_call.1} parent=11 // pred_fallthru
          _
        // Predicated region
        $region25: #{tpu_custom_call.1} parent=11 // pred_check
          %p359 = pneg %p137
        $region26: #{tpu_custom_call.1} parent=11 // pred_check_branch
          %361 = sbr.rel (%p359) target = $region28
        $region27: #{tpu_custom_call.1} parent=11 // pred_region
          _
        $region28: #{tpu_custom_call.1} parent=11 // pred_fallthru
          _
        // Predicated region
        $region29: #{tpu_custom_call.1} parent=11 // pred_check
          %p362 = pneg %p158
        $region30: #{tpu_custom_call.1} parent=11 // pred_check_branch
          %364 = sbr.rel (%p362) target = $region32
        $region31: #{tpu_custom_call.1} parent=11 // pred_region
          _
        $region32: #{tpu_custom_call.1} parent=11 // pred_fallthru
          _
        // Predicated region
        $region33: #{tpu_custom_call.1} parent=11 // pred_check
          %p365 = pneg %p179
        $region34: #{tpu_custom_call.1} parent=11 // pred_check_branch
          %367 = sbr.rel (%p365) target = $region36
        $region35: #{tpu_custom_call.1} parent=11 // pred_region
          _
        $region36: #{tpu_custom_call.1} parent=11 // pred_fallthru
          _
        // Predicated region
        $region37: #{tpu_custom_call.1} parent=11 // pred_check
          %p368 = pneg %p200
        $region38: #{tpu_custom_call.1} parent=11 // pred_check_branch
          %370 = sbr.rel (%p368) target = $region40
        $region39: #{tpu_custom_call.1} parent=11 // pred_region
          _
        $region40: #{tpu_custom_call.1} parent=11 // pred_fallthru
          _
        // Predicated region
        $region41: #{tpu_custom_call.1} parent=11 // pred_check
          %p371 = pneg %p221
        $region42: #{tpu_custom_call.1} parent=11 // pred_check_branch
          %373 = sbr.rel (%p371) target = $region44
        $region43: #{tpu_custom_call.1} parent=11 // pred_region
          _
        $region44: #{tpu_custom_call.1} parent=11 // pred_fallthru
          _
        // Predicated region
        $region45: #{tpu_custom_call.1} parent=11 // pred_check
          %p374 = pneg %p242
        $region46: #{tpu_custom_call.1} parent=11 // pred_check_branch
          %376 = sbr.rel (%p374) target = $region48
        $region47: #{tpu_custom_call.1} parent=11 // pred_region
          _
        $region48: #{tpu_custom_call.1} parent=11 // pred_fallthru
          _
        // Predicated region
        $region49: #{tpu_custom_call.1} parent=11 // pred_check
          %p377 = pneg %p263
        $region50: #{tpu_custom_call.1} parent=11 // pred_check_branch
          %379 = sbr.rel (%p377) target = $region52
        $region51: #{tpu_custom_call.1} parent=11 // pred_region
          _
        $region52: #{tpu_custom_call.1} parent=11 // pred_fallthru
          _
      $region12: #{tpu_custom_call.1} parent=5 // pred_fallthru
        _
      %p380 = scmp.lt.s32.totalorder %s27, 2
      // Predicated region
      $region53: #{tpu_custom_call.1} parent=5 // pred_check
        %p381 = pneg %p380
      $region54: #{tpu_custom_call.1} parent=5 // pred_check_branch
        %383 = sbr.rel (%p381) target = $region56
      $region55: #{tpu_custom_call.1} parent=5 // pred_region
        // Predicated region
        $region57: #{tpu_custom_call.1} parent=55 // pred_check
          %p384 = pneg %p47
        $region58: #{tpu_custom_call.1} parent=55 // pred_check_branch
          %386 = sbr.rel (%p384) target = $region60
        $region59: #{tpu_custom_call.1} parent=55 // pred_region
          %p387 = scmp.lt.s32.totalorder %s27, 1
          %s388 = scalar_select %p387, %s27, 1
          %s389 = smul.addr %s388, 8
          %s390 = scalar_lea.vmem %s0, %s389
        $region60: #{tpu_custom_call.1} parent=55 // pred_fallthru
          _
      $region56: #{tpu_custom_call.1} parent=5 // pred_fallthru
        _
      %p391 = scmp.le.s32.totalorder 1, %s27
      %p392 = scmp.lt.s32.totalorder %s27, 3
      %p393 = pnand %p391, %p392
      %p394 = pneg %p393
      // Predicated region
      $region61: #{tpu_custom_call.1} parent=5 // pred_check
        _
      $region62: #{tpu_custom_call.1} parent=5 // pred_check_branch
        %396 = sbr.rel (%p393) target = $region64
      $region63: #{tpu_custom_call.1} parent=5 // pred_region
        %s397 = ssub.s32 %s27, 1
        // Predicated region
        $region65: #{tpu_custom_call.1} parent=63 // pred_check
          %p398 = pneg %p74
        $region66: #{tpu_custom_call.1} parent=63 // pred_check_branch
          %400 = sbr.rel (%p398) target = $region68
        $region67: #{tpu_custom_call.1} parent=63 // pred_region
          %401 = dma.done [#allocation5], 512
        $region68: #{tpu_custom_call.1} parent=63 // pred_fallthru
          _
        // Predicated region
        $region69: #{tpu_custom_call.1} parent=63 // pred_check
          %p402 = pneg %p116
        $region70: #{tpu_custom_call.1} parent=63 // pred_check_branch
          %404 = sbr.rel (%p402) target = $region72
        $region71: #{tpu_custom_call.1} parent=63 // pred_region
          %405 = dma.done [#allocation8], 512
        $region72: #{tpu_custom_call.1} parent=63 // pred_fallthru
          _
        %p406 = scmp.lt.s32.totalorder %s32, 1
        %s407 = scalar_select %p406, %s32, 1
        %s408 = smul.addr %s407, 8
        %s409 = scalar_lea.vmem %s0, %s408
        %p410 = pneg %p53
        %p411 = pneg %p50
        %p412 = pneg %p74
        %p413 = pneg %p71
        %p414 = pneg %p95
        %p415 = pneg %p92
        %p416 = pneg %p116
        %p417 = pneg %p113
        %p418 = pneg %p137
        %p419 = pneg %p134
        %p420 = pneg %p158
        %p421 = pneg %p155
        %p422 = pneg %p179
        %p423 = pneg %p176
        %p424 = pneg %p200
        %p425 = pneg %p197
        %p426 = pneg %p221
        %p427 = pneg %p218
        %p428 = pneg %p242
        %p429 = pneg %p239
        %p430 = pneg %p263
        %p431 = pneg %p260
        %p432 = pneg %p289
        %p433 = pneg %p286
        %s434 = sand.u32 %s276, 1
        %s435 = scalar_lea.sflag [#allocation6], %s434
        %s436 = sand.u32 %s276, 1
        %s437 = smul.addr %s436, 8
        %s438 = scalar_lea.vmem [#allocation9], %s437
        %p439 = pneg %p315
        %p440 = pneg %p312
        %s441 = sand.u32 %s302, 1
        %s442 = scalar_lea.sflag [#allocation11], %s441
        %s443 = sand.u32 %s302, 1
        %s444 = smul.addr %s443, 8
        %s445 = scalar_lea.vmem [#allocation10], %s444
        %p446 = scmp.lt.s32.totalorder %s32, 1
        %s447 = scalar_select %p446, %s32, 1
        %s448 = smul.addr %s447, 8
        %s449 = scalar_lea.vmem %s0, %s448
        %v450 = vld [vmem:[%s449] sm:$0xff]
        %v451 = vld [vmem:[#allocation4] sm:$0xff]
        %v452 = vld [vmem:[#allocation4 + $0x8] sm:$0xff]
        %v453 = vld [vmem:[#allocation4 + $0x10] sm:$0xff]
        %v454 = vld [vmem:[#allocation4 + $0x18] sm:$0xff]
        %v455 = vld [vmem:[%s2] sm:$0x1]
        %v457 = vlaneseq
        %v458 = vshrl.u32 %v457, 7
        %v459 = vsub.s32 0, %v458
        %v460 = vrot.slane %v455, %v459
        %vm462 = vcmask 261120
        %v464 = vsel %vm462, %v450, 0
        %466 = vmatprep.subr.mxu0 0.0
        %467 = vmatpush1.msra.mxu0 %v451
        %468 = vmatprep.subr.mxu0 0.0
        %469 = vmatpush1.msra.mxu0 %v452
        %470 = vmatprep.subr.mxu0 0.0
        %471 = vmatpush1.msra.mxu0 %v453
        %472 = vmatprep.subr.mxu0 0.0
        %473 = vmatpush1.msra.mxu0 %v454
        %474 = vmatprep.subr.mxu0 0.0
        %475 = vmatpush1.msra.mxu0 0.0
        %476 = vmatprep.subr.mxu0 0.0
        %477 = vmatpush1.msra.mxu0 0.0
        %478 = vmatprep.subr.mxu0 0.0
        %479 = vmatpush1.msra.mxu0 0.0
        %480 = vmatprep.subr.mxu0 0.0
        %481 = vmatpush1.msra.mxu0 0.0
        %482 = vmatprep.subr.mxu0 0.0
        %483 = vmatpush1.msra.mxu0 0.0
        %484 = vmatprep.subr.mxu0 0.0
        %485 = vmatpush1.msra.mxu0 0.0
        %486 = vmatprep.subr.mxu0 0.0
        %487 = vmatpush1.msra.mxu0 0.0
        %488 = vmatprep.subr.mxu0 0.0
        %489 = vmatpush1.msra.mxu0 0.0
        %490 = vmatprep.subr.mxu0 0.0
        %491 = vmatpush1.msra.mxu0 0.0
        %492 = vmatprep.subr.mxu0 0.0
        %493 = vmatpush1.msra.mxu0 0.0
        %494 = vmatprep.subr.mxu0 0.0
        %495 = vmatpush1.msra.mxu0 0.0
        %496 = vmatprep.subr.mxu0 0.0
        %497 = vmatpush1.msra.mxu0 0.0
        %498 = vmatprep.subr.mxu0 0.0
        %499 = vmatpush1.msra.mxu0 0.0
        %500 = vmatprep.subr.mxu0 0.0
        %501 = vmatpush1.msra.mxu0 0.0
        %502 = vmatprep.subr.mxu0 0.0
        %503 = vmatpush1.msra.mxu0 0.0
        %504 = vmatprep.subr.mxu0 0.0
        %505 = vmatpush1.msra.mxu0 0.0
        %506 = vmatprep.subr.mxu0 0.0
        %507 = vmatpush1.msra.mxu0 0.0
        %508 = vmatprep.subr.mxu0 0.0
        %509 = vmatpush1.msra.mxu0 0.0
        %510 = vmatprep.subr.mxu0 0.0
        %511 = vmatpush1.msra.mxu0 0.0
        %512 = vmatprep.subr.mxu0 0.0
        %513 = vmatpush1.msra.mxu0 0.0
        %514 = vmatprep.subr.mxu0 0.0
        %515 = vmatpush1.msra.mxu0 0.0
        %516 = vmatprep.subr.mxu0 0.0
        %517 = vmatpush1.msra.mxu0 0.0
        %518 = vmatprep.subr.mxu0 0.0
        %519 = vmatpush1.msra.mxu0 0.0
        %520 = vmatprep.subr.mxu0 0.0
        %521 = vmatpush1.msra.mxu0 0.0
        %522 = vmatprep.subr.mxu0 0.0
        %523 = vmatpush1.msra.mxu0 0.0
        %524 = vmatprep.subr.mxu0 0.0
        %525 = vmatpush1.msra.mxu0 0.0
        %526 = vmatprep.subr.mxu0 0.0
        %527 = vmatpush1.msra.mxu0 0.0
        %528 = vmatprep.subr.mxu0 0.0
        %529 = vmatpush1.msra.mxu0 0.0
        %530 = vmatprep.mubr.f32.mxu0 0.0
        %531 = vmatmul.mubr.f32.gmra.mrb[0].mxu0 %v464
        %v532 = vpop.f32.mrb[0].mxu0
        %v533 = vadd.f32 %v460, %v532
        %v534 = vpop.f32.mrb[0].mxu0
        %535 = vdwg.mxu0
        %537 = vrot.lane.b32.xlu0 %v533, 96
        %v538 = vpop.permute.xlu0 %537
        %vm539 = vcmask 130048
        %v540 = vsel %vm539, %v533, 0
        %v542 = vsel %vm539, %v538, 0
        %544 = vmatprep.subr.mxu0 0.0
        %545 = vmatpush1.xpose.msra.mxu0 %v542
        %546 = vmatprep.subr.mxu0 0.0
        %547 = vmatpush1.xpose.msra.mxu0 0.0
        %548 = vmatprep.subr.mxu0 0.0
        %549 = vmatpush1.xpose.msra.mxu0 0.0
        %550 = vmatprep.subr.mxu0 0.0
        %551 = vmatpush1.xpose.msra.mxu0 0.0
        %552 = vmatprep.subr.mxu0 0.0
        %553 = vmatpush1.xpose.msra.mxu0 0.0
        %554 = vmatprep.subr.mxu0 0.0
        %555 = vmatpush1.xpose.msra.mxu0 0.0
        %556 = vmatprep.subr.mxu0 0.0
        %557 = vmatpush1.xpose.msra.mxu0 0.0
        %558 = vmatprep.subr.mxu0 0.0
        %559 = vmatpush1.xpose.msra.mxu0 0.0
        %560 = vmatprep.subr.mxu0 0.0
        %561 = vmatpush1.xpose.msra.mxu0 0.0
        %562 = vmatprep.subr.mxu0 0.0
        %563 = vmatpush1.xpose.msra.mxu0 0.0
        %564 = vmatprep.subr.mxu0 0.0
        %565 = vmatpush1.xpose.msra.mxu0 0.0
        %566 = vmatprep.subr.mxu0 0.0
        %567 = vmatpush1.xpose.msra.mxu0 0.0
        %568 = vmatprep.subr.mxu0 0.0
        %569 = vmatpush1.xpose.msra.mxu0 0.0
        %570 = vmatprep.subr.mxu0 0.0
        %571 = vmatpush1.xpose.msra.mxu0 0.0
        %572 = vmatprep.subr.mxu0 0.0
        %573 = vmatpush1.xpose.msra.mxu0 0.0
        %574 = vmatprep.subr.mxu0 0.0
        %575 = vmatpush1.xpose.msra.mxu0 0.0
        %576 = vmatprep.subr.mxu0 0.0
        %577 = vmatpush1.xpose.msra.mxu0 0.0
        %578 = vmatprep.subr.mxu0 0.0
        %579 = vmatpush1.xpose.msra.mxu0 0.0
        %580 = vmatprep.subr.mxu0 0.0
        %581 = vmatpush1.xpose.msra.mxu0 0.0
        %582 = vmatprep.subr.mxu0 0.0
        %583 = vmatpush1.xpose.msra.mxu0 0.0
        %584 = vmatprep.subr.mxu0 0.0
        %585 = vmatpush1.xpose.msra.mxu0 0.0
        %586 = vmatprep.subr.mxu0 0.0
        %587 = vmatpush1.xpose.msra.mxu0 0.0
        %588 = vmatprep.subr.mxu0 0.0
        %589 = vmatpush1.xpose.msra.mxu0 0.0
        %590 = vmatprep.subr.mxu0 0.0
        %591 = vmatpush1.xpose.msra.mxu0 0.0
        %592 = vmatprep.subr.mxu0 0.0
        %593 = vmatpush1.xpose.msra.mxu0 0.0
        %594 = vmatprep.subr.mxu0 0.0
        %595 = vmatpush1.xpose.msra.mxu0 0.0
        %596 = vmatprep.subr.mxu0 0.0
        %597 = vmatpush1.xpose.msra.mxu0 0.0
        %598 = vmatprep.subr.mxu0 0.0
        %599 = vmatpush1.xpose.msra.mxu0 0.0
        %600 = vmatprep.subr.mxu0 0.0
        %601 = vmatpush1.xpose.msra.mxu0 0.0
        %602 = vmatprep.subr.mxu0 0.0
        %603 = vmatpush1.xpose.msra.mxu0 0.0
        %604 = vmatprep.subr.mxu0 0.0
        %605 = vmatpush1.xpose.msra.mxu0 0.0
        %606 = vmatprep.subr.mxu0 0.0
        %607 = vmatpush1.xpose.msra.mxu0 0.0
        %608 = vmatprep.mubr.f32.mxu0 0.0
        %609 = vmatmul.mubr.f32.gmra.mrb[0].mxu0 %v540
        %v610 = vpop.f32.mrb[0].mxu0
        %v611 = vadd.f32 0.0, %v610
        %v612 = vpop.f32.mrb[0].mxu0
        %613 = vdwg.mxu0
        %vm614 = vcmask 64512
        %v615 = vsel %vm614, %v611, -inf
        %616 = vmax.xlane.f32.xlu0 %v615
        %v617 = vpop.xlane.xlu0 %616
        %v618 = vsub.f32 %v611, %v617
        %v619 = vmul.f32 %v618, 1.442695
        %v620 = vpow.pop %v619
        %v621 = vsel %vm614, %v620, 0.0
        %622 = vadd.xlane.f32.xlu0 %v621
        %v623 = vpop.xlane.xlu0 %622
        %v624 = vrcp.pop %v623
        %625 = vrot.lane.b32.xlu0 %v533, 64
        %v626 = vpop.permute.xlu0 %625
        %v629 = vsel %vm614, %v620, 0
        %631 = vmatprep.subr.mxu0 0.0
        %632 = vmatpush1.msra.mxu0 %v626
        %633 = vmatprep.subr.mxu0 0.0
        %634 = vmatpush1.msra.mxu0 0.0
        %635 = vmatprep.subr.mxu0 0.0
        %636 = vmatpush1.msra.mxu0 0.0
        %637 = vmatprep.subr.mxu0 0.0
        %638 = vmatpush1.msra.mxu0 0.0
        %639 = vmatprep.subr.mxu0 0.0
        %640 = vmatpush1.msra.mxu0 0.0
        %641 = vmatprep.subr.mxu0 0.0
        %642 = vmatpush1.msra.mxu0 0.0
        %643 = vmatprep.subr.mxu0 0.0
        %644 = vmatpush1.msra.mxu0 0.0
        %645 = vmatprep.subr.mxu0 0.0
        %646 = vmatpush1.msra.mxu0 0.0
        %647 = vmatprep.subr.mxu0 0.0
        %648 = vmatpush1.msra.mxu0 0.0
        %649 = vmatprep.subr.mxu0 0.0
        %650 = vmatpush1.msra.mxu0 0.0
        %651 = vmatprep.subr.mxu0 0.0
        %652 = vmatpush1.msra.mxu0 0.0
        %653 = vmatprep.subr.mxu0 0.0
        %654 = vmatpush1.msra.mxu0 0.0
        %655 = vmatprep.subr.mxu0 0.0
        %656 = vmatpush1.msra.mxu0 0.0
        %657 = vmatprep.subr.mxu0 0.0
        %658 = vmatpush1.msra.mxu0 0.0
        %659 = vmatprep.subr.mxu0 0.0
        %660 = vmatpush1.msra.mxu0 0.0
        %661 = vmatprep.subr.mxu0 0.0
        %662 = vmatpush1.msra.mxu0 0.0
        %663 = vmatprep.subr.mxu0 0.0
        %664 = vmatpush1.msra.mxu0 0.0
        %665 = vmatprep.subr.mxu0 0.0
        %666 = vmatpush1.msra.mxu0 0.0
        %667 = vmatprep.subr.mxu0 0.0
        %668 = vmatpush1.msra.mxu0 0.0
        %669 = vmatprep.subr.mxu0 0.0
        %670 = vmatpush1.msra.mxu0 0.0
        %671 = vmatprep.subr.mxu0 0.0
        %672 = vmatpush1.msra.mxu0 0.0
        %673 = vmatprep.subr.mxu0 0.0
        %674 = vmatpush1.msra.mxu0 0.0
        %675 = vmatprep.subr.mxu0 0.0
        %676 = vmatpush1.msra.mxu0 0.0
        %677 = vmatprep.subr.mxu0 0.0
        %678 = vmatpush1.msra.mxu0 0.0
        %679 = vmatprep.subr.mxu0 0.0
        %680 = vmatpush1.msra.mxu0 0.0
        %681 = vmatprep.subr.mxu0 0.0
        %682 = vmatpush1.msra.mxu0 0.0
        %683 = vmatprep.subr.mxu0 0.0
        %684 = vmatpush1.msra.mxu0 0.0
        %685 = vmatprep.subr.mxu0 0.0
        %686 = vmatpush1.msra.mxu0 0.0
        %687 = vmatprep.subr.mxu0 0.0
        %688 = vmatpush1.msra.mxu0 0.0
        %689 = vmatprep.subr.mxu0 0.0
        %690 = vmatpush1.msra.mxu0 0.0
        %691 = vmatprep.subr.mxu0 0.0
        %692 = vmatpush1.msra.mxu0 0.0
        %693 = vmatprep.subr.mxu0 0.0
        %694 = vmatpush1.msra.mxu0 0.0
        %695 = vmatprep.mubr.f32.mxu0 0.0
        %696 = vmatmul.mubr.f32.gmra.mrb[0].mxu0 %v629
        %v697 = vpop.f32.mrb[0].mxu0
        %v698 = vadd.f32 0.0, %v697
        %v699 = vpop.f32.mrb[0].mxu0
        %700 = vdwg.mxu0
        %v701 = vmul.f32 %v698, %v624
        %v702 = vmul.f32 %v620, %v624
        %703 = vst.msk [vmem:[%s445] sm:$0xff] %vm614, %v702
        %704 = vst.msk [vmem:[#allocation2] sm:$0xff] %vm539, %v701
        %705 = vrot.lane.b32.xlu0 %v533, 112
        %v706 = vpop.permute.xlu0 %705
        %707 = vrot.lane.b32.xlu0 %v533, 80
        %v708 = vpop.permute.xlu0 %707
        %v709 = vsel %vm539, %v706, 0
        %v711 = vsel %vm539, %v708, 0
        %713 = vmatprep.subr.mxu0 0.0
        %714 = vmatpush1.xpose.msra.mxu0 %v711
        %715 = vmatprep.subr.mxu0 0.0
        %716 = vmatpush1.xpose.msra.mxu0 0.0
        %717 = vmatprep.subr.mxu0 0.0
        %718 = vmatpush1.xpose.msra.mxu0 0.0
        %719 = vmatprep.subr.mxu0 0.0
        %720 = vmatpush1.xpose.msra.mxu0 0.0
        %721 = vmatprep.subr.mxu0 0.0
        %722 = vmatpush1.xpose.msra.mxu0 0.0
        %723 = vmatprep.subr.mxu0 0.0
        %724 = vmatpush1.xpose.msra.mxu0 0.0
        %725 = vmatprep.subr.mxu0 0.0
        %726 = vmatpush1.xpose.msra.mxu0 0.0
        %727 = vmatprep.subr.mxu0 0.0
        %728 = vmatpush1.xpose.msra.mxu0 0.0
        %729 = vmatprep.subr.mxu0 0.0
        %730 = vmatpush1.xpose.msra.mxu0 0.0
        %731 = vmatprep.subr.mxu0 0.0
        %732 = vmatpush1.xpose.msra.mxu0 0.0
        %733 = vmatprep.subr.mxu0 0.0
        %734 = vmatpush1.xpose.msra.mxu0 0.0
        %735 = vmatprep.subr.mxu0 0.0
        %736 = vmatpush1.xpose.msra.mxu0 0.0
        %737 = vmatprep.subr.mxu0 0.0
        %738 = vmatpush1.xpose.msra.mxu0 0.0
        %739 = vmatprep.subr.mxu0 0.0
        %740 = vmatpush1.xpose.msra.mxu0 0.0
        %741 = vmatprep.subr.mxu0 0.0
        %742 = vmatpush1.xpose.msra.mxu0 0.0
        %743 = vmatprep.subr.mxu0 0.0
        %744 = vmatpush1.xpose.msra.mxu0 0.0
        %745 = vmatprep.subr.mxu0 0.0
        %746 = vmatpush1.xpose.msra.mxu0 0.0
        %747 = vmatprep.subr.mxu0 0.0
        %748 = vmatpush1.xpose.msra.mxu0 0.0
        %749 = vmatprep.subr.mxu0 0.0
        %750 = vmatpush1.xpose.msra.mxu0 0.0
        %751 = vmatprep.subr.mxu0 0.0
        %752 = vmatpush1.xpose.msra.mxu0 0.0
        %753 = vmatprep.subr.mxu0 0.0
        %754 = vmatpush1.xpose.msra.mxu0 0.0
        %755 = vmatprep.subr.mxu0 0.0
        %756 = vmatpush1.xpose.msra.mxu0 0.0
        %757 = vmatprep.subr.mxu0 0.0
        %758 = vmatpush1.xpose.msra.mxu0 0.0
        %759 = vmatprep.subr.mxu0 0.0
        %760 = vmatpush1.xpose.msra.mxu0 0.0
        %761 = vmatprep.subr.mxu0 0.0
        %762 = vmatpush1.xpose.msra.mxu0 0.0
        %763 = vmatprep.subr.mxu0 0.0
        %764 = vmatpush1.xpose.msra.mxu0 0.0
        %765 = vmatprep.subr.mxu0 0.0
        %766 = vmatpush1.xpose.msra.mxu0 0.0
        %767 = vmatprep.subr.mxu0 0.0
        %768 = vmatpush1.xpose.msra.mxu0 0.0
        %769 = vmatprep.subr.mxu0 0.0
        %770 = vmatpush1.xpose.msra.mxu0 0.0
        %771 = vmatprep.subr.mxu0 0.0
        %772 = vmatpush1.xpose.msra.mxu0 0.0
        %773 = vmatprep.subr.mxu0 0.0
        %774 = vmatpush1.xpose.msra.mxu0 0.0
        %775 = vmatprep.subr.mxu0 0.0
        %776 = vmatpush1.xpose.msra.mxu0 0.0
        %777 = vmatprep.mubr.f32.mxu0 0.0
        %778 = vmatmul.mubr.f32.gmra.mrb[0].mxu0 %v709
        %v779 = vpop.f32.mrb[0].mxu0
        %v780 = vadd.f32 0.0, %v779
        %v781 = vpop.f32.mrb[0].mxu0
        %782 = vdwg.mxu0
        %v783 = vsel %vm614, %v780, -inf
        %784 = vmax.xlane.f32.xlu0 %v783
        %v785 = vpop.xlane.xlu0 %784
        %v786 = vsub.f32 %v780, %v785
        %v787 = vmul.f32 %v786, 1.442695
        %v788 = vpow.pop %v787
        %v789 = vsel %vm614, %v788, 0.0
        %790 = vadd.xlane.f32.xlu0 %v789
        %v791 = vpop.xlane.xlu0 %790
        %v792 = vrcp.pop %v791
        %793 = vrot.lane.b32.xlu0 %v533, 48
        %v794 = vpop.permute.xlu0 %793
        %v797 = vsel %vm614, %v788, 0
        %799 = vmatprep.subr.mxu0 0.0
        %800 = vmatpush1.msra.mxu0 %v794
        %801 = vmatprep.subr.mxu0 0.0
        %802 = vmatpush1.msra.mxu0 0.0
        %803 = vmatprep.subr.mxu0 0.0
        %804 = vmatpush1.msra.mxu0 0.0
        %805 = vmatprep.subr.mxu0 0.0
        %806 = vmatpush1.msra.mxu0 0.0
        %807 = vmatprep.subr.mxu0 0.0
        %808 = vmatpush1.msra.mxu0 0.0
        %809 = vmatprep.subr.mxu0 0.0
        %810 = vmatpush1.msra.mxu0 0.0
        %811 = vmatprep.subr.mxu0 0.0
        %812 = vmatpush1.msra.mxu0 0.0
        %813 = vmatprep.subr.mxu0 0.0
        %814 = vmatpush1.msra.mxu0 0.0
        %815 = vmatprep.subr.mxu0 0.0
        %816 = vmatpush1.msra.mxu0 0.0
        %817 = vmatprep.subr.mxu0 0.0
        %818 = vmatpush1.msra.mxu0 0.0
        %819 = vmatprep.subr.mxu0 0.0
        %820 = vmatpush1.msra.mxu0 0.0
        %821 = vmatprep.subr.mxu0 0.0
        %822 = vmatpush1.msra.mxu0 0.0
        %823 = vmatprep.subr.mxu0 0.0
        %824 = vmatpush1.msra.mxu0 0.0
        %825 = vmatprep.subr.mxu0 0.0
        %826 = vmatpush1.msra.mxu0 0.0
        %827 = vmatprep.subr.mxu0 0.0
        %828 = vmatpush1.msra.mxu0 0.0
        %829 = vmatprep.subr.mxu0 0.0
        %830 = vmatpush1.msra.mxu0 0.0
        %831 = vmatprep.subr.mxu0 0.0
        %832 = vmatpush1.msra.mxu0 0.0
        %833 = vmatprep.subr.mxu0 0.0
        %834 = vmatpush1.msra.mxu0 0.0
        %835 = vmatprep.subr.mxu0 0.0
        %836 = vmatpush1.msra.mxu0 0.0
        %837 = vmatprep.subr.mxu0 0.0
        %838 = vmatpush1.msra.mxu0 0.0
        %839 = vmatprep.subr.mxu0 0.0
        %840 = vmatpush1.msra.mxu0 0.0
        %841 = vmatprep.subr.mxu0 0.0
        %842 = vmatpush1.msra.mxu0 0.0
        %843 = vmatprep.subr.mxu0 0.0
        %844 = vmatpush1.msra.mxu0 0.0
        %845 = vmatprep.subr.mxu0 0.0
        %846 = vmatpush1.msra.mxu0 0.0
        %847 = vmatprep.subr.mxu0 0.0
        %848 = vmatpush1.msra.mxu0 0.0
        %849 = vmatprep.subr.mxu0 0.0
        %850 = vmatpush1.msra.mxu0 0.0
        %851 = vmatprep.subr.mxu0 0.0
        %852 = vmatpush1.msra.mxu0 0.0
        %853 = vmatprep.subr.mxu0 0.0
        %854 = vmatpush1.msra.mxu0 0.0
        %855 = vmatprep.subr.mxu0 0.0
        %856 = vmatpush1.msra.mxu0 0.0
        %857 = vmatprep.subr.mxu0 0.0
        %858 = vmatpush1.msra.mxu0 0.0
        %859 = vmatprep.subr.mxu0 0.0
        %860 = vmatpush1.msra.mxu0 0.0
        %861 = vmatprep.subr.mxu0 0.0
        %862 = vmatpush1.msra.mxu0 0.0
        %863 = vmatprep.mubr.f32.mxu0 0.0
        %864 = vmatmul.mubr.f32.gmra.mrb[0].mxu0 %v797
        %v865 = vpop.f32.mrb[0].mxu0
        %v866 = vadd.f32 0.0, %v865
        %v867 = vpop.f32.mrb[0].mxu0
        %868 = vdwg.mxu0
        %v869 = vmul.f32 %v866, %v792
        %v870 = vmul.f32 %v788, %v792
        %v871 = vld [vmem:[%s445] sm:$0xff]
        %v872 = vadd.f32 %v871, %v870
        %873 = vst.msk [vmem:[%s445] sm:$0xff] %vm614, %v872
        %875 = vrot.lane.b32.xlu0 %v869, 16
        %v876 = vpop.permute.xlu0 %875
        %vm878 = vcmask 261248
        %879 = vst.msk [vmem:[#allocation2] sm:$0xff] %vm878, %v876
        %v880 = vld [vmem:[%s445] sm:$0xff]
        %v881 = vmul.f32 %v880, 0.5
        %882 = vst.msk [vmem:[%s445] sm:$0xff] %vm614, %v881
        %v883 = vld [vmem:[#allocation2] sm:$0xff]
        %v884 = vld [vmem:[#allocation7] sm:$0xff]
        %v885 = vld [vmem:[#allocation7 + $0x8] sm:$0xff]
        %v886 = vld [vmem:[#allocation7 + $0x10] sm:$0xff]
        %v887 = vld [vmem:[#allocation7 + $0x18] sm:$0xff]
        %v888 = vld [vmem:[%s4] sm:$0x1]
        %v890 = vlaneseq
        %v891 = vshrl.u32 %v890, 7
        %v892 = vsub.s32 0, %v891
        %v893 = vrot.slane %v888, %v892
        %v896 = vsel %vm462, %v883, 0
        %898 = vmatprep.subr.mxu0 0.0
        %899 = vmatpush1.msra.mxu0 %v884
        %900 = vmatprep.subr.mxu0 0.0
        %901 = vmatpush1.msra.mxu0 %v885
        %902 = vmatprep.subr.mxu0 0.0
        %903 = vmatpush1.msra.mxu0 %v886
        %904 = vmatprep.subr.mxu0 0.0
        %905 = vmatpush1.msra.mxu0 %v887
        %906 = vmatprep.subr.mxu0 0.0
        %907 = vmatpush1.msra.mxu0 0.0
        %908 = vmatprep.subr.mxu0 0.0
        %909 = vmatpush1.msra.mxu0 0.0
        %910 = vmatprep.subr.mxu0 0.0
        %911 = vmatpush1.msra.mxu0 0.0
        %912 = vmatprep.subr.mxu0 0.0
        %913 = vmatpush1.msra.mxu0 0.0
        %914 = vmatprep.subr.mxu0 0.0
        %915 = vmatpush1.msra.mxu0 0.0
        %916 = vmatprep.subr.mxu0 0.0
        %917 = vmatpush1.msra.mxu0 0.0
        %918 = vmatprep.subr.mxu0 0.0
        %919 = vmatpush1.msra.mxu0 0.0
        %920 = vmatprep.subr.mxu0 0.0
        %921 = vmatpush1.msra.mxu0 0.0
        %922 = vmatprep.subr.mxu0 0.0
        %923 = vmatpush1.msra.mxu0 0.0
        %924 = vmatprep.subr.mxu0 0.0
        %925 = vmatpush1.msra.mxu0 0.0
        %926 = vmatprep.subr.mxu0 0.0
        %927 = vmatpush1.msra.mxu0 0.0
        %928 = vmatprep.subr.mxu0 0.0
        %929 = vmatpush1.msra.mxu0 0.0
        %930 = vmatprep.subr.mxu0 0.0
        %931 = vmatpush1.msra.mxu0 0.0
        %932 = vmatprep.subr.mxu0 0.0
        %933 = vmatpush1.msra.mxu0 0.0
        %934 = vmatprep.subr.mxu0 0.0
        %935 = vmatpush1.msra.mxu0 0.0
        %936 = vmatprep.subr.mxu0 0.0
        %937 = vmatpush1.msra.mxu0 0.0
        %938 = vmatprep.subr.mxu0 0.0
        %939 = vmatpush1.msra.mxu0 0.0
        %940 = vmatprep.subr.mxu0 0.0
        %941 = vmatpush1.msra.mxu0 0.0
        %942 = vmatprep.subr.mxu0 0.0
        %943 = vmatpush1.msra.mxu0 0.0
        %944 = vmatprep.subr.mxu0 0.0
        %945 = vmatpush1.msra.mxu0 0.0
        %946 = vmatprep.subr.mxu0 0.0
        %947 = vmatpush1.msra.mxu0 0.0
        %948 = vmatprep.subr.mxu0 0.0
        %949 = vmatpush1.msra.mxu0 0.0
        %950 = vmatprep.subr.mxu0 0.0
        %951 = vmatpush1.msra.mxu0 0.0
        %952 = vmatprep.subr.mxu0 0.0
        %953 = vmatpush1.msra.mxu0 0.0
        %954 = vmatprep.subr.mxu0 0.0
        %955 = vmatpush1.msra.mxu0 0.0
        %956 = vmatprep.subr.mxu0 0.0
        %957 = vmatpush1.msra.mxu0 0.0
        %958 = vmatprep.subr.mxu0 0.0
        %959 = vmatpush1.msra.mxu0 0.0
        %960 = vmatprep.subr.mxu0 0.0
        %961 = vmatpush1.msra.mxu0 0.0
        %962 = vmatprep.mubr.f32.mxu0 0.0
        %963 = vmatmul.mubr.f32.gmra.mrb[0].mxu0 %v896
        %v964 = vpop.f32.mrb[0].mxu0
        %v965 = vadd.f32 %v893, %v964
        %v966 = vpop.f32.mrb[0].mxu0
        %967 = vdwg.mxu0
        %vm968 = vcmask 253952
        %969 = vst.msk [vmem:[#allocation3 + $0x7] sm:$0x1] %vm968, 0.0
        %970 = vst.msk [vmem:[#allocation3 + $0x10] sm:$0x1] %vm968, 0.0
        %971 = vst.msk [vmem:[#allocation3 + $0x8] sm:$0xff] %vm462, %v965
        %v972 = vld [vmem:[#allocation3 + $0x7] sm:$0xff]
        %v973 = vld [vmem:[%s5] sm:$0xff]
        %v974 = vld [vmem:[%s5 + $0x8] sm:$0xff]
        %v975 = vld [vmem:[%s5 + $0x10] sm:$0xff]
        %v976 = vld [vmem:[%s5 + $0x18] sm:$0xff]
        %v977 = vld [vmem:[#allocation3 + $0x8] sm:$0xff]
        %s978 = scalar_lea.vmem %s5, 32
        %v979 = vld [vmem:[%s978] sm:$0xff]
        %v980 = vld [vmem:[%s978 + $0x8] sm:$0xff]
        %v981 = vld [vmem:[%s978 + $0x10] sm:$0xff]
        %v982 = vld [vmem:[%s978 + $0x18] sm:$0xff]
        %v984 = vsel %vm462, %v977, 0
        %986 = vmatprep.subr.mxu0 0.0
        %987 = vmatpush1.msra.mxu0 %v979
        %988 = vmatprep.subr.mxu0 0.0
        %989 = vmatpush1.msra.mxu0 %v980
        %990 = vmatprep.subr.mxu0 0.0
        %991 = vmatpush1.msra.mxu0 %v981
        %992 = vmatprep.subr.mxu0 0.0
        %993 = vmatpush1.msra.mxu0 %v982
        %994 = vmatprep.subr.mxu0 0.0
        %995 = vmatpush1.msra.mxu0 0.0
        %996 = vmatprep.subr.mxu0 0.0
        %997 = vmatpush1.msra.mxu0 0.0
        %998 = vmatprep.subr.mxu0 0.0
        %999 = vmatpush1.msra.mxu0 0.0
        %1000 = vmatprep.subr.mxu0 0.0
        %1001 = vmatpush1.msra.mxu0 0.0
        %1002 = vmatprep.subr.mxu0 0.0
        %1003 = vmatpush1.msra.mxu0 0.0
        %1004 = vmatprep.subr.mxu0 0.0
        %1005 = vmatpush1.msra.mxu0 0.0
        %1006 = vmatprep.subr.mxu0 0.0
        %1007 = vmatpush1.msra.mxu0 0.0
        %1008 = vmatprep.subr.mxu0 0.0
        %1009 = vmatpush1.msra.mxu0 0.0
        %1010 = vmatprep.subr.mxu0 0.0
        %1011 = vmatpush1.msra.mxu0 0.0
        %1012 = vmatprep.subr.mxu0 0.0
        %1013 = vmatpush1.msra.mxu0 0.0
        %1014 = vmatprep.subr.mxu0 0.0
        %1015 = vmatpush1.msra.mxu0 0.0
        %1016 = vmatprep.subr.mxu0 0.0
        %1017 = vmatpush1.msra.mxu0 0.0
        %1018 = vmatprep.subr.mxu0 0.0
        %1019 = vmatpush1.msra.mxu0 0.0
        %1020 = vmatprep.subr.mxu0 0.0
        %1021 = vmatpush1.msra.mxu0 0.0
        %1022 = vmatprep.subr.mxu0 0.0
        %1023 = vmatpush1.msra.mxu0 0.0
        %1024 = vmatprep.subr.mxu0 0.0
        %1025 = vmatpush1.msra.mxu0 0.0
        %1026 = vmatprep.subr.mxu0 0.0
        %1027 = vmatpush1.msra.mxu0 0.0
        %1028 = vmatprep.subr.mxu0 0.0
        %1029 = vmatpush1.msra.mxu0 0.0
        %1030 = vmatprep.subr.mxu0 0.0
        %1031 = vmatpush1.msra.mxu0 0.0
        %1032 = vmatprep.subr.mxu0 0.0
        %1033 = vmatpush1.msra.mxu0 0.0
        %1034 = vmatprep.subr.mxu0 0.0
        %1035 = vmatpush1.msra.mxu0 0.0
        %1036 = vmatprep.subr.mxu0 0.0
        %1037 = vmatpush1.msra.mxu0 0.0
        %1038 = vmatprep.subr.mxu0 0.0
        %1039 = vmatpush1.msra.mxu0 0.0
        %1040 = vmatprep.subr.mxu0 0.0
        %1041 = vmatpush1.msra.mxu0 0.0
        %1042 = vmatprep.subr.mxu0 0.0
        %1043 = vmatpush1.msra.mxu0 0.0
        %1044 = vmatprep.subr.mxu0 0.0
        %1045 = vmatpush1.msra.mxu0 0.0
        %1046 = vmatprep.subr.mxu0 0.0
        %1047 = vmatpush1.msra.mxu0 0.0
        %1048 = vmatprep.subr.mxu0 0.0
        %1049 = vmatpush1.msra.mxu0 0.0
        %1050 = vmatprep.mubr.f32.mxu0 0.0
        %1051 = vmatmul.mubr.f32.gmra.mrb[0].mxu0 %v984
        %v1052 = vpop.f32.mrb[0].mxu0
        %v1053 = vadd.f32 0.0, %v1052
        %v1054 = vpop.f32.mrb[0].mxu0
        %1055 = vdwg.mxu0
        %v1057 = vsel %vm462, %v972, 0
        %1059 = vmatprep.subr.mxu0 0.0
        %1060 = vmatpush1.msra.mxu0 %v973
        %1061 = vmatprep.subr.mxu0 0.0
        %1062 = vmatpush1.msra.mxu0 %v974
        %1063 = vmatprep.subr.mxu0 0.0
        %1064 = vmatpush1.msra.mxu0 %v975
        %1065 = vmatprep.subr.mxu0 0.0
        %1066 = vmatpush1.msra.mxu0 %v976
        %1067 = vmatprep.subr.mxu0 0.0
        %1068 = vmatpush1.msra.mxu0 0.0
        %1069 = vmatprep.subr.mxu0 0.0
        %1070 = vmatpush1.msra.mxu0 0.0
        %1071 = vmatprep.subr.mxu0 0.0
        %1072 = vmatpush1.msra.mxu0 0.0
        %1073 = vmatprep.subr.mxu0 0.0
        %1074 = vmatpush1.msra.mxu0 0.0
        %1075 = vmatprep.subr.mxu0 0.0
        %1076 = vmatpush1.msra.mxu0 0.0
        %1077 = vmatprep.subr.mxu0 0.0
        %1078 = vmatpush1.msra.mxu0 0.0
        %1079 = vmatprep.subr.mxu0 0.0
        %1080 = vmatpush1.msra.mxu0 0.0
        %1081 = vmatprep.subr.mxu0 0.0
        %1082 = vmatpush1.msra.mxu0 0.0
        %1083 = vmatprep.subr.mxu0 0.0
        %1084 = vmatpush1.msra.mxu0 0.0
        %1085 = vmatprep.subr.mxu0 0.0
        %1086 = vmatpush1.msra.mxu0 0.0
        %1087 = vmatprep.subr.mxu0 0.0
        %1088 = vmatpush1.msra.mxu0 0.0
        %1089 = vmatprep.subr.mxu0 0.0
        %1090 = vmatpush1.msra.mxu0 0.0
        %1091 = vmatprep.subr.mxu0 0.0
        %1092 = vmatpush1.msra.mxu0 0.0
        %1093 = vmatprep.subr.mxu0 0.0
        %1094 = vmatpush1.msra.mxu0 0.0
        %1095 = vmatprep.subr.mxu0 0.0
        %1096 = vmatpush1.msra.mxu0 0.0
        %1097 = vmatprep.subr.mxu0 0.0
        %1098 = vmatpush1.msra.mxu0 0.0
        %1099 = vmatprep.subr.mxu0 0.0
        %1100 = vmatpush1.msra.mxu0 0.0
        %1101 = vmatprep.subr.mxu0 0.0
        %1102 = vmatpush1.msra.mxu0 0.0
        %1103 = vmatprep.subr.mxu0 0.0
        %1104 = vmatpush1.msra.mxu0 0.0
        %1105 = vmatprep.subr.mxu0 0.0
        %1106 = vmatpush1.msra.mxu0 0.0
        %1107 = vmatprep.subr.mxu0 0.0
        %1108 = vmatpush1.msra.mxu0 0.0
        %1109 = vmatprep.subr.mxu0 0.0
        %1110 = vmatpush1.msra.mxu0 0.0
        %1111 = vmatprep.subr.mxu0 0.0
        %1112 = vmatpush1.msra.mxu0 0.0
        %1113 = vmatprep.subr.mxu0 0.0
        %1114 = vmatpush1.msra.mxu0 0.0
        %1115 = vmatprep.subr.mxu0 0.0
        %1116 = vmatpush1.msra.mxu0 0.0
        %1117 = vmatprep.subr.mxu0 0.0
        %1118 = vmatpush1.msra.mxu0 0.0
        %1119 = vmatprep.subr.mxu0 0.0
        %1120 = vmatpush1.msra.mxu0 0.0
        %1121 = vmatprep.subr.mxu0 0.0
        %1122 = vmatpush1.msra.mxu0 0.0
        %1123 = vmatprep.mubr.f32.mxu0 0.0
        %1124 = vmatmul.mubr.f32.gmra.mrb[0].mxu0 %v1057
        %v1125 = vpop.f32.mrb[0].mxu0
        %v1126 = vadd.f32 %v1053, %v1125
        %v1127 = vpop.f32.mrb[0].mxu0
        %1128 = vdwg.mxu0
        %v1129 = vld [vmem:[#allocation3 + $0x9] sm:$0xff]
        %s1130 = scalar_lea.vmem %s5, 64
        %v1131 = vld [vmem:[%s1130] sm:$0xff]
        %v1132 = vld [vmem:[%s1130 + $0x8] sm:$0xff]
        %v1133 = vld [vmem:[%s1130 + $0x10] sm:$0xff]
        %v1134 = vld [vmem:[%s1130 + $0x18] sm:$0xff]
        %v1136 = vsel %vm462, %v1129, 0
        %1138 = vmatprep.subr.mxu0 0.0
        %1139 = vmatpush1.msra.mxu0 %v1131
        %1140 = vmatprep.subr.mxu0 0.0
        %1141 = vmatpush1.msra.mxu0 %v1132
        %1142 = vmatprep.subr.mxu0 0.0
        %1143 = vmatpush1.msra.mxu0 %v1133
        %1144 = vmatprep.subr.mxu0 0.0
        %1145 = vmatpush1.msra.mxu0 %v1134
        %1146 = vmatprep.subr.mxu0 0.0
        %1147 = vmatpush1.msra.mxu0 0.0
        %1148 = vmatprep.subr.mxu0 0.0
        %1149 = vmatpush1.msra.mxu0 0.0
        %1150 = vmatprep.subr.mxu0 0.0
        %1151 = vmatpush1.msra.mxu0 0.0
        %1152 = vmatprep.subr.mxu0 0.0
        %1153 = vmatpush1.msra.mxu0 0.0
        %1154 = vmatprep.subr.mxu0 0.0
        %1155 = vmatpush1.msra.mxu0 0.0
        %1156 = vmatprep.subr.mxu0 0.0
        %1157 = vmatpush1.msra.mxu0 0.0
        %1158 = vmatprep.subr.mxu0 0.0
        %1159 = vmatpush1.msra.mxu0 0.0
        %1160 = vmatprep.subr.mxu0 0.0
        %1161 = vmatpush1.msra.mxu0 0.0
        %1162 = vmatprep.subr.mxu0 0.0
        %1163 = vmatpush1.msra.mxu0 0.0
        %1164 = vmatprep.subr.mxu0 0.0
        %1165 = vmatpush1.msra.mxu0 0.0
        %1166 = vmatprep.subr.mxu0 0.0
        %1167 = vmatpush1.msra.mxu0 0.0
        %1168 = vmatprep.subr.mxu0 0.0
        %1169 = vmatpush1.msra.mxu0 0.0
        %1170 = vmatprep.subr.mxu0 0.0
        %1171 = vmatpush1.msra.mxu0 0.0
        %1172 = vmatprep.subr.mxu0 0.0
        %1173 = vmatpush1.msra.mxu0 0.0
        %1174 = vmatprep.subr.mxu0 0.0
        %1175 = vmatpush1.msra.mxu0 0.0
        %1176 = vmatprep.subr.mxu0 0.0
        %1177 = vmatpush1.msra.mxu0 0.0
        %1178 = vmatprep.subr.mxu0 0.0
        %1179 = vmatpush1.msra.mxu0 0.0
        %1180 = vmatprep.subr.mxu0 0.0
        %1181 = vmatpush1.msra.mxu0 0.0
        %1182 = vmatprep.subr.mxu0 0.0
        %1183 = vmatpush1.msra.mxu0 0.0
        %1184 = vmatprep.subr.mxu0 0.0
        %1185 = vmatpush1.msra.mxu0 0.0
        %1186 = vmatprep.subr.mxu0 0.0
        %1187 = vmatpush1.msra.mxu0 0.0
        %1188 = vmatprep.subr.mxu0 0.0
        %1189 = vmatpush1.msra.mxu0 0.0
        %1190 = vmatprep.subr.mxu0 0.0
        %1191 = vmatpush1.msra.mxu0 0.0
        %1192 = vmatprep.subr.mxu0 0.0
        %1193 = vmatpush1.msra.mxu0 0.0
        %1194 = vmatprep.subr.mxu0 0.0
        %1195 = vmatpush1.msra.mxu0 0.0
        %1196 = vmatprep.subr.mxu0 0.0
        %1197 = vmatpush1.msra.mxu0 0.0
        %1198 = vmatprep.subr.mxu0 0.0
        %1199 = vmatpush1.msra.mxu0 0.0
        %1200 = vmatprep.subr.mxu0 0.0
        %1201 = vmatpush1.msra.mxu0 0.0
        %1202 = vmatprep.mubr.f32.mxu0 0.0
        %1203 = vmatmul.mubr.f32.gmra.mrb[0].mxu0 %v1136
        %v1204 = vpop.f32.mrb[0].mxu0
        %v1205 = vadd.f32 0.0, %v1204
        %v1206 = vpop.f32.mrb[0].mxu0
        %1207 = vdwg.mxu0
        %v1208 = vadd.f32 %v1126, %v1205
        %v1209 = vld [vmem:[%s6] sm:$0x1]
        %v1211 = vlaneseq
        %v1212 = vshrl.u32 %v1211, 7
        %v1213 = vsub.s32 0, %v1212
        %v1214 = vrot.slane %v1209, %v1213
        %v1216 = vadd.f32 %v1208, %v1214
        %v1217 = vmax.f32 %v1216, 0.0
        %v1218 = vld [vmem:[%s7] sm:$0xff]
        %v1219 = vld [vmem:[%s7 + $0x8] sm:$0xff]
        %v1220 = vld [vmem:[%s7 + $0x10] sm:$0xff]
        %v1221 = vld [vmem:[%s7 + $0x18] sm:$0xff]
        %v1222 = vld [vmem:[%s7 + $0x20] sm:$0xff]
        %v1223 = vld [vmem:[%s7 + $0x28] sm:$0xff]
        %v1224 = vld [vmem:[%s7 + $0x30] sm:$0xff]
        %v1225 = vld [vmem:[%s7 + $0x38] sm:$0xff]
        %v1226 = vld [vmem:[%s8] sm:$0x1]
        %v1228 = vlaneseq
        %v1229 = vshrl.u32 %v1228, 7
        %v1230 = vsub.s32 0, %v1229
        %v1231 = vrot.slane %v1226, %v1230
        %vm1233 = vcmask 523264
        %v1235 = vsel %vm1233, %v1217, 0
        %1237 = vmatprep.subr.mxu0 0.0
        %1238 = vmatpush1.msra.mxu0 %v1218
        %1239 = vmatprep.subr.mxu0 0.0
        %1240 = vmatpush1.msra.mxu0 %v1219
        %1241 = vmatprep.subr.mxu0 0.0
        %1242 = vmatpush1.msra.mxu0 %v1220
        %1243 = vmatprep.subr.mxu0 0.0
        %1244 = vmatpush1.msra.mxu0 %v1221
        %1245 = vmatprep.subr.mxu0 0.0
        %1246 = vmatpush1.msra.mxu0 %v1222
        %1247 = vmatprep.subr.mxu0 0.0
        %1248 = vmatpush1.msra.mxu0 %v1223
        %1249 = vmatprep.subr.mxu0 0.0
        %1250 = vmatpush1.msra.mxu0 %v1224
        %1251 = vmatprep.subr.mxu0 0.0
        %1252 = vmatpush1.msra.mxu0 %v1225
        %1253 = vmatprep.subr.mxu0 0.0
        %1254 = vmatpush1.msra.mxu0 0.0
        %1255 = vmatprep.subr.mxu0 0.0
        %1256 = vmatpush1.msra.mxu0 0.0
        %1257 = vmatprep.subr.mxu0 0.0
        %1258 = vmatpush1.msra.mxu0 0.0
        %1259 = vmatprep.subr.mxu0 0.0
        %1260 = vmatpush1.msra.mxu0 0.0
        %1261 = vmatprep.subr.mxu0 0.0
        %1262 = vmatpush1.msra.mxu0 0.0
        %1263 = vmatprep.subr.mxu0 0.0
        %1264 = vmatpush1.msra.mxu0 0.0
        %1265 = vmatprep.subr.mxu0 0.0
        %1266 = vmatpush1.msra.mxu0 0.0
        %1267 = vmatprep.subr.mxu0 0.0
        %1268 = vmatpush1.msra.mxu0 0.0
        %1269 = vmatprep.subr.mxu0 0.0
        %1270 = vmatpush1.msra.mxu0 0.0
        %1271 = vmatprep.subr.mxu0 0.0
        %1272 = vmatpush1.msra.mxu0 0.0
        %1273 = vmatprep.subr.mxu0 0.0
        %1274 = vmatpush1.msra.mxu0 0.0
        %1275 = vmatprep.subr.mxu0 0.0
        %1276 = vmatpush1.msra.mxu0 0.0
        %1277 = vmatprep.subr.mxu0 0.0
        %1278 = vmatpush1.msra.mxu0 0.0
        %1279 = vmatprep.subr.mxu0 0.0
        %1280 = vmatpush1.msra.mxu0 0.0
        %1281 = vmatprep.subr.mxu0 0.0
        %1282 = vmatpush1.msra.mxu0 0.0
        %1283 = vmatprep.subr.mxu0 0.0
        %1284 = vmatpush1.msra.mxu0 0.0
        %1285 = vmatprep.subr.mxu0 0.0
        %1286 = vmatpush1.msra.mxu0 0.0
        %1287 = vmatprep.subr.mxu0 0.0
        %1288 = vmatpush1.msra.mxu0 0.0
        %1289 = vmatprep.subr.mxu0 0.0
        %1290 = vmatpush1.msra.mxu0 0.0
        %1291 = vmatprep.subr.mxu0 0.0
        %1292 = vmatpush1.msra.mxu0 0.0
        %1293 = vmatprep.subr.mxu0 0.0
        %1294 = vmatpush1.msra.mxu0 0.0
        %1295 = vmatprep.subr.mxu0 0.0
        %1296 = vmatpush1.msra.mxu0 0.0
        %1297 = vmatprep.subr.mxu0 0.0
        %1298 = vmatpush1.msra.mxu0 0.0
        %1299 = vmatprep.subr.mxu0 0.0
        %1300 = vmatpush1.msra.mxu0 0.0
        %1301 = vmatprep.mubr.f32.mxu0 0.0
        %1302 = vmatmul.mubr.f32.gmra.mrb[0].mxu0 %v1235
        %v1303 = vpop.f32.mrb[0].mxu0
        %v1304 = vadd.f32 %v1231, %v1303
        %v1305 = vpop.f32.mrb[0].mxu0
        %1306 = vdwg.mxu0
        %v1307 = vadd.f32 %v1304, %v965
        %v1308 = vsel %vm462, %v1307, 0.0
        %1309 = vadd.xlane.f32.xlu0 %v1308
        %v1310 = vpop.xlane.xlu0 %1309
        %v1311 = vrcp.pop 32.0
        %v1312 = vmul.f32 %v1310, %v1311
        %v1313 = vsub.f32 %v1307, %v1312
        %v1314 = vmul.f32 %v1313, %v1313
        %v1315 = vsel %vm462, %v1314, 0.0
        %1316 = vadd.xlane.f32.xlu0 %v1315
        %v1317 = vpop.xlane.xlu0 %1316
        %v1318 = vmul.f32 %v1317, %v1311
        %v1319 = vadd.f32 %v1318, 1e-05
        %v1320 = vrsqrt.pop %v1319
        %v1321 = vmul.f32 %v1313, %v1320
        %v1322 = vld [vmem:[%s9] sm:$0x1]
        %v1324 = vlaneseq
        %v1325 = vshrl.u32 %v1324, 7
        %v1326 = vsub.s32 0, %v1325
        %v1327 = vrot.slane %v1322, %v1326
        %v1329 = vmul.f32 %v1321, %v1327
        %v1330 = vld [vmem:[%s10] sm:$0x1]
        %v1332 = vlaneseq
        %v1333 = vshrl.u32 %v1332, 7
        %v1334 = vsub.s32 0, %v1333
        %v1335 = vrot.slane %v1330, %v1334
        %v1337 = vadd.f32 %v1329, %v1335
        %1338 = vst.msk [vmem:[%s438] sm:$0xff] %vm462, %v1337
        %s1339 = sand.u32 %s276, 1
        %s1340 = scalar_lea.sflag [#allocation6], %s1339
        %s1341 = sand.u32 %s276, 1
        %s1342 = smul.addr %s1341, 8
        %s1343 = scalar_lea.vmem [#allocation9], %s1342
        %s1344 = sand.u32 %s302, 1
        %s1345 = scalar_lea.sflag [#allocation11], %s1344
        %s1346 = sand.u32 %s302, 1
        %s1347 = smul.addr %s1346, 8
        %s1348 = scalar_lea.vmem [#allocation10], %s1347
        // Predicated region
        $region73: #{tpu_custom_call.1} parent=63 // pred_check
          %p1349 = pneg %p286
        $region74: #{tpu_custom_call.1} parent=63 // pred_check_branch
          %1351 = sbr.rel (%p1349) target = $region76
        $region75: #{tpu_custom_call.1} parent=63 // pred_region
          %s1353 = ssub.s32 128, 128
          %1354 = vsyncadd %s1340, %s1353
          %s1355 = smul.addr %s32, 128
          %s1356 = scalar_lea.hbm %s11, %s1355
          %s1358 = sshll.u32 %s1343, 4
          %s1359 = int_to_ptr.vmem [resolvable:$true] %s1358
          %1361 = dma.vmem_to_hbm [thread:$0]  %s1359, 128, %s1356, %s1340
        $region76: #{tpu_custom_call.1} parent=63 // pred_fallthru
          _
        // Predicated region
        $region77: #{tpu_custom_call.1} parent=63 // pred_check
          %p1362 = pneg %p312
        $region78: #{tpu_custom_call.1} parent=63 // pred_check_branch
          %1364 = sbr.rel (%p1362) target = $region80
        $region79: #{tpu_custom_call.1} parent=63 // pred_region
          %s1366 = ssub.s32 128, 128
          %1367 = vsyncadd %s1345, %s1366
          %s1368 = smul.addr %s32, 128
          %s1369 = scalar_lea.hbm %s12, %s1368
          %s1371 = sshll.u32 %s1348, 4
          %s1372 = int_to_ptr.vmem [resolvable:$true] %s1371
          %1374 = dma.vmem_to_hbm [thread:$0]  %s1372, 128, %s1369, %s1345
        $region80: #{tpu_custom_call.1} parent=63 // pred_fallthru
          _
      $region64: #{tpu_custom_call.1} parent=5 // pred_fallthru
        _
      %p1375 = scmp.le.s32.totalorder 2, %s27
      // Predicated region
      $region81: #{tpu_custom_call.1} parent=5 // pred_check
        %p1376 = pneg %p1375
      $region82: #{tpu_custom_call.1} parent=5 // pred_check_branch
        %1378 = sbr.rel (%p1376) target = $region84
      $region83: #{tpu_custom_call.1} parent=5 // pred_region
        %s1379 = ssub.s32 %s27, 2
        // Predicated region
        $region85: #{tpu_custom_call.1} parent=83 // pred_check
          %p1380 = pneg %p292
        $region86: #{tpu_custom_call.1} parent=83 // pred_check_branch
          %1382 = sbr.rel (%p1380) target = $region88
        $region87: #{tpu_custom_call.1} parent=83 // pred_region
          %s1383 = sand.u32 %s277, 1
          %s1384 = scalar_lea.sflag [#allocation6], %s1383
          %s1385 = sand.u32 %s277, 1
          %s1386 = smul.addr %s1385, 8
          %s1387 = scalar_lea.vmem [#allocation9], %s1386
          %1388 = dma.done %s1384, 128
        $region88: #{tpu_custom_call.1} parent=83 // pred_fallthru
          _
        // Predicated region
        $region89: #{tpu_custom_call.1} parent=83 // pred_check
          %p1389 = pneg %p318
        $region90: #{tpu_custom_call.1} parent=83 // pred_check_branch
          %1391 = sbr.rel (%p1389) target = $region92
        $region91: #{tpu_custom_call.1} parent=83 // pred_region
          %s1392 = sand.u32 %s303, 1
          %s1393 = scalar_lea.sflag [#allocation11], %s1392
          %s1394 = sand.u32 %s303, 1
          %s1395 = smul.addr %s1394, 8
          %s1396 = scalar_lea.vmem [#allocation10], %s1395
          %1397 = dma.done %s1393, 128
        $region92: #{tpu_custom_call.1} parent=83 // pred_fallthru
          _
      $region84: #{tpu_custom_call.1} parent=5 // pred_fallthru
        _
    $region6: #{tpu_custom_call.1} parent=1 // loop_footer
      %s31 = sadd.s32 1, %s27
    $region7: #{tpu_custom_call.1} parent=1 // loop_footer_branch
      %26 = sbr.rel target = $region3
    $region8: #{tpu_custom_call.1} parent=1 // loop_exit
      _
    %1398 = vsyncpa [#allocation5], 1
    %s1399 = scalar_lea.sflag [#allocation5], 1
    %1400 = vsyncpa %s1399, 1
    %1401 = vsyncpa [#allocation8], 1
    %1402 = vsyncpa [#allocation6], 1
    %s1403 = scalar_lea.sflag [#allocation6], 1
    %1404 = vsyncpa %s1403, 1
    %1405 = vsyncpa [#allocation11], 1
    %s1406 = scalar_lea.sflag [#allocation11], 1
    %1407 = vsyncpa %s1406, 1

// kernel: tpu_custom_call.1
$region0: #{tpu_custom_call.1}
  #allocation0 [shape = 'u32[]', space=smem, size = 0x4, offset = 0x4, fixed_abs, tag = 'smem constant byte address 0x4 - core index']
  #allocation1 [shape = 'u32[144,128]{1,0:T(1,128)}', space=vmem, size = 0x12000, scoped, tag = 'internal scratch']
  #allocation2 [shape = 'f32[8,32]{1,0:T(8,128)}', space=vmem, size = 0x1000, scoped, tag = 'scratch operand']
  #allocation3 [shape = 'f32[1,17,32]{2,1,0:T(8,128)}', space=vmem, size = 0x3000, scoped, tag = 'scratch operand']
  %s0 = inlined_call_operand.vmem [shape: f32[2,8,32], index: 0, kind: input, shape index: {}]
  %s1 = inlined_call_operand.hbm [shape: f32[32,96], index: 1, kind: input, shape index: {}]
  %s2 = inlined_call_operand.vmem [shape: f32[1,96], index: 2, kind: input, shape index: {}]
  %s3 = inlined_call_operand.hbm [shape: f32[32,32], index: 3, kind: input, shape index: {}]
  %s4 = inlined_call_operand.vmem [shape: f32[1,32], index: 4, kind: input, shape index: {}]
  %s5 = inlined_call_operand.vmem [shape: f32[3,32,64], index: 5, kind: input, shape index: {}]
  %s6 = inlined_call_operand.vmem [shape: f32[1,64], index: 6, kind: input, shape index: {}]
  %s7 = inlined_call_operand.vmem [shape: f32[64,32], index: 7, kind: input, shape index: {}]
  %s8 = inlined_call_operand.vmem [shape: f32[1,32], index: 8, kind: input, shape index: {}]
  %s9 = inlined_call_operand.vmem [shape: f32[1,32], index: 9, kind: input, shape index: {}]
  %s10 = inlined_call_operand.vmem [shape: f32[1,32], index: 10, kind: input, shape index: {}]
  %s11 = inlined_call_operand.hbm [shape: f32[2,8,32], index: 11, kind: output, shape index: {0}]
  %s12 = inlined_call_operand.hbm [shape: f32[2,8,8], index: 12, kind: output, shape index: {1}]
  %13 = xla_tuple %s11, %s12
  %s14 = sld [smem:[#allocation0]]
  $region93: #{tpu_custom_call.1} parent=0
    _
  %s16 = ssub.s32 1, %s14
  %s17 = scalar_select 0, %s16, %s14
  $region1: #{tpu_custom_call.1} parent=0
    #allocation4 [shape = 'u8[16384]{0}', space=vmem, size = 0x4000, scoped, tag = 'input window, operand 1, single buffered']
    #allocation5 [shape = 's32[2]{0}', space=sflag, size = 0x8, scoped, tag = 'scoped memory for tpu_custom_call.1']
    #allocation6 [shape = 's32[2]{0}', space=sflag, size = 0x8, scoped, tag = 'scoped memory for tpu_custom_call.1']
    #allocation7 [shape = 'u8[16384]{0}', space=vmem, size = 0x4000, scoped, tag = 'input window, operand 3, single buffered']
    #allocation8 [shape = 's32[1]{0}', space=sflag, size = 0x4, scoped, tag = 'scoped memory for tpu_custom_call.1']
    #allocation9 [shape = 'u8[8192]{0}', space=vmem, size = 0x2000, scoped, tag = 'output window, operand 0']
    #allocation10 [shape = 'u8[8192]{0}', space=vmem, size = 0x2000, scoped, tag = 'output window, operand 1']
    #allocation11 [shape = 's32[2]{0}', space=sflag, size = 0x8, scoped, tag = 'scoped memory for tpu_custom_call.1']
    %18 = vsyncpa [#allocation5], 0
    %19 = vsyncpa [#allocation8], 0
    %20 = vsyncpa [#allocation6], 0
    %s21 = scalar_lea.sflag [#allocation6], 1
    %22 = vsyncpa %s21, 0
    %23 = vsyncpa [#allocation11], 0
    %s24 = scalar_lea.sflag [#allocation11], 1
    %25 = vsyncpa %s24, 0
    loop: start=0, step=1, limit=4
    $region2: #{tpu_custom_call.1} parent=1 // loop_pre_header
      _
    $region3: #{tpu_custom_call.1} parent=1 // loop_header
      %s27 = sphi 0, %s31
      %p28 = scmp.ge.s32.totalorder %s27, 4
      %s37 = sphi 0, %s39
      %s40 = sphi 0, %s37
      %s41 = sphi 0, %s40
      %s57 = sphi 0, %s41
      %s61 = sphi 0, %s61
      %s63 = sphi 0, %s61
      %s64 = sphi 0, %s63
      %s78 = sphi 0, %s64
      %s82 = sphi 0, %s82
      %s84 = sphi 0, %s82
      %s85 = sphi 0, %s84
      %s99 = sphi 0, %s85
      %s103 = sphi 0, %s103
      %s105 = sphi 0, %s103
      %s106 = sphi 0, %s105
      %s120 = sphi 0, %s106
      %s124 = sphi 0, %s124
      %s126 = sphi 0, %s124
      %s127 = sphi 0, %s126
      %s141 = sphi 0, %s127
      %s145 = sphi 0, %s145
      %s147 = sphi 0, %s145
      %s148 = sphi 0, %s147
      %s162 = sphi 0, %s148
      %s166 = sphi 0, %s166
      %s168 = sphi 0, %s166
      %s169 = sphi 0, %s168
      %s183 = sphi 0, %s169
      %s187 = sphi 0, %s187
      %s189 = sphi 0, %s187
      %s190 = sphi 0, %s189
      %s204 = sphi 0, %s190
      %s208 = sphi 0, %s208
      %s210 = sphi 0, %s208
      %s211 = sphi 0, %s210
      %s225 = sphi 0, %s211
      %s229 = sphi 0, %s229
      %s231 = sphi 0, %s229
      %s232 = sphi 0, %s231
      %s246 = sphi 0, %s232
      %s250 = sphi 0, %s250
      %s252 = sphi 0, %s250
      %s253 = sphi 0, %s252
      %s267 = sphi 0, %s253
      %s273 = sphi 0, %s275
      %s276 = sphi 0, %s273
      %s277 = sphi 0, %s276
      %s293 = sphi 0, %s277
      %s299 = sphi 0, %s301
      %s302 = sphi 0, %s299
      %s303 = sphi 0, %s302
      %s319 = sphi 0, %s303
    $region4: #{tpu_custom_call.1} parent=1 // loop_header_branch
      %30 = sbr.rel (%p28) target = $region8
    $region5: #{tpu_custom_call.1} parent=1 // loop_body
      %s32 = ssub.s32 %s27, 1
      %s33 = ssub.s32 %s27, 2
      %s34 = sadd.s32 %s27, 1
      %s35 = ssub.s32 %s27, %s34
      %p36 = scmp.eq.s32.totalorder %s35, 0
      %s38 = sadd.s32 %s37, 1
      %s39 = scalar_select %p36, %s37, %s38
      %p42 = pneg %p36
      %p43 = scmp.eq.s32.totalorder %s27, 1
      %p44 = por %p42, %p43
      %p45 = scmp.ne.s32.totalorder %s37, %s40
      %p46 = scmp.eq.s32.totalorder %s27, 0
      %p47 = por %p45, %p46
      %p48 = scmp.ne.s32.totalorder %s37, %s40
      %p49 = scmp.eq.s32.totalorder %s32, 1
      %p50 = por %p48, %p49
      %p51 = scmp.ne.s32.totalorder %s40, %s41
      %p52 = scmp.eq.s32.totalorder %s32, 0
      %p53 = por %p51, %p52
      %p54 = scmp.ne.s32.totalorder %s40, %s41
      %p55 = scmp.eq.s32.totalorder %s33, 1
      %p56 = por %p54, %p55
      %p58 = scmp.ne.s32.totalorder %s41, %s57
      %p59 = scmp.eq.s32.totalorder %s33, 0
      %p60 = por %p58, %p59
      %s62 = sadd.s32 %s61, 1
      %p65 = scmp.eq.s32.totalorder %s27, 1
      %p66 = scmp.ne.s32.totalorder %s61, %s63
      %p67 = scmp.eq.s32.totalorder %s27, 0
      %p68 = por %p66, %p67
      %p69 = scmp.ne.s32.totalorder %s61, %s63
      %p70 = scmp.eq.s32.totalorder %s32, 1
      %p71 = por %p69, %p70
      %p72 = scmp.ne.s32.totalorder %s63, %s64
      %p73 = scmp.eq.s32.totalorder %s32, 0
      %p74 = por %p72, %p73
      %p75 = scmp.ne.s32.totalorder %s63, %s64
      %p76 = scmp.eq.s32.totalorder %s33, 1
      %p77 = por %p75, %p76
      %p79 = scmp.ne.s32.totalorder %s64, %s78
      %p80 = scmp.eq.s32.totalorder %s33, 0
      %p81 = por %p79, %p80
      %s83 = sadd.s32 %s82, 1
      %p86 = scmp.eq.s32.totalorder %s27, 1
      %p87 = scmp.ne.s32.totalorder %s82, %s84
      %p88 = scmp.eq.s32.totalorder %s27, 0
      %p89 = por %p87, %p88
      %p90 = scmp.ne.s32.totalorder %s82, %s84
      %p91 = scmp.eq.s32.totalorder %s32, 1
      %p92 = por %p90, %p91
      %p93 = scmp.ne.s32.totalorder %s84, %s85
      %p94 = scmp.eq.s32.totalorder %s32, 0
      %p95 = por %p93, %p94
      %p96 = scmp.ne.s32.totalorder %s84, %s85
      %p97 = scmp.eq.s32.totalorder %s33, 1
      %p98 = por %p96, %p97
      %p100 = scmp.ne.s32.totalorder %s85, %s99
      %p101 = scmp.eq.s32.totalorder %s33, 0
      %p102 = por %p100, %p101
      %s104 = sadd.s32 %s103, 1
      %p107 = scmp.eq.s32.totalorder %s27, 1
      %p108 = scmp.ne.s32.totalorder %s103, %s105
      %p109 = scmp.eq.s32.totalorder %s27, 0
      %p110 = por %p108, %p109
      %p111 = scmp.ne.s32.totalorder %s103, %s105
      %p112 = scmp.eq.s32.totalorder %s32, 1
      %p113 = por %p111, %p112
      %p114 = scmp.ne.s32.totalorder %s105, %s106
      %p115 = scmp.eq.s32.totalorder %s32, 0
      %p116 = por %p114, %p115
      %p117 = scmp.ne.s32.totalorder %s105, %s106
      %p118 = scmp.eq.s32.totalorder %s33, 1
      %p119 = por %p117, %p118
      %p121 = scmp.ne.s32.totalorder %s106, %s120
      %p122 = scmp.eq.s32.totalorder %s33, 0
      %p123 = por %p121, %p122
      %s125 = sadd.s32 %s124, 1
      %p128 = scmp.eq.s32.totalorder %s27, 1
      %p129 = scmp.ne.s32.totalorder %s124, %s126
      %p130 = scmp.eq.s32.totalorder %s27, 0
      %p131 = por %p129, %p130
      %p132 = scmp.ne.s32.totalorder %s124, %s126
      %p133 = scmp.eq.s32.totalorder %s32, 1
      %p134 = por %p132, %p133
      %p135 = scmp.ne.s32.totalorder %s126, %s127
      %p136 = scmp.eq.s32.totalorder %s32, 0
      %p137 = por %p135, %p136
      %p138 = scmp.ne.s32.totalorder %s126, %s127
      %p139 = scmp.eq.s32.totalorder %s33, 1
      %p140 = por %p138, %p139
      %p142 = scmp.ne.s32.totalorder %s127, %s141
      %p143 = scmp.eq.s32.totalorder %s33, 0
      %p144 = por %p142, %p143
      %s146 = sadd.s32 %s145, 1
      %p149 = scmp.eq.s32.totalorder %s27, 1
      %p150 = scmp.ne.s32.totalorder %s145, %s147
      %p151 = scmp.eq.s32.totalorder %s27, 0
      %p152 = por %p150, %p151
      %p153 = scmp.ne.s32.totalorder %s145, %s147
      %p154 = scmp.eq.s32.totalorder %s32, 1
      %p155 = por %p153, %p154
      %p156 = scmp.ne.s32.totalorder %s147, %s148
      %p157 = scmp.eq.s32.totalorder %s32, 0
      %p158 = por %p156, %p157
      %p159 = scmp.ne.s32.totalorder %s147, %s148
      %p160 = scmp.eq.s32.totalorder %s33, 1
      %p161 = por %p159, %p160
      %p163 = scmp.ne.s32.totalorder %s148, %s162
      %p164 = scmp.eq.s32.totalorder %s33, 0
      %p165 = por %p163, %p164
      %s167 = sadd.s32 %s166, 1
      %p170 = scmp.eq.s32.totalorder %s27, 1
      %p171 = scmp.ne.s32.totalorder %s166, %s168
      %p172 = scmp.eq.s32.totalorder %s27, 0
      %p173 = por %p171, %p172
      %p174 = scmp.ne.s32.totalorder %s166, %s168
      %p175 = scmp.eq.s32.totalorder %s32, 1
      %p176 = por %p174, %p175
      %p177 = scmp.ne.s32.totalorder %s168, %s169
      %p178 = scmp.eq.s32.totalorder %s32, 0
      %p179 = por %p177, %p178
      %p180 = scmp.ne.s32.totalorder %s168, %s169
      %p181 = scmp.eq.s32.totalorder %s33, 1
      %p182 = por %p180, %p181
      %p184 = scmp.ne.s32.totalorder %s169, %s183
      %p185 = scmp.eq.s32.totalorder %s33, 0
      %p186 = por %p184, %p185
      %s188 = sadd.s32 %s187, 1
      %p191 = scmp.eq.s32.totalorder %s27, 1
      %p192 = scmp.ne.s32.totalorder %s187, %s189
      %p193 = scmp.eq.s32.totalorder %s27, 0
      %p194 = por %p192, %p193
      %p195 = scmp.ne.s32.totalorder %s187, %s189
      %p196 = scmp.eq.s32.totalorder %s32, 1
      %p197 = por %p195, %p196
      %p198 = scmp.ne.s32.totalorder %s189, %s190
      %p199 = scmp.eq.s32.totalorder %s32, 0
      %p200 = por %p198, %p199
      %p201 = scmp.ne.s32.totalorder %s189, %s190
      %p202 = scmp.eq.s32.totalorder %s33, 1
      %p203 = por %p201, %p202
      %p205 = scmp.ne.s32.totalorder %s190, %s204
      %p206 = scmp.eq.s32.totalorder %s33, 0
      %p207 = por %p205, %p206
      %s209 = sadd.s32 %s208, 1
      %p212 = scmp.eq.s32.totalorder %s27, 1
      %p213 = scmp.ne.s32.totalorder %s208, %s210
      %p214 = scmp.eq.s32.totalorder %s27, 0
      %p215 = por %p213, %p214
      %p216 = scmp.ne.s32.totalorder %s208, %s210
      %p217 = scmp.eq.s32.totalorder %s32, 1
      %p218 = por %p216, %p217
      %p219 = scmp.ne.s32.totalorder %s210, %s211
      %p220 = scmp.eq.s32.totalorder %s32, 0
      %p221 = por %p219, %p220
      %p222 = scmp.ne.s32.totalorder %s210, %s211
      %p223 = scmp.eq.s32.totalorder %s33, 1
      %p224 = por %p222, %p223
      %p226 = scmp.ne.s32.totalorder %s211, %s225
      %p227 = scmp.eq.s32.totalorder %s33, 0
      %p228 = por %p226, %p227
      %s230 = sadd.s32 %s229, 1
      %p233 = scmp.eq.s32.totalorder %s27, 1
      %p234 = scmp.ne.s32.totalorder %s229, %s231
      %p235 = scmp.eq.s32.totalorder %s27, 0
      %p236 = por %p234, %p235
      %p237 = scmp.ne.s32.totalorder %s229, %s231
      %p238 = scmp.eq.s32.totalorder %s32, 1
      %p239 = por %p237, %p238
      %p240 = scmp.ne.s32.totalorder %s231, %s232
      %p241 = scmp.eq.s32.totalorder %s32, 0
      %p242 = por %p240, %p241
      %p243 = scmp.ne.s32.totalorder %s231, %s232
      %p244 = scmp.eq.s32.totalorder %s33, 1
      %p245 = por %p243, %p244
      %p247 = scmp.ne.s32.totalorder %s232, %s246
      %p248 = scmp.eq.s32.totalorder %s33, 0
      %p249 = por %p247, %p248
      %s251 = sadd.s32 %s250, 1
      %p254 = scmp.eq.s32.totalorder %s27, 1
      %p255 = scmp.ne.s32.totalorder %s250, %s252
      %p256 = scmp.eq.s32.totalorder %s27, 0
      %p257 = por %p255, %p256
      %p258 = scmp.ne.s32.totalorder %s250, %s252
      %p259 = scmp.eq.s32.totalorder %s32, 1
      %p260 = por %p258, %p259
      %p261 = scmp.ne.s32.totalorder %s252, %s253
      %p262 = scmp.eq.s32.totalorder %s32, 0
      %p263 = por %p261, %p262
      %p264 = scmp.ne.s32.totalorder %s252, %s253
      %p265 = scmp.eq.s32.totalorder %s33, 1
      %p266 = por %p264, %p265
      %p268 = scmp.ne.s32.totalorder %s253, %s267
      %p269 = scmp.eq.s32.totalorder %s33, 0
      %p270 = por %p268, %p269
      %s271 = ssub.s32 %s27, %s34
      %p272 = scmp.eq.s32.totalorder %s271, 0
      %s274 = sadd.s32 %s273, 1
      %s275 = scalar_select %p272, %s273, %s274
      %p278 = pneg %p272
      %p279 = scmp.eq.s32.totalorder %s27, 1
      %p280 = por %p278, %p279
      %p281 = scmp.ne.s32.totalorder %s273, %s276
      %p282 = scmp.eq.s32.totalorder %s27, 0
      %p283 = por %p281, %p282
      %p284 = scmp.ne.s32.totalorder %s273, %s276
      %p285 = scmp.eq.s32.totalorder %s32, 1
      %p286 = por %p284, %p285
      %p287 = scmp.ne.s32.totalorder %s276, %s277
      %p288 = scmp.eq.s32.totalorder %s32, 0
      %p289 = por %p287, %p288
      %p290 = scmp.ne.s32.totalorder %s276, %s277
      %p291 = scmp.eq.s32.totalorder %s33, 1
      %p292 = por %p290, %p291
      %p294 = scmp.ne.s32.totalorder %s277, %s293
      %p295 = scmp.eq.s32.totalorder %s33, 0
      %p296 = por %p294, %p295
      %s297 = ssub.s32 %s27, %s34
      %p298 = scmp.eq.s32.totalorder %s297, 0
      %s300 = sadd.s32 %s299, 1
      %s301 = scalar_select %p298, %s299, %s300
      %p304 = pneg %p298
      %p305 = scmp.eq.s32.totalorder %s27, 1
      %p306 = por %p304, %p305
      %p307 = scmp.ne.s32.totalorder %s299, %s302
      %p308 = scmp.eq.s32.totalorder %s27, 0
      %p309 = por %p307, %p308
      %p310 = scmp.ne.s32.totalorder %s299, %s302
      %p311 = scmp.eq.s32.totalorder %s32, 1
      %p312 = por %p310, %p311
      %p313 = scmp.ne.s32.totalorder %s302, %s303
      %p314 = scmp.eq.s32.totalorder %s32, 0
      %p315 = por %p313, %p314
      %p316 = scmp.ne.s32.totalorder %s302, %s303
      %p317 = scmp.eq.s32.totalorder %s33, 1
      %p318 = por %p316, %p317
      %p320 = scmp.ne.s32.totalorder %s303, %s319
      %p321 = scmp.eq.s32.totalorder %s33, 0
      %p322 = por %p320, %p321
      %p323 = scmp.le.s32.totalorder 1, %s27
      %p324 = scmp.lt.s32.totalorder %s27, 3
      %p325 = pnand %p323, %p324
      %p326 = pneg %p325
      // Predicated region
      $region9: #{tpu_custom_call.1} parent=5 // pred_check
        _
      $region10: #{tpu_custom_call.1} parent=5 // pred_check_branch
        %328 = sbr.rel (%p325) target = $region12
      $region11: #{tpu_custom_call.1} parent=5 // pred_region
        %s329 = ssub.s32 %s27, 1
        // Predicated region
        $region13: #{tpu_custom_call.1} parent=11 // pred_check
          %p330 = pneg %p74
        $region14: #{tpu_custom_call.1} parent=11 // pred_check_branch
          %332 = sbr.rel (%p330) target = $region16
        $region15: #{tpu_custom_call.1} parent=11 // pred_region
          %s334 = ssub.s32 512, 512
          %335 = vsyncadd [#allocation5], %s334
          %s336 = sshll.u32 [#allocation4], 4
          %s337 = int_to_ptr.vmem [resolvable:$true] %s336
          %342 = dma.hbm_to_vmem [thread:$0]  %s1, 512, %s337, [#allocation5], 128, 128, 8
        $region16: #{tpu_custom_call.1} parent=11 // pred_fallthru
          _
        // Predicated region
        $region17: #{tpu_custom_call.1} parent=11 // pred_check
          %p343 = pneg %p95
        $region18: #{tpu_custom_call.1} parent=11 // pred_check_branch
          %345 = sbr.rel (%p343) target = $region20
        $region19: #{tpu_custom_call.1} parent=11 // pred_region
          _
        $region20: #{tpu_custom_call.1} parent=11 // pred_fallthru
          _
        // Predicated region
        $region21: #{tpu_custom_call.1} parent=11 // pred_check
          %p346 = pneg %p116
        $region22: #{tpu_custom_call.1} parent=11 // pred_check_branch
          %348 = sbr.rel (%p346) target = $region24
        $region23: #{tpu_custom_call.1} parent=11 // pred_region
          %s350 = ssub.s32 512, 512
          %351 = vsyncadd [#allocation8], %s350
          %s352 = sshll.u32 [#allocation7], 4
          %s353 = int_to_ptr.vmem [resolvable:$true] %s352
          %358 = dma.hbm_to_vmem [thread:$0]  %s3, 512, %s353, [#allocation8], 128, 128, 8
        $region24: #{tpu_custom_call.1} parent=11 // pred_fallthru
          _
        // Predicated region
        $region25: #{tpu_custom_call.1} parent=11 // pred_check
          %p359 = pneg %p137
        $region26: #{tpu_custom_call.1} parent=11 // pred_check_branch
          %361 = sbr.rel (%p359) target = $region28
        $region27: #{tpu_custom_call.1} parent=11 // pred_region
          _
        $region28: #{tpu_custom_call.1} parent=11 // pred_fallthru
          _
        // Predicated region
        $region29: #{tpu_custom_call.1} parent=11 // pred_check
          %p362 = pneg %p158
        $region30: #{tpu_custom_call.1} parent=11 // pred_check_branch
          %364 = sbr.rel (%p362) target = $region32
        $region31: #{tpu_custom_call.1} parent=11 // pred_region
          _
        $region32: #{tpu_custom_call.1} parent=11 // pred_fallthru
          _
        // Predicated region
        $region33: #{tpu_custom_call.1} parent=11 // pred_check
          %p365 = pneg %p179
        $region34: #{tpu_custom_call.1} parent=11 // pred_check_branch
          %367 = sbr.rel (%p365) target = $region36
        $region35: #{tpu_custom_call.1} parent=11 // pred_region
          _
        $region36: #{tpu_custom_call.1} parent=11 // pred_fallthru
          _
        // Predicated region
        $region37: #{tpu_custom_call.1} parent=11 // pred_check
          %p368 = pneg %p200
        $region38: #{tpu_custom_call.1} parent=11 // pred_check_branch
          %370 = sbr.rel (%p368) target = $region40
        $region39: #{tpu_custom_call.1} parent=11 // pred_region
          _
        $region40: #{tpu_custom_call.1} parent=11 // pred_fallthru
          _
        // Predicated region
        $region41: #{tpu_custom_call.1} parent=11 // pred_check
          %p371 = pneg %p221
        $region42: #{tpu_custom_call.1} parent=11 // pred_check_branch
          %373 = sbr.rel (%p371) target = $region44
        $region43: #{tpu_custom_call.1} parent=11 // pred_region
          _
        $region44: #{tpu_custom_call.1} parent=11 // pred_fallthru
          _
        // Predicated region
        $region45: #{tpu_custom_call.1} parent=11 // pred_check
          %p374 = pneg %p242
        $region46: #{tpu_custom_call.1} parent=11 // pred_check_branch
          %376 = sbr.rel (%p374) target = $region48
        $region47: #{tpu_custom_call.1} parent=11 // pred_region
          _
        $region48: #{tpu_custom_call.1} parent=11 // pred_fallthru
          _
        // Predicated region
        $region49: #{tpu_custom_call.1} parent=11 // pred_check
          %p377 = pneg %p263
        $region50: #{tpu_custom_call.1} parent=11 // pred_check_branch
          %379 = sbr.rel (%p377) target = $region52
        $region51: #{tpu_custom_call.1} parent=11 // pred_region
          _
        $region52: #{tpu_custom_call.1} parent=11 // pred_fallthru
          _
      $region12: #{tpu_custom_call.1} parent=5 // pred_fallthru
        _
      %p380 = scmp.lt.s32.totalorder %s27, 2
      // Predicated region
      $region53: #{tpu_custom_call.1} parent=5 // pred_check
        %p381 = pneg %p380
      $region54: #{tpu_custom_call.1} parent=5 // pred_check_branch
        %383 = sbr.rel (%p381) target = $region56
      $region55: #{tpu_custom_call.1} parent=5 // pred_region
        // Predicated region
        $region57: #{tpu_custom_call.1} parent=55 // pred_check
          %p384 = pneg %p47
        $region58: #{tpu_custom_call.1} parent=55 // pred_check_branch
          %386 = sbr.rel (%p384) target = $region60
        $region59: #{tpu_custom_call.1} parent=55 // pred_region
          %p387 = scmp.lt.s32.totalorder %s27, 1
          %s388 = scalar_select %p387, %s27, 1
          %s389 = smul.addr %s388, 8
          %s390 = scalar_lea.vmem %s0, %s389
        $region60: #{tpu_custom_call.1} parent=55 // pred_fallthru
          _
      $region56: #{tpu_custom_call.1} parent=5 // pred_fallthru
        _
      %p391 = scmp.le.s32.totalorder 1, %s27
      %p392 = scmp.lt.s32.totalorder %s27, 3
      %p393 = pnand %p391, %p392
      %p394 = pneg %p393
      // Predicated region
      $region61: #{tpu_custom_call.1} parent=5 // pred_check
        _
      $region62: #{tpu_custom_call.1} parent=5 // pred_check_branch
        %396 = sbr.rel (%p393) target = $region64
      $region63: #{tpu_custom_call.1} parent=5 // pred_region
        %s397 = ssub.s32 %s27, 1
        // Predicated region
        $region65: #{tpu_custom_call.1} parent=63 // pred_check
          %p398 = pneg %p74
        $region66: #{tpu_custom_call.1} parent=63 // pred_check_branch
          %400 = sbr.rel (%p398) target = $region68
        $region67: #{tpu_custom_call.1} parent=63 // pred_region
          %401 = dma.done [#allocation5], 512
        $region68: #{tpu_custom_call.1} parent=63 // pred_fallthru
          _
        // Predicated region
        $region69: #{tpu_custom_call.1} parent=63 // pred_check
          %p402 = pneg %p116
        $region70: #{tpu_custom_call.1} parent=63 // pred_check_branch
          %404 = sbr.rel (%p402) target = $region72
        $region71: #{tpu_custom_call.1} parent=63 // pred_region
          %405 = dma.done [#allocation8], 512
        $region72: #{tpu_custom_call.1} parent=63 // pred_fallthru
          _
        %p406 = scmp.lt.s32.totalorder %s32, 1
        %s407 = scalar_select %p406, %s32, 1
        %s408 = smul.addr %s407, 8
        %s409 = scalar_lea.vmem %s0, %s408
        %p410 = pneg %p53
        %p411 = pneg %p50
        %p412 = pneg %p74
        %p413 = pneg %p71
        %p414 = pneg %p95
        %p415 = pneg %p92
        %p416 = pneg %p116
        %p417 = pneg %p113
        %p418 = pneg %p137
        %p419 = pneg %p134
        %p420 = pneg %p158
        %p421 = pneg %p155
        %p422 = pneg %p179
        %p423 = pneg %p176
        %p424 = pneg %p200
        %p425 = pneg %p197
        %p426 = pneg %p221
        %p427 = pneg %p218
        %p428 = pneg %p242
        %p429 = pneg %p239
        %p430 = pneg %p263
        %p431 = pneg %p260
        %p432 = pneg %p289
        %p433 = pneg %p286
        %s434 = sand.u32 %s276, 1
        %s435 = scalar_lea.sflag [#allocation6], %s434
        %s436 = sand.u32 %s276, 1
        %s437 = smul.addr %s436, 8
        %s438 = scalar_lea.vmem [#allocation9], %s437
        %p439 = pneg %p315
        %p440 = pneg %p312
        %s441 = sand.u32 %s302, 1
        %s442 = scalar_lea.sflag [#allocation11], %s441
        %s443 = sand.u32 %s302, 1
        %s444 = smul.addr %s443, 8
        %s445 = scalar_lea.vmem [#allocation10], %s444
        %p446 = scmp.lt.s32.totalorder %s32, 1
        %s447 = scalar_select %p446, %s32, 1
        %s448 = smul.addr %s447, 8
        %s449 = scalar_lea.vmem %s0, %s448
        %v450 = vld [vmem:[%s449] sm:$0xff]
        %v451 = vld [vmem:[#allocation4] sm:$0xff]
        %v452 = vld [vmem:[#allocation4 + $0x8] sm:$0xff]
        %v453 = vld [vmem:[#allocation4 + $0x10] sm:$0xff]
        %v454 = vld [vmem:[#allocation4 + $0x18] sm:$0xff]
        %v455 = vld [vmem:[%s2] sm:$0x1]
        %v457 = vlaneseq
        %v458 = vshrl.u32 %v457, 7
        %v459 = vsub.s32 0, %v458
        %v460 = vrot.slane %v455, %v459
        %vm462 = vcmask 261120
        %v464 = vsel %vm462, %v450, 0
        %466 = vmatprep.subr.mxu0 0.0
        %467 = vmatpush1.msra.mxu0 %v451
        %468 = vmatprep.subr.mxu0 0.0
        %469 = vmatpush1.msra.mxu0 %v452
        %470 = vmatprep.subr.mxu0 0.0
        %471 = vmatpush1.msra.mxu0 %v453
        %472 = vmatprep.subr.mxu0 0.0
        %473 = vmatpush1.msra.mxu0 %v454
        %474 = vmatprep.subr.mxu0 0.0
        %475 = vmatpush1.msra.mxu0 0.0
        %476 = vmatprep.subr.mxu0 0.0
        %477 = vmatpush1.msra.mxu0 0.0
        %478 = vmatprep.subr.mxu0 0.0
        %479 = vmatpush1.msra.mxu0 0.0
        %480 = vmatprep.subr.mxu0 0.0
        %481 = vmatpush1.msra.mxu0 0.0
        %482 = vmatprep.subr.mxu0 0.0
        %483 = vmatpush1.msra.mxu0 0.0
        %484 = vmatprep.subr.mxu0 0.0
        %485 = vmatpush1.msra.mxu0 0.0
        %486 = vmatprep.subr.mxu0 0.0
        %487 = vmatpush1.msra.mxu0 0.0
        %488 = vmatprep.subr.mxu0 0.0
        %489 = vmatpush1.msra.mxu0 0.0
        %490 = vmatprep.subr.mxu0 0.0
        %491 = vmatpush1.msra.mxu0 0.0
        %492 = vmatprep.subr.mxu0 0.0
        %493 = vmatpush1.msra.mxu0 0.0
        %494 = vmatprep.subr.mxu0 0.0
        %495 = vmatpush1.msra.mxu0 0.0
        %496 = vmatprep.subr.mxu0 0.0
        %497 = vmatpush1.msra.mxu0 0.0
        %498 = vmatprep.subr.mxu0 0.0
        %499 = vmatpush1.msra.mxu0 0.0
        %500 = vmatprep.subr.mxu0 0.0
        %501 = vmatpush1.msra.mxu0 0.0
        %502 = vmatprep.subr.mxu0 0.0
        %503 = vmatpush1.msra.mxu0 0.0
        %504 = vmatprep.subr.mxu0 0.0
        %505 = vmatpush1.msra.mxu0 0.0
        %506 = vmatprep.subr.mxu0 0.0
        %507 = vmatpush1.msra.mxu0 0.0
        %508 = vmatprep.subr.mxu0 0.0
        %509 = vmatpush1.msra.mxu0 0.0
        %510 = vmatprep.subr.mxu0 0.0
        %511 = vmatpush1.msra.mxu0 0.0
        %512 = vmatprep.subr.mxu0 0.0
        %513 = vmatpush1.msra.mxu0 0.0
        %514 = vmatprep.subr.mxu0 0.0
        %515 = vmatpush1.msra.mxu0 0.0
        %516 = vmatprep.subr.mxu0 0.0
        %517 = vmatpush1.msra.mxu0 0.0
        %518 = vmatprep.subr.mxu0 0.0
        %519 = vmatpush1.msra.mxu0 0.0
        %520 = vmatprep.subr.mxu0 0.0
        %521 = vmatpush1.msra.mxu0 0.0
        %522 = vmatprep.subr.mxu0 0.0
        %523 = vmatpush1.msra.mxu0 0.0
        %524 = vmatprep.subr.mxu0 0.0
        %525 = vmatpush1.msra.mxu0 0.0
        %526 = vmatprep.subr.mxu0 0.0
        %527 = vmatpush1.msra.mxu0 0.0
        %528 = vmatprep.subr.mxu0 0.0
        %529 = vmatpush1.msra.mxu0 0.0
        %530 = vmatprep.mubr.f32.mxu0 0.0
        %531 = vmatmul.mubr.f32.gmra.mrb[0].mxu0 %v464
        %v532 = vpop.f32.mrb[0].mxu0
        %v533 = vadd.f32 %v460, %v532
        %v534 = vpop.f32.mrb[0].mxu0
        %535 = vdwg.mxu0
        %537 = vrot.lane.b32.xlu0 %v533, 96
        %v538 = vpop.permute.xlu0 %537
        %vm539 = vcmask 130048
        %v540 = vsel %vm539, %v533, 0
        %v542 = vsel %vm539, %v538, 0
        %544 = vmatprep.subr.mxu0 0.0
        %545 = vmatpush1.xpose.msra.mxu0 %v542
        %546 = vmatprep.subr.mxu0 0.0
        %547 = vmatpush1.xpose.msra.mxu0 0.0
        %548 = vmatprep.subr.mxu0 0.0
        %549 = vmatpush1.xpose.msra.mxu0 0.0
        %550 = vmatprep.subr.mxu0 0.0
        %551 = vmatpush1.xpose.msra.mxu0 0.0
        %552 = vmatprep.subr.mxu0 0.0
        %553 = vmatpush1.xpose.msra.mxu0 0.0
        %554 = vmatprep.subr.mxu0 0.0
        %555 = vmatpush1.xpose.msra.mxu0 0.0
        %556 = vmatprep.subr.mxu0 0.0
        %557 = vmatpush1.xpose.msra.mxu0 0.0
        %558 = vmatprep.subr.mxu0 0.0
        %559 = vmatpush1.xpose.msra.mxu0 0.0
        %560 = vmatprep.subr.mxu0 0.0
        %561 = vmatpush1.xpose.msra.mxu0 0.0
        %562 = vmatprep.subr.mxu0 0.0
        %563 = vmatpush1.xpose.msra.mxu0 0.0
        %564 = vmatprep.subr.mxu0 0.0
        %565 = vmatpush1.xpose.msra.mxu0 0.0
        %566 = vmatprep.subr.mxu0 0.0
        %567 = vmatpush1.xpose.msra.mxu0 0.0
        %568 = vmatprep.subr.mxu0 0.0
        %569 = vmatpush1.xpose.msra.mxu0 0.0
        %570 = vmatprep.subr.mxu0 0.0
        %571 = vmatpush1.xpose.msra.mxu0 0.0
        %572 = vmatprep.subr.mxu0 0.0
        %573 = vmatpush1.xpose.msra.mxu0 0.0
        %574 = vmatprep.subr.mxu0 0.0
        %575 = vmatpush1.xpose.msra.mxu0 0.0
        %576 = vmatprep.subr.mxu0 0.0
        %577 = vmatpush1.xpose.msra.mxu0 0.0
        %578 = vmatprep.subr.mxu0 0.0
        %579 = vmatpush1.xpose.msra.mxu0 0.0
        %580 = vmatprep.subr.mxu0 0.0
        %581 = vmatpush1.xpose.msra.mxu0 0.0
        %582 = vmatprep.subr.mxu0 0.0
        %583 = vmatpush1.xpose.msra.mxu0 0.0
        %584 = vmatprep.subr.mxu0 0.0
        %585 = vmatpush1.xpose.msra.mxu0 0.0
        %586 = vmatprep.subr.mxu0 0.0
        %587 = vmatpush1.xpose.msra.mxu0 0.0
        %588 = vmatprep.subr.mxu0 0.0
        %589 = vmatpush1.xpose.msra.mxu0 0.0
        %590 = vmatprep.subr.mxu0 0.0
        %591 = vmatpush1.xpose.msra.mxu0 0.0
        %592 = vmatprep.subr.mxu0 0.0
        %593 = vmatpush1.xpose.msra.mxu0 0.0
        %594 = vmatprep.subr.mxu0 0.0
        %595 = vmatpush1.xpose.msra.mxu0 0.0
        %596 = vmatprep.subr.mxu0 0.0
        %597 = vmatpush1.xpose.msra.mxu0 0.0
        %598 = vmatprep.subr.mxu0 0.0
        %599 = vmatpush1.xpose.msra.mxu0 0.0
        %600 = vmatprep.subr.mxu0 0.0
        %601 = vmatpush1.xpose.msra.mxu0 0.0
        %602 = vmatprep.subr.mxu0 0.0
        %603 = vmatpush1.xpose.msra.mxu0 0.0
        %604 = vmatprep.subr.mxu0 0.0
        %605 = vmatpush1.xpose.msra.mxu0 0.0
        %606 = vmatprep.subr.mxu0 0.0
        %607 = vmatpush1.xpose.msra.mxu0 0.0
        %608 = vmatprep.mubr.f32.mxu0 0.0
        %609 = vmatmul.mubr.f32.gmra.mrb[0].mxu0 %v540
        %v610 = vpop.f32.mrb[0].mxu0
        %v611 = vadd.f32 0.0, %v610
        %v612 = vpop.f32.mrb[0].mxu0
        %613 = vdwg.mxu0
        %vm614 = vcmask 64512
        %v615 = vsel %vm614, %v611, -inf
        %616 = vmax.xlane.f32.xlu0 %v615
        %v617 = vpop.xlane.xlu0 %616
        %v618 = vsub.f32 %v611, %v617
        %v619 = vmul.f32 %v618, 1.442695
        %v620 = vpow.pop %v619
        %v621 = vsel %vm614, %v620, 0.0
        %622 = vadd.xlane.f32.xlu0 %v621
        %v623 = vpop.xlane.xlu0 %622
        %v624 = vrcp.pop %v623
        %625 = vrot.lane.b32.xlu0 %v533, 64
        %v626 = vpop.permute.xlu0 %625
        %v629 = vsel %vm614, %v620, 0
        %631 = vmatprep.subr.mxu0 0.0
        %632 = vmatpush1.msra.mxu0 %v626
        %633 = vmatprep.subr.mxu0 0.0
        %634 = vmatpush1.msra.mxu0 0.0
        %635 = vmatprep.subr.mxu0 0.0
        %636 = vmatpush1.msra.mxu0 0.0
        %637 = vmatprep.subr.mxu0 0.0
        %638 = vmatpush1.msra.mxu0 0.0
        %639 = vmatprep.subr.mxu0 0.0
        %640 = vmatpush1.msra.mxu0 0.0
        %641 = vmatprep.subr.mxu0 0.0
        %642 = vmatpush1.msra.mxu0 0.0
        %643 = vmatprep.subr.mxu0 0.0
        %644 = vmatpush1.msra.mxu0 0.0
        %645 = vmatprep.subr.mxu0 0.0
        %646 = vmatpush1.msra.mxu0 0.0
        %647 = vmatprep.subr.mxu0 0.0
        %648 = vmatpush1.msra.mxu0 0.0
        %649 = vmatprep.subr.mxu0 0.0
        %650 = vmatpush1.msra.mxu0 0.0
        %651 = vmatprep.subr.mxu0 0.0
        %652 = vmatpush1.msra.mxu0 0.0
        %653 = vmatprep.subr.mxu0 0.0
        %654 = vmatpush1.msra.mxu0 0.0
        %655 = vmatprep.subr.mxu0 0.0
        %656 = vmatpush1.msra.mxu0 0.0
        %657 = vmatprep.subr.mxu0 0.0
        %658 = vmatpush1.msra.mxu0 0.0
        %659 = vmatprep.subr.mxu0 0.0
        %660 = vmatpush1.msra.mxu0 0.0
        %661 = vmatprep.subr.mxu0 0.0
        %662 = vmatpush1.msra.mxu0 0.0
        %663 = vmatprep.subr.mxu0 0.0
        %664 = vmatpush1.msra.mxu0 0.0
        %665 = vmatprep.subr.mxu0 0.0
        %666 = vmatpush1.msra.mxu0 0.0
        %667 = vmatprep.subr.mxu0 0.0
        %668 = vmatpush1.msra.mxu0 0.0
        %669 = vmatprep.subr.mxu0 0.0
        %670 = vmatpush1.msra.mxu0 0.0
        %671 = vmatprep.subr.mxu0 0.0
        %672 = vmatpush1.msra.mxu0 0.0
        %673 = vmatprep.subr.mxu0 0.0
        %674 = vmatpush1.msra.mxu0 0.0
        %675 = vmatprep.subr.mxu0 0.0
        %676 = vmatpush1.msra.mxu0 0.0
        %677 = vmatprep.subr.mxu0 0.0
        %678 = vmatpush1.msra.mxu0 0.0
        %679 = vmatprep.subr.mxu0 0.0
        %680 = vmatpush1.msra.mxu0 0.0
        %681 = vmatprep.subr.mxu0 0.0
        %682 = vmatpush1.msra.mxu0 0.0
        %683 = vmatprep.subr.mxu0 0.0
        %684 = vmatpush1.msra.mxu0 0.0
        %685 = vmatprep.subr.mxu0 0.0
        %686 = vmatpush1.msra.mxu0 0.0
        %687 = vmatprep.subr.mxu0 0.0
        %688 = vmatpush1.msra.mxu0 0.0
        %689 = vmatprep.subr.mxu0 0.0
        %690 = vmatpush1.msra.mxu0 0.0
        %691 = vmatprep.subr.mxu0 0.0
        %692 = vmatpush1.msra.mxu0 0.0
        %693 = vmatprep.subr.mxu0 0.0
        %694 = vmatpush1.msra.mxu0 0.0
        %695 = vmatprep.mubr.f32.mxu0 0.0
        %696 = vmatmul.mubr.f32.gmra.mrb[0].mxu0 %v629
        %v697 = vpop.f32.mrb[0].mxu0
        %v698 = vadd.f32 0.0, %v697
        %v699 = vpop.f32.mrb[0].mxu0
        %700 = vdwg.mxu0
        %v701 = vmul.f32 %v698, %v624
        %v702 = vmul.f32 %v620, %v624
        %703 = vst.msk [vmem:[%s445] sm:$0xff] %vm614, %v702
        %704 = vst.msk [vmem:[#allocation2] sm:$0xff] %vm539, %v701
        %705 = vrot.lane.b32.xlu0 %v533, 112
        %v706 = vpop.permute.xlu0 %705
        %707 = vrot.lane.b32.xlu0 %v533, 80
        %v708 = vpop.permute.xlu0 %707
        %v709 = vsel %vm539, %v706, 0
        %v711 = vsel %vm539, %v708, 0
        %713 = vmatprep.subr.mxu0 0.0
        %714 = vmatpush1.xpose.msra.mxu0 %v711
        %715 = vmatprep.subr.mxu0 0.0
        %716 = vmatpush1.xpose.msra.mxu0 0.0
        %717 = vmatprep.subr.mxu0 0.0
        %718 = vmatpush1.xpose.msra.mxu0 0.0
        %719 = vmatprep.subr.mxu0 0.0
        %720 = vmatpush1.xpose.msra.mxu0 0.0
        %721 = vmatprep.subr.mxu0 0.0
        %722 = vmatpush1.xpose.msra.mxu0 0.0
        %723 = vmatprep.subr.mxu0 0.0
        %724 = vmatpush1.xpose.msra.mxu0 0.0
        %725 = vmatprep.subr.mxu0 0.0
        %726 = vmatpush1.xpose.msra.mxu0 0.0
        %727 = vmatprep.subr.mxu0 0.0
        %728 = vmatpush1.xpose.msra.mxu0 0.0
        %729 = vmatprep.subr.mxu0 0.0
        %730 = vmatpush1.xpose.msra.mxu0 0.0
        %731 = vmatprep.subr.mxu0 0.0
        %732 = vmatpush1.xpose.msra.mxu0 0.0
        %733 = vmatprep.subr.mxu0 0.0
        %734 = vmatpush1.xpose.msra.mxu0 0.0
        %735 = vmatprep.subr.mxu0 0.0
        %736 = vmatpush1.xpose.msra.mxu0 0.0
        %737 = vmatprep.subr.mxu0 0.0
        %738 = vmatpush1.xpose.msra.mxu0 0.0
        %739 = vmatprep.subr.mxu0 0.0
        %740 = vmatpush1.xpose.msra.mxu0 0.0
        %741 = vmatprep.subr.mxu0 0.0
        %742 = vmatpush1.xpose.msra.mxu0 0.0
        %743 = vmatprep.subr.mxu0 0.0
        %744 = vmatpush1.xpose.msra.mxu0 0.0
        %745 = vmatprep.subr.mxu0 0.0
        %746 = vmatpush1.xpose.msra.mxu0 0.0
        %747 = vmatprep.subr.mxu0 0.0
        %748 = vmatpush1.xpose.msra.mxu0 0.0
        %749 = vmatprep.subr.mxu0 0.0
        %750 = vmatpush1.xpose.msra.mxu0 0.0
        %751 = vmatprep.subr.mxu0 0.0
        %752 = vmatpush1.xpose.msra.mxu0 0.0
        %753 = vmatprep.subr.mxu0 0.0
        %754 = vmatpush1.xpose.msra.mxu0 0.0
        %755 = vmatprep.subr.mxu0 0.0
        %756 = vmatpush1.xpose.msra.mxu0 0.0
        %757 = vmatprep.subr.mxu0 0.0
        %758 = vmatpush1.xpose.msra.mxu0 0.0
        %759 = vmatprep.subr.mxu0 0.0
        %760 = vmatpush1.xpose.msra.mxu0 0.0
        %761 = vmatprep.subr.mxu0 0.0
        %762 = vmatpush1.xpose.msra.mxu0 0.0
        %763 = vmatprep.subr.mxu0 0.0
        %764 = vmatpush1.xpose.msra.mxu0 0.0
        %765 = vmatprep.subr.mxu0 0.0
        %766 = vmatpush1.xpose.msra.mxu0 0.0
        %767 = vmatprep.subr.mxu0 0.0
        %768 = vmatpush1.xpose.msra.mxu0 0.0
        %769 = vmatprep.subr.mxu0 0.0
        %770 = vmatpush1.xpose.msra.mxu0 0.0
        %771 = vmatprep.subr.mxu0 0.0
        %772 = vmatpush1.xpose.msra.mxu0 0.0
        %773 = vmatprep.subr.mxu0 0.0
        %774 = vmatpush1.xpose.msra.mxu0 0.0
        %775 = vmatprep.subr.mxu0 0.0
        %776 = vmatpush1.xpose.msra.mxu0 0.0
        %777 = vmatprep.mubr.f32.mxu0 0.0
        %778 = vmatmul.mubr.f32.gmra.mrb[0].mxu0 %v709
        %v779 = vpop.f32.mrb[0].mxu0
        %v780 = vadd.f32 0.0, %v779
        %v781 = vpop.f32.mrb[0].mxu0
        %782 = vdwg.mxu0
        %v783 = vsel %vm614, %v780, -inf
        %784 = vmax.xlane.f32.xlu0 %v783
        %v785 = vpop.xlane.xlu0 %784
        %v786 = vsub.f32 %v780, %v785
        %v787 = vmul.f32 %v786, 1.442695
        %v788 = vpow.pop %v787
        %v789 = vsel %vm614, %v788, 0.0
        %790 = vadd.xlane.f32.xlu0 %v789
        %v791 = vpop.xlane.xlu0 %790
        %v792 = vrcp.pop %v791
        %793 = vrot.lane.b32.xlu0 %v533, 48
        %v794 = vpop.permute.xlu0 %793
        %v797 = vsel %vm614, %v788, 0
        %799 = vmatprep.subr.mxu0 0.0
        %800 = vmatpush1.msra.mxu0 %v794
        %801 = vmatprep.subr.mxu0 0.0
        %802 = vmatpush1.msra.mxu0 0.0
        %803 = vmatprep.subr.mxu0 0.0
        %804 = vmatpush1.msra.mxu0 0.0
        %805 = vmatprep.subr.mxu0 0.0
        %806 = vmatpush1.msra.mxu0 0.0
        %807 = vmatprep.subr.mxu0 0.0
        %808 = vmatpush1.msra.mxu0 0.0
        %809 = vmatprep.subr.mxu0 0.0
        %810 = vmatpush1.msra.mxu0 0.0
        %811 = vmatprep.subr.mxu0 0.0
        %812 = vmatpush1.msra.mxu0 0.0
        %813 = vmatprep.subr.mxu0 0.0
        %814 = vmatpush1.msra.mxu0 0.0
        %815 = vmatprep.subr.mxu0 0.0
        %816 = vmatpush1.msra.mxu0 0.0
        %817 = vmatprep.subr.mxu0 0.0
        %818 = vmatpush1.msra.mxu0 0.0
        %819 = vmatprep.subr.mxu0 0.0
        %820 = vmatpush1.msra.mxu0 0.0
        %821 = vmatprep.subr.mxu0 0.0
        %822 = vmatpush1.msra.mxu0 0.0
        %823 = vmatprep.subr.mxu0 0.0
        %824 = vmatpush1.msra.mxu0 0.0
        %825 = vmatprep.subr.mxu0 0.0
        %826 = vmatpush1.msra.mxu0 0.0
        %827 = vmatprep.subr.mxu0 0.0
        %828 = vmatpush1.msra.mxu0 0.0
        %829 = vmatprep.subr.mxu0 0.0
        %830 = vmatpush1.msra.mxu0 0.0
        %831 = vmatprep.subr.mxu0 0.0
        %832 = vmatpush1.msra.mxu0 0.0
        %833 = vmatprep.subr.mxu0 0.0
        %834 = vmatpush1.msra.mxu0 0.0
        %835 = vmatprep.subr.mxu0 0.0
        %836 = vmatpush1.msra.mxu0 0.0
        %837 = vmatprep.subr.mxu0 0.0
        %838 = vmatpush1.msra.mxu0 0.0
        %839 = vmatprep.subr.mxu0 0.0
        %840 = vmatpush1.msra.mxu0 0.0
        %841 = vmatprep.subr.mxu0 0.0
        %842 = vmatpush1.msra.mxu0 0.0
        %843 = vmatprep.subr.mxu0 0.0
        %844 = vmatpush1.msra.mxu0 0.0
        %845 = vmatprep.subr.mxu0 0.0
        %846 = vmatpush1.msra.mxu0 0.0
        %847 = vmatprep.subr.mxu0 0.0
        %848 = vmatpush1.msra.mxu0 0.0
        %849 = vmatprep.subr.mxu0 0.0
        %850 = vmatpush1.msra.mxu0 0.0
        %851 = vmatprep.subr.mxu0 0.0
        %852 = vmatpush1.msra.mxu0 0.0
        %853 = vmatprep.subr.mxu0 0.0
        %854 = vmatpush1.msra.mxu0 0.0
        %855 = vmatprep.subr.mxu0 0.0
        %856 = vmatpush1.msra.mxu0 0.0
        %857 = vmatprep.subr.mxu0 0.0
        %858 = vmatpush1.msra.mxu0 0.0
        %859 = vmatprep.subr.mxu0 0.0
        %860 = vmatpush1.msra.mxu0 0.0
        %861 = vmatprep.subr.mxu0 0.0
        %862 = vmatpush1.msra.mxu0 0.0
        %863 = vmatprep.mubr.f32.mxu0 0.0
        %864 = vmatmul.mubr.f32.gmra.mrb[0].mxu0 %v797
        %v865 = vpop.f32.mrb[0].mxu0
        %v866 = vadd.f32 0.0, %v865
        %v867 = vpop.f32.mrb[0].mxu0
        %868 = vdwg.mxu0
        %v869 = vmul.f32 %v866, %v792
        %v870 = vmul.f32 %v788, %v792
        %v871 = vld [vmem:[%s445] sm:$0xff]
        %v872 = vadd.f32 %v871, %v870
        %873 = vst.msk [vmem:[%s445] sm:$0xff] %vm614, %v872
        %875 = vrot.lane.b32.xlu0 %v869, 16
        %v876 = vpop.permute.xlu0 %875
        %vm878 = vcmask 261248
        %879 = vst.msk [vmem:[#allocation2] sm:$0xff] %vm878, %v876
        %v880 = vld [vmem:[%s445] sm:$0xff]
        %v881 = vmul.f32 %v880, 0.5
        %882 = vst.msk [vmem:[%s445] sm:$0xff] %vm614, %v881
        %v883 = vld [vmem:[#allocation2] sm:$0xff]
        %v884 = vld [vmem:[#allocation7] sm:$0xff]
        %v885 = vld [vmem:[#allocation7 + $0x8] sm:$0xff]
        %v886 = vld [vmem:[#allocation7 + $0x10] sm:$0xff]
        %v887 = vld [vmem:[#allocation7 + $0x18] sm:$0xff]
        %v888 = vld [vmem:[%s4] sm:$0x1]
        %v890 = vlaneseq
        %v891 = vshrl.u32 %v890, 7
        %v892 = vsub.s32 0, %v891
        %v893 = vrot.slane %v888, %v892
        %v896 = vsel %vm462, %v883, 0
        %898 = vmatprep.subr.mxu0 0.0
        %899 = vmatpush1.msra.mxu0 %v884
        %900 = vmatprep.subr.mxu0 0.0
        %901 = vmatpush1.msra.mxu0 %v885
        %902 = vmatprep.subr.mxu0 0.0
        %903 = vmatpush1.msra.mxu0 %v886
        %904 = vmatprep.subr.mxu0 0.0
        %905 = vmatpush1.msra.mxu0 %v887
        %906 = vmatprep.subr.mxu0 0.0
        %907 = vmatpush1.msra.mxu0 0.0
        %908 = vmatprep.subr.mxu0 0.0
        %909 = vmatpush1.msra.mxu0 0.0
        %910 = vmatprep.subr.mxu0 0.0
        %911 = vmatpush1.msra.mxu0 0.0
        %912 = vmatprep.subr.mxu0 0.0
        %913 = vmatpush1.msra.mxu0 0.0
        %914 = vmatprep.subr.mxu0 0.0
        %915 = vmatpush1.msra.mxu0 0.0
        %916 = vmatprep.subr.mxu0 0.0
        %917 = vmatpush1.msra.mxu0 0.0
        %918 = vmatprep.subr.mxu0 0.0
        %919 = vmatpush1.msra.mxu0 0.0
        %920 = vmatprep.subr.mxu0 0.0
        %921 = vmatpush1.msra.mxu0 0.0
        %922 = vmatprep.subr.mxu0 0.0
        %923 = vmatpush1.msra.mxu0 0.0
        %924 = vmatprep.subr.mxu0 0.0
        %925 = vmatpush1.msra.mxu0 0.0
        %926 = vmatprep.subr.mxu0 0.0
        %927 = vmatpush1.msra.mxu0 0.0
        %928 = vmatprep.subr.mxu0 0.0
        %929 = vmatpush1.msra.mxu0 0.0
        %930 = vmatprep.subr.mxu0 0.0
        %931 = vmatpush1.msra.mxu0 0.0
        %932 = vmatprep.subr.mxu0 0.0
        %933 = vmatpush1.msra.mxu0 0.0
        %934 = vmatprep.subr.mxu0 0.0
        %935 = vmatpush1.msra.mxu0 0.0
        %936 = vmatprep.subr.mxu0 0.0
        %937 = vmatpush1.msra.mxu0 0.0
        %938 = vmatprep.subr.mxu0 0.0
        %939 = vmatpush1.msra.mxu0 0.0
        %940 = vmatprep.subr.mxu0 0.0
        %941 = vmatpush1.msra.mxu0 0.0
        %942 = vmatprep.subr.mxu0 0.0
        %943 = vmatpush1.msra.mxu0 0.0
        %944 = vmatprep.subr.mxu0 0.0
        %945 = vmatpush1.msra.mxu0 0.0
        %946 = vmatprep.subr.mxu0 0.0
        %947 = vmatpush1.msra.mxu0 0.0
        %948 = vmatprep.subr.mxu0 0.0
        %949 = vmatpush1.msra.mxu0 0.0
        %950 = vmatprep.subr.mxu0 0.0
        %951 = vmatpush1.msra.mxu0 0.0
        %952 = vmatprep.subr.mxu0 0.0
        %953 = vmatpush1.msra.mxu0 0.0
        %954 = vmatprep.subr.mxu0 0.0
        %955 = vmatpush1.msra.mxu0 0.0
        %956 = vmatprep.subr.mxu0 0.0
        %957 = vmatpush1.msra.mxu0 0.0
        %958 = vmatprep.subr.mxu0 0.0
        %959 = vmatpush1.msra.mxu0 0.0
        %960 = vmatprep.subr.mxu0 0.0
        %961 = vmatpush1.msra.mxu0 0.0
        %962 = vmatprep.mubr.f32.mxu0 0.0
        %963 = vmatmul.mubr.f32.gmra.mrb[0].mxu0 %v896
        %v964 = vpop.f32.mrb[0].mxu0
        %v965 = vadd.f32 %v893, %v964
        %v966 = vpop.f32.mrb[0].mxu0
        %967 = vdwg.mxu0
        %vm968 = vcmask 253952
        %969 = vst.msk [vmem:[#allocation3 + $0x7] sm:$0x1] %vm968, 0.0
        %970 = vst.msk [vmem:[#allocation3 + $0x10] sm:$0x1] %vm968, 0.0
        %971 = vst.msk [vmem:[#allocation3 + $0x8] sm:$0xff] %vm462, %v965
        %v972 = vld [vmem:[#allocation3 + $0x7] sm:$0xff]
        %v973 = vld [vmem:[%s5] sm:$0xff]
        %v974 = vld [vmem:[%s5 + $0x8] sm:$0xff]
        %v975 = vld [vmem:[%s5 + $0x10] sm:$0xff]
        %v976 = vld [vmem:[%s5 + $0x18] sm:$0xff]
        %v977 = vld [vmem:[#allocation3 + $0x8] sm:$0xff]
        %s978 = scalar_lea.vmem %s5, 32
        %v979 = vld [vmem:[%s978] sm:$0xff]
        %v980 = vld [vmem:[%s978 + $0x8] sm:$0xff]
        %v981 = vld [vmem:[%s978 + $0x10] sm:$0xff]
        %v982 = vld [vmem:[%s978 + $0x18] sm:$0xff]
        %v984 = vsel %vm462, %v977, 0
        %986 = vmatprep.subr.mxu0 0.0
        %987 = vmatpush1.msra.mxu0 %v979
        %988 = vmatprep.subr.mxu0 0.0
        %989 = vmatpush1.msra.mxu0 %v980
        %990 = vmatprep.subr.mxu0 0.0
        %991 = vmatpush1.msra.mxu0 %v981
        %992 = vmatprep.subr.mxu0 0.0
        %993 = vmatpush1.msra.mxu0 %v982
        %994 = vmatprep.subr.mxu0 0.0
        %995 = vmatpush1.msra.mxu0 0.0
        %996 = vmatprep.subr.mxu0 0.0
        %997 = vmatpush1.msra.mxu0 0.0
        %998 = vmatprep.subr.mxu0 0.0
        %999 = vmatpush1.msra.mxu0 0.0
        %1000 = vmatprep.subr.mxu0 0.0
        %1001 = vmatpush1.msra.mxu0 0.0
        %1002 = vmatprep.subr.mxu0 0.0
        %1003 = vmatpush1.msra.mxu0 0.0
        %1004 = vmatprep.subr.mxu0 0.0
        %1005 = vmatpush1.msra.mxu0 0.0
        %1006 = vmatprep.subr.mxu0 0.0
        %1007 = vmatpush1.msra.mxu0 0.0
        %1008 = vmatprep.subr.mxu0 0.0
        %1009 = vmatpush1.msra.mxu0 0.0
        %1010 = vmatprep.subr.mxu0 0.0
        %1011 = vmatpush1.msra.mxu0 0.0
        %1012 = vmatprep.subr.mxu0 0.0
        %1013 = vmatpush1.msra.mxu0 0.0
        %1014 = vmatprep.subr.mxu0 0.0
        %1015 = vmatpush1.msra.mxu0 0.0
        %1016 = vmatprep.subr.mxu0 0.0
        %1017 = vmatpush1.msra.mxu0 0.0
        %1018 = vmatprep.subr.mxu0 0.0
        %1019 = vmatpush1.msra.mxu0 0.0
        %1020 = vmatprep.subr.mxu0 0.0
        %1021 = vmatpush1.msra.mxu0 0.0
        %1022 = vmatprep.subr.mxu0 0.0
        %1023 = vmatpush1.msra.mxu0 0.0
        %1024 = vmatprep.subr.mxu0 0.0
        %1025 = vmatpush1.msra.mxu0 0.0
        %1026 = vmatprep.subr.mxu0 0.0
        %1027 = vmatpush1.msra.mxu0 0.0
        %1028 = vmatprep.subr.mxu0 0.0
        %1029 = vmatpush1.msra.mxu0 0.0
        %1030 = vmatprep.subr.mxu0 0.0
        %1031 = vmatpush1.msra.mxu0 0.0
        %1032 = vmatprep.subr.mxu0 0.0
        %1033 = vmatpush1.msra.mxu0 0.0
        %1034 = vmatprep.subr.mxu0 0.0
        %1035 = vmatpush1.msra.mxu0 0.0
        %1036 = vmatprep.subr.mxu0 0.0
        %1037 = vmatpush1.msra.mxu0 0.0
        %1038 = vmatprep.subr.mxu0 0.0
        %1039 = vmatpush1.msra.mxu0 0.0
        %1040 = vmatprep.subr.mxu0 0.0
        %1041 = vmatpush1.msra.mxu0 0.0
        %1042 = vmatprep.subr.mxu0 0.0
        %1043 = vmatpush1.msra.mxu0 0.0
        %1044 = vmatprep.subr.mxu0 0.0
        %1045 = vmatpush1.msra.mxu0 0.0
        %1046 = vmatprep.subr.mxu0 0.0
        %1047 = vmatpush1.msra.mxu0 0.0
        %1048 = vmatprep.subr.mxu0 0.0
        %1049 = vmatpush1.msra.mxu0 0.0
        %1050 = vmatprep.mubr.f32.mxu0 0.0
        %1051 = vmatmul.mubr.f32.gmra.mrb[0].mxu0 %v984
        %v1052 = vpop.f32.mrb[0].mxu0
        %v1053 = vadd.f32 0.0, %v1052
        %v1054 = vpop.f32.mrb[0].mxu0
        %1055 = vdwg.mxu0
        %v1057 = vsel %vm462, %v972, 0
        %1059 = vmatprep.subr.mxu0 0.0
        %1060 = vmatpush1.msra.mxu0 %v973
        %1061 = vmatprep.subr.mxu0 0.0
        %1062 = vmatpush1.msra.mxu0 %v974
        %1063 = vmatprep.subr.mxu0 0.0
        %1064 = vmatpush1.msra.mxu0 %v975
        %1065 = vmatprep.subr.mxu0 0.0
        %1066 = vmatpush1.msra.mxu0 %v976
        %1067 = vmatprep.subr.mxu0 0.0
        %1068 = vmatpush1.msra.mxu0 0.0
        %1069 = vmatprep.subr.mxu0 0.0
        %1070 = vmatpush1.msra.mxu0 0.0
        %1071 = vmatprep.subr.mxu0 0.0
        %1072 = vmatpush1.msra.mxu0 0.0
        %1073 = vmatprep.subr.mxu0 0.0
        %1074 = vmatpush1.msra.mxu0 0.0
        %1075 = vmatprep.subr.mxu0 0.0
        %1076 = vmatpush1.msra.mxu0 0.0
        %1077 = vmatprep.subr.mxu0 0.0
        %1078 = vmatpush1.msra.mxu0 0.0
        %1079 = vmatprep.subr.mxu0 0.0
        %1080 = vmatpush1.msra.mxu0 0.0
        %1081 = vmatprep.subr.mxu0 0.0
        %1082 = vmatpush1.msra.mxu0 0.0
        %1083 = vmatprep.subr.mxu0 0.0
        %1084 = vmatpush1.msra.mxu0 0.0
        %1085 = vmatprep.subr.mxu0 0.0
        %1086 = vmatpush1.msra.mxu0 0.0
        %1087 = vmatprep.subr.mxu0 0.0
        %1088 = vmatpush1.msra.mxu0 0.0
        %1089 = vmatprep.subr.mxu0 0.0
        %1090 = vmatpush1.msra.mxu0 0.0
        %1091 = vmatprep.subr.mxu0 0.0
        %1092 = vmatpush1.msra.mxu0 0.0
        %1093 = vmatprep.subr.mxu0 0.0
        %1094 = vmatpush1.msra.mxu0 0.0
        %1095 = vmatprep.subr.mxu0 0.0
        %1096 = vmatpush1.msra.mxu0 0.0
        %1097 = vmatprep.subr.mxu0 0.0
        %1098 = vmatpush1.msra.mxu0 0.0
        %1099 = vmatprep.subr.mxu0 0.0
        %1100 = vmatpush1.msra.mxu0 0.0
        %1101 = vmatprep.subr.mxu0 0.0
        %1102 = vmatpush1.msra.mxu0 0.0
        %1103 = vmatprep.subr.mxu0 0.0
        %1104 = vmatpush1.msra.mxu0 0.0
        %1105 = vmatprep.subr.mxu0 0.0
        %1106 = vmatpush1.msra.mxu0 0.0
        %1107 = vmatprep.subr.mxu0 0.0
        %1108 = vmatpush1.msra.mxu0 0.0
        %1109 = vmatprep.subr.mxu0 0.0
        %1110 = vmatpush1.msra.mxu0 0.0
        %1111 = vmatprep.subr.mxu0 0.0
        %1112 = vmatpush1.msra.mxu0 0.0
        %1113 = vmatprep.subr.mxu0 0.0
        %1114 = vmatpush1.msra.mxu0 0.0
        %1115 = vmatprep.subr.mxu0 0.0
        %1116 = vmatpush1.msra.mxu0 0.0
        %1117 = vmatprep.subr.mxu0 0.0
        %1118 = vmatpush1.msra.mxu0 0.0
        %1119 = vmatprep.subr.mxu0 0.0
        %1120 = vmatpush1.msra.mxu0 0.0
        %1121 = vmatprep.subr.mxu0 0.0
        %1122 = vmatpush1.msra.mxu0 0.0
        %1123 = vmatprep.mubr.f32.mxu0 0.0
        %1124 = vmatmul.mubr.f32.gmra.mrb[0].mxu0 %v1057
        %v1125 = vpop.f32.mrb[0].mxu0
        %v1126 = vadd.f32 %v1053, %v1125
        %v1127 = vpop.f32.mrb[0].mxu0
        %1128 = vdwg.mxu0
        %v1129 = vld [vmem:[#allocation3 + $0x9] sm:$0xff]
        %s1130 = scalar_lea.vmem %s5, 64
        %v1131 = vld [vmem:[%s1130] sm:$0xff]
        %v1132 = vld [vmem:[%s1130 + $0x8] sm:$0xff]
        %v1133 = vld [vmem:[%s1130 + $0x10] sm:$0xff]
        %v1134 = vld [vmem:[%s1130 + $0x18] sm:$0xff]
        %v1136 = vsel %vm462, %v1129, 0
        %1138 = vmatprep.subr.mxu0 0.0
        %1139 = vmatpush1.msra.mxu0 %v1131
        %1140 = vmatprep.subr.mxu0 0.0
        %1141 = vmatpush1.msra.mxu0 %v1132
        %1142 = vmatprep.subr.mxu0 0.0
        %1143 = vmatpush1.msra.mxu0 %v1133
        %1144 = vmatprep.subr.mxu0 0.0
        %1145 = vmatpush1.msra.mxu0 %v1134
        %1146 = vmatprep.subr.mxu0 0.0
        %1147 = vmatpush1.msra.mxu0 0.0
        %1148 = vmatprep.subr.mxu0 0.0
        %1149 = vmatpush1.msra.mxu0 0.0
        %1150 = vmatprep.subr.mxu0 0.0
        %1151 = vmatpush1.msra.mxu0 0.0
        %1152 = vmatprep.subr.mxu0 0.0
        %1153 = vmatpush1.msra.mxu0 0.0
        %1154 = vmatprep.subr.mxu0 0.0
        %1155 = vmatpush1.msra.mxu0 0.0
        %1156 = vmatprep.subr.mxu0 0.0
        %1157 = vmatpush1.msra.mxu0 0.0
        %1158 = vmatprep.subr.mxu0 0.0
        %1159 = vmatpush1.msra.mxu0 0.0
        %1160 = vmatprep.subr.mxu0 0.0
        %1161 = vmatpush1.msra.mxu0 0.0
        %1162 = vmatprep.subr.mxu0 0.0
        %1163 = vmatpush1.msra.mxu0 0.0
        %1164 = vmatprep.subr.mxu0 0.0
        %1165 = vmatpush1.msra.mxu0 0.0
        %1166 = vmatprep.subr.mxu0 0.0
        %1167 = vmatpush1.msra.mxu0 0.0
        %1168 = vmatprep.subr.mxu0 0.0
        %1169 = vmatpush1.msra.mxu0 0.0
        %1170 = vmatprep.subr.mxu0 0.0
        %1171 = vmatpush1.msra.mxu0 0.0
        %1172 = vmatprep.subr.mxu0 0.0
        %1173 = vmatpush1.msra.mxu0 0.0
        %1174 = vmatprep.subr.mxu0 0.0
        %1175 = vmatpush1.msra.mxu0 0.0
        %1176 = vmatprep.subr.mxu0 0.0
        %1177 = vmatpush1.msra.mxu0 0.0
        %1178 = vmatprep.subr.mxu0 0.0
        %1179 = vmatpush1.msra.mxu0 0.0
        %1180 = vmatprep.subr.mxu0 0.0
        %1181 = vmatpush1.msra.mxu0 0.0
        %1182 = vmatprep.subr.mxu0 0.0
        %1183 = vmatpush1.msra.mxu0 0.0
        %1184 = vmatprep.subr.mxu0 0.0
        %1185 = vmatpush1.msra.mxu0 0.0
        %1186 = vmatprep.subr.mxu0 0.0
        %1187 = vmatpush1.msra.mxu0 0.0
        %1188 = vmatprep.subr.mxu0 0.0
        %1189 = vmatpush1.msra.mxu0 0.0
        %1190 = vmatprep.subr.mxu0 0.0
        %1191 = vmatpush1.msra.mxu0 0.0
        %1192 = vmatprep.subr.mxu0 0.0
        %1193 = vmatpush1.msra.mxu0 0.0
        %1194 = vmatprep.subr.mxu0 0.0
        %1195 = vmatpush1.msra.mxu0 0.0
        %1196 = vmatprep.subr.mxu0 0.0
        %1197 = vmatpush1.msra.mxu0 0.0
        %1198 = vmatprep.subr.mxu0 0.0
        %1199 = vmatpush1.msra.mxu0 0.0
        %1200 = vmatprep.subr.mxu0 0.0
        %1201 = vmatpush1.msra.mxu0 0.0
        %1202 = vmatprep.mubr.f32.mxu0 0.0
        %1203 = vmatmul.mubr.f32.gmra.mrb[0].mxu0 %v1136
        %v1204 = vpop.f32.mrb[0].mxu0
        %v1205 = vadd.f32 0.0, %v1204
        %v1206 = vpop.f32.mrb[0].mxu0
        %1207 = vdwg.mxu0
        %v1208 = vadd.f32 %v1126, %v1205
        %v1209 = vld [vmem:[%s6] sm:$0x1]
        %v1211 = vlaneseq
        %v1212 = vshrl.u32 %v1211, 7
        %v1213 = vsub.s32 0, %v1212
        %v1214 = vrot.slane %v1209, %v1213
        %v1216 = vadd.f32 %v1208, %v1214
        %v1217 = vmax.f32 %v1216, 0.0
        %v1218 = vld [vmem:[%s7] sm:$0xff]
        %v1219 = vld [vmem:[%s7 + $0x8] sm:$0xff]
        %v1220 = vld [vmem:[%s7 + $0x10] sm:$0xff]
        %v1221 = vld [vmem:[%s7 + $0x18] sm:$0xff]
        %v1222 = vld [vmem:[%s7 + $0x20] sm:$0xff]
        %v1223 = vld [vmem:[%s7 + $0x28] sm:$0xff]
        %v1224 = vld [vmem:[%s7 + $0x30] sm:$0xff]
        %v1225 = vld [vmem:[%s7 + $0x38] sm:$0xff]
        %v1226 = vld [vmem:[%s8] sm:$0x1]
        %v1228 = vlaneseq
        %v1229 = vshrl.u32 %v1228, 7
        %v1230 = vsub.s32 0, %v1229
        %v1231 = vrot.slane %v1226, %v1230
        %vm1233 = vcmask 523264
        %v1235 = vsel %vm1233, %v1217, 0
        %1237 = vmatprep.subr.mxu0 0.0
        %1238 = vmatpush1.msra.mxu0 %v1218
        %1239 = vmatprep.subr.mxu0 0.0
        %1240 = vmatpush1.msra.mxu0 %v1219
        %1241 = vmatprep.subr.mxu0 0.0
        %1242 = vmatpush1.msra.mxu0 %v1220
        %1243 = vmatprep.subr.mxu0 0.0
        %1244 = vmatpush1.msra.mxu0 %v1221
        %1245 = vmatprep.subr.mxu0 0.0
        %1246 = vmatpush1.msra.mxu0 %v1222
        %1247 = vmatprep.subr.mxu0 0.0
        %1248 = vmatpush1.msra.mxu0 %v1223
        %1249 = vmatprep.subr.mxu0 0.0
        %1250 = vmatpush1.msra.mxu0 %v1224
        %1251 = vmatprep.subr.mxu0 0.0
        %1252 = vmatpush1.msra.mxu0 %v1225
        %1253 = vmatprep.subr.mxu0 0.0
        %1254 = vmatpush1.msra.mxu0 0.0
        %1255 = vmatprep.subr.mxu0 0.0
        %1256 = vmatpush1.msra.mxu0 0.0
        %1257 = vmatprep.subr.mxu0 0.0
        %1258 = vmatpush1.msra.mxu0 0.0
        %1259 = vmatprep.subr.mxu0 0.0
        %1260 = vmatpush1.msra.mxu0 0.0
        %1261 = vmatprep.subr.mxu0 0.0
        %1262 = vmatpush1.msra.mxu0 0.0
        %1263 = vmatprep.subr.mxu0 0.0
        %1264 = vmatpush1.msra.mxu0 0.0
        %1265 = vmatprep.subr.mxu0 0.0
        %1266 = vmatpush1.msra.mxu0 0.0
        %1267 = vmatprep.subr.mxu0 0.0
        %1268 = vmatpush1.msra.mxu0 0.0
        %1269 = vmatprep.subr.mxu0 0.0
        %1270 = vmatpush1.msra.mxu0 0.0
        %1271 = vmatprep.subr.mxu0 0.0
        %1272 = vmatpush1.msra.mxu0 0.0
        %1273 = vmatprep.subr.mxu0 0.0
        %1274 = vmatpush1.msra.mxu0 0.0
        %1275 = vmatprep.subr.mxu0 0.0
        %1276 = vmatpush1.msra.mxu0 0.0
        %1277 = vmatprep.subr.mxu0 0.0
        %1278 = vmatpush1.msra.mxu0 0.0
        %1279 = vmatprep.subr.mxu0 0.0
        %1280 = vmatpush1.msra.mxu0 0.0
        %1281 = vmatprep.subr.mxu0 0.0
        %1282 = vmatpush1.msra.mxu0 0.0
        %1283 = vmatprep.subr.mxu0 0.0
        %1284 = vmatpush1.msra.mxu0 0.0
        %1285 = vmatprep.subr.mxu0 0.0
        %1286 = vmatpush1.msra.mxu0 0.0
        %1287 = vmatprep.subr.mxu0 0.0
        %1288 = vmatpush1.msra.mxu0 0.0
        %1289 = vmatprep.subr.mxu0 0.0
        %1290 = vmatpush1.msra.mxu0 0.0
        %1291 = vmatprep.subr.mxu0 0.0
        %1292 = vmatpush1.msra.mxu0 0.0
        %1293 = vmatprep.subr.mxu0 0.0
        %1294 = vmatpush1.msra.mxu0 0.0
        %1295 = vmatprep.subr.mxu0 0.0
        %1296 = vmatpush1.msra.mxu0 0.0
        %1297 = vmatprep.subr.mxu0 0.0
        %1298 = vmatpush1.msra.mxu0 0.0
        %1299 = vmatprep.subr.mxu0 0.0
        %1300 = vmatpush1.msra.mxu0 0.0
        %1301 = vmatprep.mubr.f32.mxu0 0.0
        %1302 = vmatmul.mubr.f32.gmra.mrb[0].mxu0 %v1235
        %v1303 = vpop.f32.mrb[0].mxu0
        %v1304 = vadd.f32 %v1231, %v1303
        %v1305 = vpop.f32.mrb[0].mxu0
        %1306 = vdwg.mxu0
        %v1307 = vadd.f32 %v1304, %v965
        %v1308 = vsel %vm462, %v1307, 0.0
        %1309 = vadd.xlane.f32.xlu0 %v1308
        %v1310 = vpop.xlane.xlu0 %1309
        %v1311 = vrcp.pop 32.0
        %v1312 = vmul.f32 %v1310, %v1311
        %v1313 = vsub.f32 %v1307, %v1312
        %v1314 = vmul.f32 %v1313, %v1313
        %v1315 = vsel %vm462, %v1314, 0.0
        %1316 = vadd.xlane.f32.xlu0 %v1315
        %v1317 = vpop.xlane.xlu0 %1316
        %v1318 = vmul.f32 %v1317, %v1311
        %v1319 = vadd.f32 %v1318, 1e-05
        %v1320 = vrsqrt.pop %v1319
        %v1321 = vmul.f32 %v1313, %v1320
        %v1322 = vld [vmem:[%s9] sm:$0x1]
        %v1324 = vlaneseq
        %v1325 = vshrl.u32 %v1324, 7
        %v1326 = vsub.s32 0, %v1325
        %v1327 = vrot.slane %v1322, %v1326
        %v1329 = vmul.f32 %v1321, %v1327
        %v1330 = vld [vmem:[%s10] sm:$0x1]
        %v1332 = vlaneseq
        %v1333 = vshrl.u32 %v1332, 7
        %v1334 = vsub.s32 0, %v1333
        %v1335 = vrot.slane %v1330, %v1334
        %v1337 = vadd.f32 %v1329, %v1335
        %1338 = vst.msk [vmem:[%s438] sm:$0xff] %vm462, %v1337
        %s1339 = sand.u32 %s276, 1
        %s1340 = scalar_lea.sflag [#allocation6], %s1339
        %s1341 = sand.u32 %s276, 1
        %s1342 = smul.addr %s1341, 8
        %s1343 = scalar_lea.vmem [#allocation9], %s1342
        %s1344 = sand.u32 %s302, 1
        %s1345 = scalar_lea.sflag [#allocation11], %s1344
        %s1346 = sand.u32 %s302, 1
        %s1347 = smul.addr %s1346, 8
        %s1348 = scalar_lea.vmem [#allocation10], %s1347
        // Predicated region
        $region73: #{tpu_custom_call.1} parent=63 // pred_check
          %p1349 = pneg %p286
        $region74: #{tpu_custom_call.1} parent=63 // pred_check_branch
          %1351 = sbr.rel (%p1349) target = $region76
        $region75: #{tpu_custom_call.1} parent=63 // pred_region
          %s1353 = ssub.s32 128, 128
          %1354 = vsyncadd %s1340, %s1353
          %s1355 = smul.addr %s32, 128
          %s1356 = scalar_lea.hbm %s11, %s1355
          %s1358 = sshll.u32 %s1343, 4
          %s1359 = int_to_ptr.vmem [resolvable:$true] %s1358
          %1361 = dma.vmem_to_hbm [thread:$0]  %s1359, 128, %s1356, %s1340
        $region76: #{tpu_custom_call.1} parent=63 // pred_fallthru
          _
        // Predicated region
        $region77: #{tpu_custom_call.1} parent=63 // pred_check
          %p1362 = pneg %p312
        $region78: #{tpu_custom_call.1} parent=63 // pred_check_branch
          %1364 = sbr.rel (%p1362) target = $region80
        $region79: #{tpu_custom_call.1} parent=63 // pred_region
          %s1366 = ssub.s32 128, 128
          %1367 = vsyncadd %s1345, %s1366
          %s1368 = smul.addr %s32, 128
          %s1369 = scalar_lea.hbm %s12, %s1368
          %s1371 = sshll.u32 %s1348, 4
          %s1372 = int_to_ptr.vmem [resolvable:$true] %s1371
          %1374 = dma.vmem_to_hbm [thread:$0]  %s1372, 128, %s1369, %s1345
        $region80: #{tpu_custom_call.1} parent=63 // pred_fallthru
          _
      $region64: #{tpu_custom_call.1} parent=5 // pred_fallthru
        _
      %p1375 = scmp.le.s32.totalorder 2, %s27
      // Predicated region
      $region81: #{tpu_custom_call.1} parent=5 // pred_check
        %p1376 = pneg %p1375
      $region82: #{tpu_custom_call.1} parent=5 // pred_check_branch
        %1378 = sbr.rel (%p1376) target = $region84
      $region83: #{tpu_custom_call.1} parent=5 // pred_region
        %s1379 = ssub.s32 %s27, 2
        // Predicated region
        $region85: #{tpu_custom_call.1} parent=83 // pred_check
          %p1380 = pneg %p292
        $region86: #{tpu_custom_call.1} parent=83 // pred_check_branch
          %1382 = sbr.rel (%p1380) target = $region88
        $region87: #{tpu_custom_call.1} parent=83 // pred_region
          %s1383 = sand.u32 %s277, 1
          %s1384 = scalar_lea.sflag [#allocation6], %s1383
          %s1385 = sand.u32 %s277, 1
          %s1386 = smul.addr %s1385, 8
          %s1387 = scalar_lea.vmem [#allocation9], %s1386
          %1388 = dma.done %s1384, 128
        $region88: #{tpu_custom_call.1} parent=83 // pred_fallthru
          _
        // Predicated region
        $region89: #{tpu_custom_call.1} parent=83 // pred_check
          %p1389 = pneg %p318
        $region90: #{tpu_custom_call.1} parent=83 // pred_check_branch
          %1391 = sbr.rel (%p1389) target = $region92
        $region91: #{tpu_custom_call.1} parent=83 // pred_region
          %s1392 = sand.u32 %s303, 1
          %s1393 = scalar_lea.sflag [#allocation11], %s1392
          %s1394 = sand.u32 %s303, 1
          %s1395 = smul.addr %s1394, 8
          %s1396 = scalar_lea.vmem [#allocation10], %s1395
          %1397 = dma.done %s1393, 128
        $region92: #{tpu_custom_call.1} parent=83 // pred_fallthru
          _
      $region84: #{tpu_custom_call.1} parent=5 // pred_fallthru
        _
    $region6: #{tpu_custom_call.1} parent=1 // loop_footer
      %s31 = sadd.s32 1, %s27
    $region7: #{tpu_custom_call.1} parent=1 // loop_footer_branch
      %26 = sbr.rel target = $region3
    $region8: #{tpu_custom_call.1} parent=1 // loop_exit
      _
    %1398 = vsyncpa [#allocation5], 1
    %s1399 = scalar_lea.sflag [#allocation5], 1
    %1400 = vsyncpa %s1399, 1
    %1401 = vsyncpa [#allocation8], 1
    %1402 = vsyncpa [#allocation6], 1
    %s1403 = scalar_lea.sflag [#allocation6], 1
    %1404 = vsyncpa %s1403, 1
    %1405 = vsyncpa [#allocation11], 1
    %s1406 = scalar_lea.sflag [#allocation11], 1
    %1407 = vsyncpa %s1406, 1

</llo_original>
